<compile_context>
chip_gen: v7x
topology: tpu7x:2x2x1
jax: 0.10.0
libtpu: 0.0.40
codegen_flags: <defaults>
</compile_context>

<pallas_src>
import functools
import math

import jax
import jax.numpy as jnp
from jax.experimental import pallas as pl
from jax.experimental.pallas import tpu as pltpu


# --------------------------------------------------------------------------
# Parameter preparation (runs once, at model construction time).
# --------------------------------------------------------------------------

def _split_lstm_gates(wih, whh, bih, bhh, hidden):
    """Split PyTorch-layout LSTM params into per-gate, matmul-ready pieces.

    PyTorch packs gates as row blocks [i, f, g, o] of weight_ih / weight_hh
    and sums the two bias vectors inside the cell.  Pre-transposing and
    pre-splitting here removes all in-kernel transposes and avoids slicing a
    fused (B, 4H) gate tile into 32-lane pieces.
    """
    H = hidden
    wih_g = jnp.stack([wih[k * H:(k + 1) * H, :].T for k in range(4)], 0)
    whh_g = jnp.stack([whh[k * H:(k + 1) * H, :].T for k in range(4)], 0)
    b = bih + bhh
    b_g = jnp.stack([b[k * H:(k + 1) * H].reshape(1, H) for k in range(4)], 0)
    return wih_g, whh_g, b_g


def _const_spec(shape):
    """BlockSpec for an input that stays resident across the time grid."""
    zero = (0,) * len(shape)
    return pl.BlockSpec(shape, lambda t, _z=zero: _z)


# --------------------------------------------------------------------------
# Kernel 1: the whole temporal EvolveGCNII stack, grid over time steps.
# --------------------------------------------------------------------------

def _egcn_seq_kernel(
    # per-time-step inputs (block index t)
    x_ref,          # (N, Cin)
    adj_norm_ref,   # (N, N)
    adj_raw_ref,    # (N, N)
    # resident constants
    lin0_w_ref,     # (Cin, H)
    lin0_b_ref,     # (1, H)
    w1_init_ref,    # (L-1, H, H)
    rec_wih_ref,    # ((L-1)*4, H, H)  per layer, per gate (i,f,g,o): Wih^T
    rec_b_ref,      # ((L-1)*4, 1, H)  combined biases per gate
    rec0_wih_ref,   # (4, H, H)        recurrents[0]
    rec0_b_ref,     # (4, 1, H)
    bn_gamma_ref,   # (max(L-2,1), 1, H)
    bn_beta_ref,    # (max(L-2,1), 1, H)
    # output (block index t)
    z_out_ref,      # (N, H)
    # scratch (persists across the time grid)
    w1_sc,          # (L-1, H, H)  evolving GCN2Conv weight1
    c_sc,           # (L-1, H, H)  LSTM cell states for recurrents[1..]
    c0_sc,          # (Cin, H)     LSTM cell state for recurrents[0]
    *, num_layers, alpha, betas, activation, eps,
):
    L = num_layers
    t = pl.program_id(0)

    @pl.when(t == 0)
    def _init():
        w1_sc[...] = w1_init_ref[...]
        c_sc[...] = jnp.zeros_like(c_sc)
        c0_sc[...] = jnp.zeros_like(c0_sc)

    def dot(a, b):
        return jnp.dot(a, b, preferred_element_type=jnp.float32)

    # --- recurrents[0]: evolve the (never used) GCNConv weight.  Its h input
    #     is always zero and the evolved W goes to the unused `.weight1`, so
    #     only the cell state needs advancing (i, f, g gates only).
    w0 = lin0_w_ref[...]
    gi0 = jax.nn.sigmoid(dot(w0, rec0_wih_ref[0]) + rec0_b_ref[0])
    gf0 = jax.nn.sigmoid(dot(w0, rec0_wih_ref[1]) + rec0_b_ref[1])
    gg0 = jnp.tanh(dot(w0, rec0_wih_ref[2]) + rec0_b_ref[2])
    c0_sc[...] = gf0 * c0_sc[...] + gi0 * gg0

    # --- GCNConv: z = A_norm @ (x @ W) + b, computed as (A_norm @ x) @ W so
    #     the N x N contraction runs over Cin (< H) channels.
    ax = dot(adj_norm_ref[...], x_ref[...])
    z = dot(ax, w0) + lin0_b_ref[...]
    x0 = z

    # --- GCN2Conv stack with LSTM-evolved weight1 per layer.
    for i in range(L - 1):
        # Weight-evolution LSTM step (h input is always zero in the reference,
        # so the weight_hh term vanishes).  Dropout p=0 -> identity.
        w_cur = w1_sc[i]
        c_cur = c_sc[i]
        g = 4 * i
        gi = jax.nn.sigmoid(dot(w_cur, rec_wih_ref[g + 0]) + rec_b_ref[g + 0])
        gf = jax.nn.sigmoid(dot(w_cur, rec_wih_ref[g + 1]) + rec_b_ref[g + 1])
        gg = jnp.tanh(dot(w_cur, rec_wih_ref[g + 2]) + rec_b_ref[g + 2])
        go = jax.nn.sigmoid(dot(w_cur, rec_wih_ref[g + 3]) + rec_b_ref[g + 3])
        c_new = gf * c_cur + gi * gg
        w_new = go * jnp.tanh(c_new)
        c_sc[i] = c_new
        w1_sc[i] = w_new

        # GCN2Conv (normalize=False, sum aggregation).
        h = dot(adj_raw_ref[...], z)
        h = (1.0 - alpha) * h + alpha * x0
        beta = betas[i]
        z = (1.0 - beta) * h + beta * dot(h, w_new)

        if i < L - 2:
            # BatchNorm1d in training mode: biased batch stats over nodes.
            mu = jnp.mean(z, axis=0, keepdims=True)
            var = jnp.mean((z - mu) ** 2, axis=0, keepdims=True)
            z = (z - mu) * jax.lax.rsqrt(var + eps) * bn_gamma_ref[i] + bn_beta_ref[i]
            if activation == "relu":
                z = jnp.maximum(z, 0.0)
            elif activation == "leaky_relu":
                z = jnp.where(z >= 0.0, z, 0.01 * z)
            elif activation == "tanh":
                z = jnp.tanh(z)

    z_out_ref[...] = z


def _egcn_sequence(x_stk, adj_norm_stk, adj_raw_stk, params, *,
                   num_layers, alpha, betas, activation):
    T, N, Cin = x_stk.shape
    H = params["lin0_w"].shape[1]
    L = num_layers
    nbn = max(L - 2, 1)

    kernel = functools.partial(_egcn_seq_kernel, num_layers=L, alpha=alpha,
                               betas=betas, activation=activation, eps=1e-5)

    in_specs = [
        pl.BlockSpec((None, N, Cin), lambda t: (t, 0, 0)),
        pl.BlockSpec((None, N, N), lambda t: (t, 0, 0)),
        pl.BlockSpec((None, N, N), lambda t: (t, 0, 0)),
        _const_spec((Cin, H)),
        _const_spec((1, H)),
        _const_spec((L - 1, H, H)),
        _const_spec(((L - 1) * 4, H, H)),
        _const_spec(((L - 1) * 4, 1, H)),
        _const_spec((4, H, H)),
        _const_spec((4, 1, H)),
        _const_spec((nbn, 1, H)),
        _const_spec((nbn, 1, H)),
    ]
    out_spec = pl.BlockSpec((None, N, H), lambda t: (t, 0, 0))

    return pl.pallas_call(
        kernel,
        out_shape=jax.ShapeDtypeStruct((T, N, H), jnp.float32),
        grid=(T,),
        in_specs=in_specs,
        out_specs=out_spec,
        scratch_shapes=[pltpu.VMEM((L - 1, H, H), jnp.float32),
                        pltpu.VMEM((L - 1, H, H), jnp.float32),
                        pltpu.VMEM((Cin, H), jnp.float32)],
        compiler_params=pltpu.CompilerParams(
            dimension_semantics=("arbitrary",)),
    )(x_stk, adj_norm_stk, adj_raw_stk,
      params["lin0_w"], params["lin0_b"], params["w1_init"],
      params["rec_wih"], params["rec_b"],
      params["rec0_wih"], params["rec0_b"],
      params["bn_gamma"], params["bn_beta"])


# --------------------------------------------------------------------------
# Kernel 2: future-prediction feature LSTM, grid over the first T-1 z's.
# --------------------------------------------------------------------------

def _feature_lstm_kernel(z_ref, wih_ref, whh_ref, b_ref, out_ref, h_sc, c_sc):
    t = pl.program_id(0)

    @pl.when(t == 0)
    def _init():
        h_sc[...] = jnp.zeros_like(h_sc)
        c_sc[...] = jnp.zeros_like(c_sc)

    def dot(a, b):
        return jnp.dot(a, b, preferred_element_type=jnp.float32)

    x = z_ref[...]
    h = h_sc[...]
    c = c_sc[...]
    gi = jax.nn.sigmoid(dot(x, wih_ref[0]) + dot(h, whh_ref[0]) + b_ref[0])
    gf = jax.nn.sigmoid(dot(x, wih_ref[1]) + dot(h, whh_ref[1]) + b_ref[1])
    gg = jnp.tanh(dot(x, wih_ref[2]) + dot(h, whh_ref[2]) + b_ref[2])
    go = jax.nn.sigmoid(dot(x, wih_ref[3]) + dot(h, whh_ref[3]) + b_ref[3])
    c_new = gf * c + gi * gg
    h_new = go * jnp.tanh(c_new)
    h_sc[...] = h_new
    c_sc[...] = c_new

    @pl.when(t == pl.num_programs(0) - 1)
    def _final():
        # One extra step: input = last hidden, h input = 0 (Whh term drops),
        # cell seeded with the final cell state.
        i2 = jax.nn.sigmoid(dot(h_new, wih_ref[0]) + b_ref[0])
        f2 = jax.nn.sigmoid(dot(h_new, wih_ref[1]) + b_ref[1])
        g2 = jnp.tanh(dot(h_new, wih_ref[2]) + b_ref[2])
        o2 = jax.nn.sigmoid(dot(h_new, wih_ref[3]) + b_ref[3])
        c2 = f2 * c_new + i2 * g2
        out_ref[...] = o2 * jnp.tanh(c2)


def _feature_lstm(z_head, feat_wih, feat_whh, feat_b):
    Tm1, N, H = z_head.shape
    return pl.pallas_call(
        _feature_lstm_kernel,
        out_shape=jax.ShapeDtypeStruct((N, H), jnp.float32),
        grid=(Tm1,),
        in_specs=[pl.BlockSpec((None, N, H), lambda t: (t, 0, 0)),
                  _const_spec((4, H, H)),
                  _const_spec((4, H, H)),
                  _const_spec((4, 1, H))],
        out_specs=pl.BlockSpec((N, H), lambda t: (0, 0)),
        scratch_shapes=[pltpu.VMEM((N, H), jnp.float32),
                        pltpu.VMEM((N, H), jnp.float32)],
        compiler_params=pltpu.CompilerParams(
            dimension_semantics=("arbitrary",)),
    )(z_head, feat_wih, feat_whh, feat_b)


# --------------------------------------------------------------------------
# The model.
# --------------------------------------------------------------------------

class EvolveGCNIIOPallas:
    def __init__(self, in_channels, num_hidden_channels, num_layers,
                 alpha=0.1, theta=0.5, activation=None, dropout=0.0,
                 future_prediction=True, key=None):
        assert num_layers >= 2, "need at least one GCN2Conv layer"
        self.in_channels = in_channels
        self.H = num_hidden_channels
        self.num_layers = num_layers
        self.alpha = float(alpha)
        self.theta = float(theta)
        self.activation = activation
        self.dropout = dropout
        # TODO(synk): stochastic dropout (p > 0) is not implemented; the
        # reference default p = 0.0 is an exact identity.
        self.future_prediction = future_prediction

        H = self.H
        L = num_layers
        kidx = iter(jax.random.split(key, 8 + 8 * num_layers))

        def init(shape, scale):
            return scale * jax.random.normal(next(kidx), shape, jnp.float32)

        def lstm_raw():
            s = 1.0 / math.sqrt(H)
            return (init((4 * H, H), s), init((4 * H, H), s),
                    init((4 * H,), s), init((4 * H,), s))

        # GCNConv (old-style PyG): weight (in, H), bias (H,).
        lin0_w = init((in_channels, H), 1.0 / math.sqrt(in_channels))
        lin0_b = jnp.zeros((1, H), jnp.float32)
        # GCN2Conv shared weight1 per layer (initial values; evolved in-kernel).
        w1_init = jnp.stack(
            [init((H, H), 1.0 / math.sqrt(H)) for _ in range(L - 1)], 0)

        # recurrents[0]: only the cell state matters (weight_hh unused, h=0).
        wih, whh, bih, bhh = lstm_raw()
        rec0_wih, _, rec0_b = _split_lstm_gates(wih, whh, bih, bhh, H)

        # recurrents[1..L-1]: evolve the GCN2Conv weight1 matrices.
        rec_wih, rec_b = [], []
        for _ in range(L - 1):
            wih, whh, bih, bhh = lstm_raw()
            wih_g, _, b_g = _split_lstm_gates(wih, whh, bih, bhh, H)
            rec_wih.append(wih_g)
            rec_b.append(b_g)
        rec_wih = jnp.concatenate(rec_wih, 0)      # ((L-1)*4, H, H)
        rec_b = jnp.concatenate(rec_b, 0)          # ((L-1)*4, 1, H)

        # feature LSTM (full h/c recurrence).
        wih, whh, bih, bhh = lstm_raw()
        feat_wih, feat_whh, feat_b = _split_lstm_gates(wih, whh, bih, bhh, H)

        nbn = max(L - 2, 1)
        self.params = dict(
            lin0_w=lin0_w, lin0_b=lin0_b, w1_init=w1_init,
            rec_wih=rec_wih, rec_b=rec_b,
            rec0_wih=rec0_wih, rec0_b=rec0_b,
            bn_gamma=jnp.ones((nbn, 1, H), jnp.float32),   # BatchNorm defaults
            bn_beta=jnp.zeros((nbn, 1, H), jnp.float32),
            feat_wih=feat_wih, feat_whh=feat_whh, feat_b=feat_b,
        )
        self._forward_fn = self._build_forward()

    def _build_forward(self):
        num_layers = self.num_layers
        alpha = self.alpha
        betas = tuple(float(math.log(self.theta / (i + 1) + 1.0))
                      for i in range(num_layers - 1))
        activation = self.activation
        future = self.future_prediction

        def fwd(params, x_stk, edge_seq):
            T, N, _ = x_stk.shape
            # Dense adjacency per step: A_raw[dst, src] += 1 per edge (sum
            # aggregation, duplicate edges accumulate).  Built once; the
            # normalized GCN adjacency is derived from it.
            adj_raw = jnp.stack(
                [jnp.zeros((N, N), jnp.float32).at[ei[1], ei[0]].add(1.0)
                 for ei in edge_seq], 0)
            A = adj_raw + jnp.eye(N, dtype=jnp.float32)
            deg = jnp.sum(A, axis=-1)
            dinv = jnp.where(deg > 0.0, jax.lax.rsqrt(deg), 0.0)
            adj_norm = A * dinv[:, :, None] * dinv[:, None, :]

            z_stk = _egcn_sequence(x_stk, adj_norm, adj_raw, params,
                                   num_layers=num_layers, alpha=alpha,
                                   betas=betas, activation=activation)
            if future:
                h2 = _feature_lstm(z_stk[:-1], params["feat_wih"],
                                   params["feat_whh"], params["feat_b"])
                z_stk = z_stk.at[-1].set(h2)
            return z_stk

        return jax.jit(fwd)

    def forward(self, x_seq, edge_index_seq):
        x_seq = list(x_seq)
        edge_index_seq = list(edge_index_seq)
        if self.future_prediction:
            x_seq = x_seq[:-1]
            edge_index_seq = edge_index_seq[:-1]
        x_stk = jnp.stack(x_seq, 0)
        z_stk = self._forward_fn(self.params, x_stk, tuple(edge_index_seq))
        return [z_stk[t] for t in range(z_stk.shape[0])]


# --------------------------------------------------------------------------
# Main.
# --------------------------------------------------------------------------

if __name__ == "__main__":
    key = jax.random.PRNGKey(0)
    num_nodes, in_channels, hidden, num_layers = 16, 8, 32, 3
    T_full, num_base_edges = 5, 24

    kx, ke, kp = jax.random.split(key, 3)
    x_keys = jax.random.split(kx, T_full)
    e_keys = jax.random.split(ke, T_full)

    x_seq = [jax.random.normal(x_keys[t], (num_nodes, in_channels), jnp.float32)
             for t in range(T_full)]
    edge_index_seq = []
    for t in range(T_full):
        pairs = jax.random.randint(e_keys[t], (2, num_base_edges), 0, num_nodes)
        ei = jnp.concatenate([pairs, pairs[::-1]], axis=1)   # symmetrize
        edge_index_seq.append(ei)

    model = EvolveGCNIIOPallas(in_channels, hidden, num_layers,
                               alpha=0.1, theta=0.5, activation="relu",
                               dropout=0.0, future_prediction=True, key=kp)

    z_seq = model.forward(x_seq, edge_index_seq)
    z_seq = [jax.block_until_ready(z) for z in z_seq]

    assert len(z_seq) == T_full - 1
    assert all(z.shape == (num_nodes, hidden) for z in z_seq)
    assert all(bool(jnp.all(jnp.isfinite(z))) for z in z_seq)
    print("KERNEL_OK")
</pallas_src>

<mosaic_0001>
module attributes {stable_mosaic.version = 11 : i64} {
  func.func private @main(%arg0: i32) attributes {dimension_semantics = [#tpu.dimension_semantics<core_parallel>], iteration_bounds = array<i64: 2>, tpu.core_type = #tpu.core_type<sc_scalar_subcore>, window_params = []} {
    return
  }
}

module attributes {stable_mosaic.version = 11 : i64} {
  func.func private @main(%arg0: i32) attributes {dimension_semantics = [#tpu.dimension_semantics<core_parallel>], iteration_bounds = array<i64: 2>, tpu.core_type = #tpu.core_type<sc_scalar_subcore>, window_params = []} {
    return
  }
}

module attributes {stable_mosaic.version = 11 : i64} {
  func.func @_feature_lstm_kernel(%arg0: i32, %arg1: memref<1x16x32xf32, #tpu.memory_space<vmem>>, %arg2: memref<4x32x32xf32, #tpu.memory_space<vmem>>, %arg3: memref<4x32x32xf32, #tpu.memory_space<vmem>>, %arg4: memref<4x1x32xf32, #tpu.memory_space<vmem>>, %arg5: memref<16x32xf32, #tpu.memory_space<vmem>>, %arg6: memref<16x32xf32, #tpu.memory_space<vmem>>, %arg7: memref<16x32xf32, #tpu.memory_space<vmem>>) attributes {dimension_semantics = [#tpu.dimension_semantics<arbitrary>], iteration_bounds = array<i64: 3>, scalar_prefetch = 0 : i64, scratch_operands = 2 : i64, tpu.core_type = #tpu.core_type<tc>, window_params = [{transform_indices = @transform_0, window_bounds = array<i64: 1, 16, 32>}, {pipeline_mode = #tpu.pipeline_mode<synchronous>, transform_indices = @transform_1, window_bounds = array<i64: 4, 32, 32>}, {pipeline_mode = #tpu.pipeline_mode<synchronous>, transform_indices = @transform_2, window_bounds = array<i64: 4, 32, 32>}, {pipeline_mode = #tpu.pipeline_mode<synchronous>, transform_indices = @transform_3, window_bounds = array<i64: 4, 1, 32>}, {pipeline_mode = #tpu.pipeline_mode<synchronous>, transform_indices = @transform_4, window_bounds = array<i64: 16, 32>}]} {
    %c0_i32 = arith.constant 0 : i32
    %0 = arith.cmpi eq, %arg0, %c0_i32 : i32
    %1 = arith.extui %0 : i1 to i32
    %c0_i32_0 = arith.constant 0 : i32
    %2 = arith.cmpi ne, %1, %c0_i32_0 : i32
    scf.if %2 {
      %cst_55 = arith.constant 0.000000e+00 : f32
      %77 = vector.broadcast %cst_55 : f32 to vector<16x32xf32>
      %c0_56 = arith.constant 0 : index
      %c0_57 = arith.constant 0 : index
      %78 = vector.load %arg6[%c0_56, %c0_57] : memref<16x32xf32, #tpu.memory_space<vmem>>, vector<16x32xf32>
      tpu.vector_store %arg6[%c0_56, %c0_57], %77 {strides = array<i32>} : memref<16x32xf32, #tpu.memory_space<vmem>>, vector<16x32xf32>,
      %cst_58 = arith.constant 0.000000e+00 : f32
      %79 = vector.broadcast %cst_58 : f32 to vector<16x32xf32>
      %c0_59 = arith.constant 0 : index
      %c0_60 = arith.constant 0 : index
      %80 = vector.load %arg7[%c0_59, %c0_60] : memref<16x32xf32, #tpu.memory_space<vmem>>, vector<16x32xf32>
      tpu.vector_store %arg7[%c0_59, %c0_60], %79 {strides = array<i32>} : memref<16x32xf32, #tpu.memory_space<vmem>>, vector<16x32xf32>,
    } else {
    }
    %c0 = arith.constant 0 : index
    %c0_1 = arith.constant 0 : index
    %c0_2 = arith.constant 0 : index
    %3 = vector.load %arg1[%c0, %c0_1, %c0_2] : memref<1x16x32xf32, #tpu.memory_space<vmem>>, vector<1x16x32xf32>
    %4 = vector.shape_cast %3 : vector<1x16x32xf32> to vector<16x32xf32>
    %c0_3 = arith.constant 0 : index
    %c0_4 = arith.constant 0 : index
    %5 = vector.load %arg6[%c0_3, %c0_4] : memref<16x32xf32, #tpu.memory_space<vmem>>, vector<16x32xf32>
    %c0_5 = arith.constant 0 : index
    %c0_6 = arith.constant 0 : index
    %6 = vector.load %arg7[%c0_5, %c0_6] : memref<16x32xf32, #tpu.memory_space<vmem>>, vector<16x32xf32>
    %c0_7 = arith.constant 0 : index
    %c0_8 = arith.constant 0 : index
    %c0_9 = arith.constant 0 : index
    %7 = vector.load %arg2[%c0_7, %c0_8, %c0_9] : memref<4x32x32xf32, #tpu.memory_space<vmem>>, vector<1x32x32xf32>
    %8 = vector.shape_cast %7 : vector<1x32x32xf32> to vector<32x32xf32>
    %cst = arith.constant dense<0.000000e+00> : vector<16x32xf32>
    %9 = tpu.matmul %4, %8, %cst {dimension_numbers = #tpu.dot_dimension_numbers<[1], [0], [0], [1], [0, 0, 1, 1], [], []>} : vector<16x32xf32>, vector<32x32xf32>, vector<16x32xf32> -> vector<16x32xf32>
    %c0_10 = arith.constant 0 : index
    %c0_11 = arith.constant 0 : index
    %c0_12 = arith.constant 0 : index
    %10 = vector.load %arg3[%c0_10, %c0_11, %c0_12] : memref<4x32x32xf32, #tpu.memory_space<vmem>>, vector<1x32x32xf32>
    %11 = vector.shape_cast %10 : vector<1x32x32xf32> to vector<32x32xf32>
    %cst_13 = arith.constant dense<0.000000e+00> : vector<16x32xf32>
    %12 = tpu.matmul %5, %11, %cst_13 {dimension_numbers = #tpu.dot_dimension_numbers<[1], [0], [0], [1], [0, 0, 1, 1], [], []>} : vector<16x32xf32>, vector<32x32xf32>, vector<16x32xf32> -> vector<16x32xf32>
    %13 = arith.addf %9, %12 : vector<16x32xf32>
    %c0_14 = arith.constant 0 : index
    %c0_15 = arith.constant 0 : index
    %c0_16 = arith.constant 0 : index
    %14 = vector.load %arg4[%c0_14, %c0_15, %c0_16] : memref<4x1x32xf32, #tpu.memory_space<vmem>>, vector<1x1x32xf32>
    %15 = vector.shape_cast %14 : vector<1x1x32xf32> to vector<1x32xf32>
    %16 = vector.broadcast %15 : vector<1x32xf32> to vector<16x32xf32>
    %17 = arith.addf %13, %16 : vector<16x32xf32>
    %18 = arith.negf %17 : vector<16x32xf32>
    %19 = math.exp %18 : vector<16x32xf32>
    %cst_17 = arith.constant 1.000000e+00 : f32
    %20 = vector.broadcast %cst_17 : f32 to vector<16x32xf32>
    %21 = arith.addf %20, %19 : vector<16x32xf32>
    %22 = arith.divf %20, %21 : vector<16x32xf32>
    %c1 = arith.constant 1 : index
    %c0_18 = arith.constant 0 : index
    %c0_19 = arith.constant 0 : index
    %23 = vector.load %arg2[%c1, %c0_18, %c0_19] : memref<4x32x32xf32, #tpu.memory_space<vmem>>, vector<1x32x32xf32>
    %24 = vector.shape_cast %23 : vector<1x32x32xf32> to vector<32x32xf32>
    %cst_20 = arith.constant dense<0.000000e+00> : vector<16x32xf32>
    %25 = tpu.matmul %4, %24, %cst_20 {dimension_numbers = #tpu.dot_dimension_numbers<[1], [0], [0], [1], [0, 0, 1, 1], [], []>} : vector<16x32xf32>, vector<32x32xf32>, vector<16x32xf32> -> vector<16x32xf32>
    %c1_21 = arith.constant 1 : index
    %c0_22 = arith.constant 0 : index
    %c0_23 = arith.constant 0 : index
    %26 = vector.load %arg3[%c1_21, %c0_22, %c0_23] : memref<4x32x32xf32, #tpu.memory_space<vmem>>, vector<1x32x32xf32>
    %27 = vector.shape_cast %26 : vector<1x32x32xf32> to vector<32x32xf32>
    %cst_24 = arith.constant dense<0.000000e+00> : vector<16x32xf32>
    %28 = tpu.matmul %5, %27, %cst_24 {dimension_numbers = #tpu.dot_dimension_numbers<[1], [0], [0], [1], [0, 0, 1, 1], [], []>} : vector<16x32xf32>, vector<32x32xf32>, vector<16x32xf32> -> vector<16x32xf32>
    %29 = arith.addf %25, %28 : vector<16x32xf32>
    %c1_25 = arith.constant 1 : index
    %c0_26 = arith.constant 0 : index
    %c0_27 = arith.constant 0 : index
    %30 = vector.load %arg4[%c1_25, %c0_26, %c0_27] : memref<4x1x32xf32, #tpu.memory_space<vmem>>, vector<1x1x32xf32>
    %31 = vector.shape_cast %30 : vector<1x1x32xf32> to vector<1x32xf32>
    %32 = vector.broadcast %31 : vector<1x32xf32> to vector<16x32xf32>
    %33 = arith.addf %29, %32 : vector<16x32xf32>
    %34 = arith.negf %33 : vector<16x32xf32>
    %35 = math.exp %34 : vector<16x32xf32>
    %cst_28 = arith.constant 1.000000e+00 : f32
    %36 = vector.broadcast %cst_28 : f32 to vector<16x32xf32>
    %37 = arith.addf %36, %35 : vector<16x32xf32>
    %38 = arith.divf %36, %37 : vector<16x32xf32>
    %c2 = arith.constant 2 : index
    %c0_29 = arith.constant 0 : index
    %c0_30 = arith.constant 0 : index
    %39 = vector.load %arg2[%c2, %c0_29, %c0_30] : memref<4x32x32xf32, #tpu.memory_space<vmem>>, vector<1x32x32xf32>
    %40 = vector.shape_cast %39 : vector<1x32x32xf32> to vector<32x32xf32>
    %cst_31 = arith.constant dense<0.000000e+00> : vector<16x32xf32>
    %41 = tpu.matmul %4, %40, %cst_31 {dimension_numbers = #tpu.dot_dimension_numbers<[1], [0], [0], [1], [0, 0, 1, 1], [], []>} : vector<16x32xf32>, vector<32x32xf32>, vector<16x32xf32> -> vector<16x32xf32>
    %c2_32 = arith.constant 2 : index
    %c0_33 = arith.constant 0 : index
    %c0_34 = arith.constant 0 : index
    %42 = vector.load %arg3[%c2_32, %c0_33, %c0_34] : memref<4x32x32xf32, #tpu.memory_space<vmem>>, vector<1x32x32xf32>
    %43 = vector.shape_cast %42 : vector<1x32x32xf32> to vector<32x32xf32>
    %cst_35 = arith.constant dense<0.000000e+00> : vector<16x32xf32>
    %44 = tpu.matmul %5, %43, %cst_35 {dimension_numbers = #tpu.dot_dimension_numbers<[1], [0], [0], [1], [0, 0, 1, 1], [], []>} : vector<16x32xf32>, vector<32x32xf32>, vector<16x32xf32> -> vector<16x32xf32>
    %45 = arith.addf %41, %44 : vector<16x32xf32>
    %c2_36 = arith.constant 2 : index
    %c0_37 = arith.constant 0 : index
    %c0_38 = arith.constant 0 : index
    %46 = vector.load %arg4[%c2_36, %c0_37, %c0_38] : memref<4x1x32xf32, #tpu.memory_space<vmem>>, vector<1x1x32xf32>
    %47 = vector.shape_cast %46 : vector<1x1x32xf32> to vector<1x32xf32>
    %48 = vector.broadcast %47 : vector<1x32xf32> to vector<16x32xf32>
    %49 = arith.addf %45, %48 : vector<16x32xf32>
    %50 = math.tanh %49 : vector<16x32xf32>
    %c3 = arith.constant 3 : index
    %c0_39 = arith.constant 0 : index
    %c0_40 = arith.constant 0 : index
    %51 = vector.load %arg2[%c3, %c0_39, %c0_40] : memref<4x32x32xf32, #tpu.memory_space<vmem>>, vector<1x32x32xf32>
    %52 = vector.shape_cast %51 : vector<1x32x32xf32> to vector<32x32xf32>
    %cst_41 = arith.constant dense<0.000000e+00> : vector<16x32xf32>
    %53 = tpu.matmul %4, %52, %cst_41 {dimension_numbers = #tpu.dot_dimension_numbers<[1], [0], [0], [1], [0, 0, 1, 1], [], []>} : vector<16x32xf32>, vector<32x32xf32>, vector<16x32xf32> -> vector<16x32xf32>
    %c3_42 = arith.constant 3 : index
    %c0_43 = arith.constant 0 : index
    %c0_44 = arith.constant 0 : index
    %54 = vector.load %arg3[%c3_42, %c0_43, %c0_44] : memref<4x32x32xf32, #tpu.memory_space<vmem>>, vector<1x32x32xf32>
    %55 = vector.shape_cast %54 : vector<1x32x32xf32> to vector<32x32xf32>
    %cst_45 = arith.constant dense<0.000000e+00> : vector<16x32xf32>
    %56 = tpu.matmul %5, %55, %cst_45 {dimension_numbers = #tpu.dot_dimension_numbers<[1], [0], [0], [1], [0, 0, 1, 1], [], []>} : vector<16x32xf32>, vector<32x32xf32>, vector<16x32xf32> -> vector<16x32xf32>
    %57 = arith.addf %53, %56 : vector<16x32xf32>
    %c3_46 = arith.constant 3 : index
    %c0_47 = arith.constant 0 : index
    %c0_48 = arith.constant 0 : index
    %58 = vector.load %arg4[%c3_46, %c0_47, %c0_48] : memref<4x1x32xf32, #tpu.memory_space<vmem>>, vector<1x1x32xf32>
    %59 = vector.shape_cast %58 : vector<1x1x32xf32> to vector<1x32xf32>
    %60 = vector.broadcast %59 : vector<1x32xf32> to vector<16x32xf32>
    %61 = arith.addf %57, %60 : vector<16x32xf32>
    %62 = arith.negf %61 : vector<16x32xf32>
    %63 = math.exp %62 : vector<16x32xf32>
    %cst_49 = arith.constant 1.000000e+00 : f32
    %64 = vector.broadcast %cst_49 : f32 to vector<16x32xf32>
    %65 = arith.addf %64, %63 : vector<16x32xf32>
    %66 = arith.divf %64, %65 : vector<16x32xf32>
    %67 = arith.mulf %38, %6 : vector<16x32xf32>
    %68 = arith.mulf %22, %50 : vector<16x32xf32>
    %69 = arith.addf %67, %68 : vector<16x32xf32>
    %70 = math.tanh %69 : vector<16x32xf32>
    %71 = arith.mulf %66, %70 : vector<16x32xf32>
    %c0_50 = arith.constant 0 : index
    %c0_51 = arith.constant 0 : index
    %72 = vector.load %arg6[%c0_50, %c0_51] : memref<16x32xf32, #tpu.memory_space<vmem>>, vector<16x32xf32>
    tpu.vector_store %arg6[%c0_50, %c0_51], %71 {strides = array<i32>} : memref<16x32xf32, #tpu.memory_space<vmem>>, vector<16x32xf32>,
    %c0_52 = arith.constant 0 : index
    %c0_53 = arith.constant 0 : index
    %73 = vector.load %arg7[%c0_52, %c0_53] : memref<16x32xf32, #tpu.memory_space<vmem>>, vector<16x32xf32>
    tpu.vector_store %arg7[%c0_52, %c0_53], %69 {strides = array<i32>} : memref<16x32xf32, #tpu.memory_space<vmem>>, vector<16x32xf32>,
    %c2_i32 = arith.constant 2 : i32
    %74 = arith.cmpi eq, %arg0, %c2_i32 : i32
    %75 = arith.extui %74 : i1 to i32
    %c0_i32_54 = arith.constant 0 : i32
    %76 = arith.cmpi ne, %75, %c0_i32_54 : i32
    scf.if %76 {
      %c0_55 = arith.constant 0 : index
      %c0_56 = arith.constant 0 : index
      %c0_57 = arith.constant 0 : index
      %77 = vector.load %arg2[%c0_55, %c0_56, %c0_57] : memref<4x32x32xf32, #tpu.memory_space<vmem>>, vector<1x32x32xf32>
      %78 = vector.shape_cast %77 : vector<1x32x32xf32> to vector<32x32xf32>
      %cst_58 = arith.constant dense<0.000000e+00> : vector<16x32xf32>
      %79 = tpu.matmul %71, %78, %cst_58 {dimension_numbers = #tpu.dot_dimension_numbers<[1], [0], [0], [1], [0, 0, 1, 1], [], []>} : vector<16x32xf32>, vector<32x32xf32>, vector<16x32xf32> -> vector<16x32xf32>
      %c0_59 = arith.constant 0 : index
      %c0_60 = arith.constant 0 : index
      %c0_61 = arith.constant 0 : index
      %80 = vector.load %arg4[%c0_59, %c0_60, %c0_61] : memref<4x1x32xf32, #tpu.memory_space<vmem>>, vector<1x1x32xf32>
      %81 = vector.shape_cast %80 : vector<1x1x32xf32> to vector<1x32xf32>
      %82 = vector.broadcast %81 : vector<1x32xf32> to vector<16x32xf32>
      %83 = arith.addf %79, %82 : vector<16x32xf32>
      %84 = arith.negf %83 : vector<16x32xf32>
      %85 = math.exp %84 : vector<16x32xf32>
      %cst_62 = arith.constant 1.000000e+00 : f32
      %86 = vector.broadcast %cst_62 : f32 to vector<16x32xf32>
      %87 = arith.addf %86, %85 : vector<16x32xf32>
      %88 = arith.divf %86, %87 : vector<16x32xf32>
      %c1_63 = arith.constant 1 : index
      %c0_64 = arith.constant 0 : index
      %c0_65 = arith.constant 0 : index
      %89 = vector.load %arg2[%c1_63, %c0_64, %c0_65] : memref<4x32x32xf32, #tpu.memory_space<vmem>>, vector<1x32x32xf32>
      %90 = vector.shape_cast %89 : vector<1x32x32xf32> to vector<32x32xf32>
      %cst_66 = arith.constant dense<0.000000e+00> : vector<16x32xf32>
      %91 = tpu.matmul %71, %90, %cst_66 {dimension_numbers = #tpu.dot_dimension_numbers<[1], [0], [0], [1], [0, 0, 1, 1], [], []>} : vector<16x32xf32>, vector<32x32xf32>, vector<16x32xf32> -> vector<16x32xf32>
      %c1_67 = arith.constant 1 : index
      %c0_68 = arith.constant 0 : index
      %c0_69 = arith.constant 0 : index
      %92 = vector.load %arg4[%c1_67, %c0_68, %c0_69] : memref<4x1x32xf32, #tpu.memory_space<vmem>>, vector<1x1x32xf32>
      %93 = vector.shape_cast %92 : vector<1x1x32xf32> to vector<1x32xf32>
      %94 = vector.broadcast %93 : vector<1x32xf32> to vector<16x32xf32>
      %95 = arith.addf %91, %94 : vector<16x32xf32>
      %96 = arith.negf %95 : vector<16x32xf32>
      %97 = math.exp %96 : vector<16x32xf32>
      %cst_70 = arith.constant 1.000000e+00 : f32
      %98 = vector.broadcast %cst_70 : f32 to vector<16x32xf32>
      %99 = arith.addf %98, %97 : vector<16x32xf32>
      %100 = arith.divf %98, %99 : vector<16x32xf32>
      %c2_71 = arith.constant 2 : index
      %c0_72 = arith.constant 0 : index
      %c0_73 = arith.constant 0 : index
      %101 = vector.load %arg2[%c2_71, %c0_72, %c0_73] : memref<4x32x32xf32, #tpu.memory_space<vmem>>, vector<1x32x32xf32>
      %102 = vector.shape_cast %101 : vector<1x32x32xf32> to vector<32x32xf32>
      %cst_74 = arith.constant dense<0.000000e+00> : vector<16x32xf32>
      %103 = tpu.matmul %71, %102, %cst_74 {dimension_numbers = #tpu.dot_dimension_numbers<[1], [0], [0], [1], [0, 0, 1, 1], [], []>} : vector<16x32xf32>, vector<32x32xf32>, vector<16x32xf32> -> vector<16x32xf32>
      %c2_75 = arith.constant 2 : index
      %c0_76 = arith.constant 0 : index
      %c0_77 = arith.constant 0 : index
      %104 = vector.load %arg4[%c2_75, %c0_76, %c0_77] : memref<4x1x32xf32, #tpu.memory_space<vmem>>, vector<1x1x32xf32>
      %105 = vector.shape_cast %104 : vector<1x1x32xf32> to vector<1x32xf32>
      %106 = vector.broadcast %105 : vector<1x32xf32> to vector<16x32xf32>
      %107 = arith.addf %103, %106 : vector<16x32xf32>
      %108 = math.tanh %107 : vector<16x32xf32>
      %c3_78 = arith.constant 3 : index
      %c0_79 = arith.constant 0 : index
      %c0_80 = arith.constant 0 : index
      %109 = vector.load %arg2[%c3_78, %c0_79, %c0_80] : memref<4x32x32xf32, #tpu.memory_space<vmem>>, vector<1x32x32xf32>
      %110 = vector.shape_cast %109 : vector<1x32x32xf32> to vector<32x32xf32>
      %cst_81 = arith.constant dense<0.000000e+00> : vector<16x32xf32>
      %111 = tpu.matmul %71, %110, %cst_81 {dimension_numbers = #tpu.dot_dimension_numbers<[1], [0], [0], [1], [0, 0, 1, 1], [], []>} : vector<16x32xf32>, vector<32x32xf32>, vector<16x32xf32> -> vector<16x32xf32>
      %c3_82 = arith.constant 3 : index
      %c0_83 = arith.constant 0 : index
      %c0_84 = arith.constant 0 : index
      %112 = vector.load %arg4[%c3_82, %c0_83, %c0_84] : memref<4x1x32xf32, #tpu.memory_space<vmem>>, vector<1x1x32xf32>
      %113 = vector.shape_cast %112 : vector<1x1x32xf32> to vector<1x32xf32>
      %114 = vector.broadcast %113 : vector<1x32xf32> to vector<16x32xf32>
      %115 = arith.addf %111, %114 : vector<16x32xf32>
      %116 = arith.negf %115 : vector<16x32xf32>
      %117 = math.exp %116 : vector<16x32xf32>
      %cst_85 = arith.constant 1.000000e+00 : f32
      %118 = vector.broadcast %cst_85 : f32 to vector<16x32xf32>
      %119 = arith.addf %118, %117 : vector<16x32xf32>
      %120 = arith.divf %118, %119 : vector<16x32xf32>
      %121 = arith.mulf %100, %69 : vector<16x32xf32>
      %122 = arith.mulf %88, %108 : vector<16x32xf32>
      %123 = arith.addf %121, %122 : vector<16x32xf32>
      %124 = math.tanh %123 : vector<16x32xf32>
      %125 = arith.mulf %120, %124 : vector<16x32xf32>
      %c0_86 = arith.constant 0 : index
      %c0_87 = arith.constant 0 : index
      %126 = vector.load %arg5[%c0_86, %c0_87] : memref<16x32xf32, #tpu.memory_space<vmem>>, vector<16x32xf32>
      tpu.vector_store %arg5[%c0_86, %c0_87], %125 {strides = array<i32>} : memref<16x32xf32, #tpu.memory_space<vmem>>, vector<16x32xf32>,
    } else {
    }
    return
  }
  func.func @transform_0(%arg0: i32) -> (i32, i32, i32) {
    %c0_i32 = arith.constant 0 : i32
    %c0_i32_0 = arith.constant 0 : i32
    %c0_i32_1 = arith.constant 0 : i32
    return %arg0, %c0_i32, %c0_i32_0 : i32, i32, i32
  }
  func.func @transform_1(%arg0: i32) -> (i32, i32, i32) {
    %c0_i32 = arith.constant 0 : i32
    %c0_i32_0 = arith.constant 0 : i32
    %c0_i32_1 = arith.constant 0 : i32
    %c0_i32_2 = arith.constant 0 : i32
    return %c0_i32, %c0_i32_0, %c0_i32_1 : i32, i32, i32
  }
  func.func @transform_2(%arg0: i32) -> (i32, i32, i32) {
    %c0_i32 = arith.constant 0 : i32
    %c0_i32_0 = arith.constant 0 : i32
    %c0_i32_1 = arith.constant 0 : i32
    %c0_i32_2 = arith.constant 0 : i32
    return %c0_i32, %c0_i32_0, %c0_i32_1 : i32, i32, i32
  }
  func.func @transform_3(%arg0: i32) -> (i32, i32, i32) {
    %c0_i32 = arith.constant 0 : i32
    %c0_i32_0 = arith.constant 0 : i32
    %c0_i32_1 = arith.constant 0 : i32
    %c0_i32_2 = arith.constant 0 : i32
    return %c0_i32, %c0_i32_0, %c0_i32_1 : i32, i32, i32
  }
  func.func @transform_4(%arg0: i32) -> (i32, i32) {
    %c0_i32 = arith.constant 0 : i32
    %c0_i32_0 = arith.constant 0 : i32
    %c0_i32_1 = arith.constant 0 : i32
    return %c0_i32, %c0_i32_0 : i32, i32
  }
}

module attributes {stable_mosaic.version = 11 : i64} {
  func.func @_egcn_seq_kernel(%arg0: i32, %arg1: memref<1x16x8xf32, #tpu.memory_space<vmem>>, %arg2: memref<1x16x16xf32, #tpu.memory_space<vmem>>, %arg3: memref<1x16x16xf32, #tpu.memory_space<vmem>>, %arg4: memref<8x32xf32, #tpu.memory_space<vmem>>, %arg5: memref<1x32xf32, #tpu.memory_space<vmem>>, %arg6: memref<2x32x32xf32, #tpu.memory_space<vmem>>, %arg7: memref<8x32x32xf32, #tpu.memory_space<vmem>>, %arg8: memref<8x1x32xf32, #tpu.memory_space<vmem>>, %arg9: memref<4x32x32xf32, #tpu.memory_space<vmem>>, %arg10: memref<4x1x32xf32, #tpu.memory_space<vmem>>, %arg11: memref<1x1x32xf32, #tpu.memory_space<vmem>>, %arg12: memref<1x1x32xf32, #tpu.memory_space<vmem>>, %arg13: memref<1x16x32xf32, #tpu.memory_space<vmem>>, %arg14: memref<2x32x32xf32, #tpu.memory_space<vmem>>, %arg15: memref<2x32x32xf32, #tpu.memory_space<vmem>>, %arg16: memref<8x32xf32, #tpu.memory_space<vmem>>) attributes {dimension_semantics = [#tpu.dimension_semantics<arbitrary>], iteration_bounds = array<i64: 4>, scalar_prefetch = 0 : i64, scratch_operands = 3 : i64, tpu.core_type = #tpu.core_type<tc>, window_params = [{transform_indices = @transform_0, window_bounds = array<i64: 1, 16, 8>}, {transform_indices = @transform_1, window_bounds = array<i64: 1, 16, 16>}, {transform_indices = @transform_2, window_bounds = array<i64: 1, 16, 16>}, {pipeline_mode = #tpu.pipeline_mode<synchronous>, transform_indices = @transform_3, window_bounds = array<i64: 8, 32>}, {pipeline_mode = #tpu.pipeline_mode<synchronous>, transform_indices = @transform_4, window_bounds = array<i64: 1, 32>}, {pipeline_mode = #tpu.pipeline_mode<synchronous>, transform_indices = @transform_5, window_bounds = array<i64: 2, 32, 32>}, {pipeline_mode = #tpu.pipeline_mode<synchronous>, transform_indices = @transform_6, window_bounds = array<i64: 8, 32, 32>}, {pipeline_mode = #tpu.pipeline_mode<synchronous>, transform_indices = @transform_7, window_bounds = array<i64: 8, 1, 32>}, {pipeline_mode = #tpu.pipeline_mode<synchronous>, transform_indices = @transform_8, window_bounds = array<i64: 4, 32, 32>}, {pipeline_mode = #tpu.pipeline_mode<synchronous>, transform_indices = @transform_9, window_bounds = array<i64: 4, 1, 32>}, {pipeline_mode = #tpu.pipeline_mode<synchronous>, transform_indices = @transform_10, window_bounds = array<i64: 1, 1, 32>}, {pipeline_mode = #tpu.pipeline_mode<synchronous>, transform_indices = @transform_11, window_bounds = array<i64: 1, 1, 32>}, {transform_indices = @transform_12, window_bounds = array<i64: 1, 16, 32>}]} {
    %c0_i32 = arith.constant 0 : i32
    %0 = arith.cmpi eq, %arg0, %c0_i32 : i32
    %1 = arith.extui %0 : i1 to i32
    %c0_i32_0 = arith.constant 0 : i32
    %2 = arith.cmpi ne, %1, %c0_i32_0 : i32
    scf.if %2 {
      %c0_150 = arith.constant 0 : index
      %c0_151 = arith.constant 0 : index
      %c0_152 = arith.constant 0 : index
      %227 = vector.load %arg6[%c0_150, %c0_151, %c0_152] : memref<2x32x32xf32, #tpu.memory_space<vmem>>, vector<2x32x32xf32>
      %c0_153 = arith.constant 0 : index
      %c0_154 = arith.constant 0 : index
      %c0_155 = arith.constant 0 : index
      %228 = vector.load %arg14[%c0_153, %c0_154, %c0_155] : memref<2x32x32xf32, #tpu.memory_space<vmem>>, vector<2x32x32xf32>
      tpu.vector_store %arg14[%c0_153, %c0_154, %c0_155], %227 {strides = array<i32>} : memref<2x32x32xf32, #tpu.memory_space<vmem>>, vector<2x32x32xf32>,
      %cst_156 = arith.constant 0.000000e+00 : f32
      %229 = vector.broadcast %cst_156 : f32 to vector<2x32x32xf32>
      %c0_157 = arith.constant 0 : index
      %c0_158 = arith.constant 0 : index
      %c0_159 = arith.constant 0 : index
      %230 = vector.load %arg15[%c0_157, %c0_158, %c0_159] : memref<2x32x32xf32, #tpu.memory_space<vmem>>, vector<2x32x32xf32>
      tpu.vector_store %arg15[%c0_157, %c0_158, %c0_159], %229 {strides = array<i32>} : memref<2x32x32xf32, #tpu.memory_space<vmem>>, vector<2x32x32xf32>,
      %cst_160 = arith.constant 0.000000e+00 : f32
      %231 = vector.broadcast %cst_160 : f32 to vector<8x32xf32>
      %c0_161 = arith.constant 0 : index
      %c0_162 = arith.constant 0 : index
      %232 = vector.load %arg16[%c0_161, %c0_162] : memref<8x32xf32, #tpu.memory_space<vmem>>, vector<8x32xf32>
      tpu.vector_store %arg16[%c0_161, %c0_162], %231 {strides = array<i32>} : memref<8x32xf32, #tpu.memory_space<vmem>>, vector<8x32xf32>,
    } else {
    }
    %c0 = arith.constant 0 : index
    %c0_1 = arith.constant 0 : index
    %3 = vector.load %arg4[%c0, %c0_1] : memref<8x32xf32, #tpu.memory_space<vmem>>, vector<8x32xf32>
    %c0_2 = arith.constant 0 : index
    %c0_3 = arith.constant 0 : index
    %c0_4 = arith.constant 0 : index
    %4 = vector.load %arg9[%c0_2, %c0_3, %c0_4] : memref<4x32x32xf32, #tpu.memory_space<vmem>>, vector<1x32x32xf32>
    %5 = vector.shape_cast %4 : vector<1x32x32xf32> to vector<32x32xf32>
    %cst = arith.constant dense<0.000000e+00> : vector<8x32xf32>
    %6 = tpu.matmul %3, %5, %cst {dimension_numbers = #tpu.dot_dimension_numbers<[1], [0], [0], [1], [0, 0, 1, 1], [], []>} : vector<8x32xf32>, vector<32x32xf32>, vector<8x32xf32> -> vector<8x32xf32>
    %c0_5 = arith.constant 0 : index
    %c0_6 = arith.constant 0 : index
    %c0_7 = arith.constant 0 : index
    %7 = vector.load %arg10[%c0_5, %c0_6, %c0_7] : memref<4x1x32xf32, #tpu.memory_space<vmem>>, vector<1x1x32xf32>
    %8 = vector.shape_cast %7 : vector<1x1x32xf32> to vector<1x32xf32>
    %9 = vector.broadcast %8 : vector<1x32xf32> to vector<8x32xf32>
    %10 = arith.addf %6, %9 : vector<8x32xf32>
    %11 = arith.negf %10 : vector<8x32xf32>
    %12 = math.exp %11 : vector<8x32xf32>
    %cst_8 = arith.constant 1.000000e+00 : f32
    %13 = vector.broadcast %cst_8 : f32 to vector<8x32xf32>
    %14 = arith.addf %13, %12 : vector<8x32xf32>
    %15 = arith.divf %13, %14 : vector<8x32xf32>
    %c1 = arith.constant 1 : index
    %c0_9 = arith.constant 0 : index
    %c0_10 = arith.constant 0 : index
    %16 = vector.load %arg9[%c1, %c0_9, %c0_10] : memref<4x32x32xf32, #tpu.memory_space<vmem>>, vector<1x32x32xf32>
    %17 = vector.shape_cast %16 : vector<1x32x32xf32> to vector<32x32xf32>
    %cst_11 = arith.constant dense<0.000000e+00> : vector<8x32xf32>
    %18 = tpu.matmul %3, %17, %cst_11 {dimension_numbers = #tpu.dot_dimension_numbers<[1], [0], [0], [1], [0, 0, 1, 1], [], []>} : vector<8x32xf32>, vector<32x32xf32>, vector<8x32xf32> -> vector<8x32xf32>
    %c1_12 = arith.constant 1 : index
    %c0_13 = arith.constant 0 : index
    %c0_14 = arith.constant 0 : index
    %19 = vector.load %arg10[%c1_12, %c0_13, %c0_14] : memref<4x1x32xf32, #tpu.memory_space<vmem>>, vector<1x1x32xf32>
    %20 = vector.shape_cast %19 : vector<1x1x32xf32> to vector<1x32xf32>
    %21 = vector.broadcast %20 : vector<1x32xf32> to vector<8x32xf32>
    %22 = arith.addf %18, %21 : vector<8x32xf32>
    %23 = arith.negf %22 : vector<8x32xf32>
    %24 = math.exp %23 : vector<8x32xf32>
    %cst_15 = arith.constant 1.000000e+00 : f32
    %25 = vector.broadcast %cst_15 : f32 to vector<8x32xf32>
    %26 = arith.addf %25, %24 : vector<8x32xf32>
    %27 = arith.divf %25, %26 : vector<8x32xf32>
    %c2 = arith.constant 2 : index
    %c0_16 = arith.constant 0 : index
    %c0_17 = arith.constant 0 : index
    %28 = vector.load %arg9[%c2, %c0_16, %c0_17] : memref<4x32x32xf32, #tpu.memory_space<vmem>>, vector<1x32x32xf32>
    %29 = vector.shape_cast %28 : vector<1x32x32xf32> to vector<32x32xf32>
    %cst_18 = arith.constant dense<0.000000e+00> : vector<8x32xf32>
    %30 = tpu.matmul %3, %29, %cst_18 {dimension_numbers = #tpu.dot_dimension_numbers<[1], [0], [0], [1], [0, 0, 1, 1], [], []>} : vector<8x32xf32>, vector<32x32xf32>, vector<8x32xf32> -> vector<8x32xf32>
    %c2_19 = arith.constant 2 : index
    %c0_20 = arith.constant 0 : index
    %c0_21 = arith.constant 0 : index
    %31 = vector.load %arg10[%c2_19, %c0_20, %c0_21] : memref<4x1x32xf32, #tpu.memory_space<vmem>>, vector<1x1x32xf32>
    %32 = vector.shape_cast %31 : vector<1x1x32xf32> to vector<1x32xf32>
    %33 = vector.broadcast %32 : vector<1x32xf32> to vector<8x32xf32>
    %34 = arith.addf %30, %33 : vector<8x32xf32>
    %35 = math.tanh %34 : vector<8x32xf32>
    %c0_22 = arith.constant 0 : index
    %c0_23 = arith.constant 0 : index
    %36 = vector.load %arg16[%c0_22, %c0_23] : memref<8x32xf32, #tpu.memory_space<vmem>>, vector<8x32xf32>
    %37 = arith.mulf %27, %36 : vector<8x32xf32>
    %38 = arith.mulf %15, %35 : vector<8x32xf32>
    %39 = arith.addf %37, %38 : vector<8x32xf32>
    %c0_24 = arith.constant 0 : index
    %c0_25 = arith.constant 0 : index
    %40 = vector.load %arg16[%c0_24, %c0_25] : memref<8x32xf32, #tpu.memory_space<vmem>>, vector<8x32xf32>
    tpu.vector_store %arg16[%c0_24, %c0_25], %39 {strides = array<i32>} : memref<8x32xf32, #tpu.memory_space<vmem>>, vector<8x32xf32>,
    %c0_26 = arith.constant 0 : index
    %c0_27 = arith.constant 0 : index
    %c0_28 = arith.constant 0 : index
    %41 = vector.load %arg2[%c0_26, %c0_27, %c0_28] : memref<1x16x16xf32, #tpu.memory_space<vmem>>, vector<1x16x16xf32>
    %42 = vector.shape_cast %41 : vector<1x16x16xf32> to vector<16x16xf32>
    %c0_29 = arith.constant 0 : index
    %c0_30 = arith.constant 0 : index
    %c0_31 = arith.constant 0 : index
    %43 = vector.load %arg1[%c0_29, %c0_30, %c0_31] : memref<1x16x8xf32, #tpu.memory_space<vmem>>, vector<1x16x8xf32>
    %44 = vector.shape_cast %43 : vector<1x16x8xf32> to vector<16x8xf32>
    %cst_32 = arith.constant dense<0.000000e+00> : vector<16x8xf32>
    %45 = tpu.matmul %42, %44, %cst_32 {dimension_numbers = #tpu.dot_dimension_numbers<[1], [0], [0], [1], [0, 0, 1, 1], [], []>} : vector<16x16xf32>, vector<16x8xf32>, vector<16x8xf32> -> vector<16x8xf32>
    %cst_33 = arith.constant dense<0.000000e+00> : vector<16x32xf32>
    %46 = tpu.matmul %45, %3, %cst_33 {dimension_numbers = #tpu.dot_dimension_numbers<[1], [0], [0], [1], [0, 0, 1, 1], [], []>} : vector<16x8xf32>, vector<8x32xf32>, vector<16x32xf32> -> vector<16x32xf32>
    %c0_34 = arith.constant 0 : index
    %c0_35 = arith.constant 0 : index
    %47 = vector.load %arg5[%c0_34, %c0_35] : memref<1x32xf32, #tpu.memory_space<vmem>>, vector<1x32xf32>
    %48 = vector.broadcast %47 : vector<1x32xf32> to vector<16x32xf32>
    %49 = arith.addf %46, %48 : vector<16x32xf32>
    %c0_36 = arith.constant 0 : index
    %c0_37 = arith.constant 0 : index
    %c0_38 = arith.constant 0 : index
    %50 = vector.load %arg14[%c0_36, %c0_37, %c0_38] : memref<2x32x32xf32, #tpu.memory_space<vmem>>, vector<1x32x32xf32>
    %51 = vector.shape_cast %50 : vector<1x32x32xf32> to vector<32x32xf32>
    %c0_39 = arith.constant 0 : index
    %c0_40 = arith.constant 0 : index
    %c0_41 = arith.constant 0 : index
    %52 = vector.load %arg15[%c0_39, %c0_40, %c0_41] : memref<2x32x32xf32, #tpu.memory_space<vmem>>, vector<1x32x32xf32>
    %53 = vector.shape_cast %52 : vector<1x32x32xf32> to vector<32x32xf32>
    %c0_42 = arith.constant 0 : index
    %c0_43 = arith.constant 0 : index
    %c0_44 = arith.constant 0 : index
    %54 = vector.load %arg7[%c0_42, %c0_43, %c0_44] : memref<8x32x32xf32, #tpu.memory_space<vmem>>, vector<1x32x32xf32>
    %55 = vector.shape_cast %54 : vector<1x32x32xf32> to vector<32x32xf32>
    %cst_45 = arith.constant dense<0.000000e+00> : vector<32x32xf32>
    %56 = tpu.matmul %51, %55, %cst_45 {dimension_numbers = #tpu.dot_dimension_numbers<[1], [0], [0], [1], [0, 0, 1, 1], [], []>} : vector<32x32xf32>, vector<32x32xf32>, vector<32x32xf32> -> vector<32x32xf32>
    %c0_46 = arith.constant 0 : index
    %c0_47 = arith.constant 0 : index
    %c0_48 = arith.constant 0 : index
    %57 = vector.load %arg8[%c0_46, %c0_47, %c0_48] : memref<8x1x32xf32, #tpu.memory_space<vmem>>, vector<1x1x32xf32>
    %58 = vector.shape_cast %57 : vector<1x1x32xf32> to vector<1x32xf32>
    %59 = vector.broadcast %58 : vector<1x32xf32> to vector<32x32xf32>
    %60 = arith.addf %56, %59 : vector<32x32xf32>
    %61 = arith.negf %60 : vector<32x32xf32>
    %62 = math.exp %61 : vector<32x32xf32>
    %cst_49 = arith.constant 1.000000e+00 : f32
    %63 = vector.broadcast %cst_49 : f32 to vector<32x32xf32>
    %64 = arith.addf %63, %62 : vector<32x32xf32>
    %65 = arith.divf %63, %64 : vector<32x32xf32>
    %c1_50 = arith.constant 1 : index
    %c0_51 = arith.constant 0 : index
    %c0_52 = arith.constant 0 : index
    %66 = vector.load %arg7[%c1_50, %c0_51, %c0_52] : memref<8x32x32xf32, #tpu.memory_space<vmem>>, vector<1x32x32xf32>
    %67 = vector.shape_cast %66 : vector<1x32x32xf32> to vector<32x32xf32>
    %cst_53 = arith.constant dense<0.000000e+00> : vector<32x32xf32>
    %68 = tpu.matmul %51, %67, %cst_53 {dimension_numbers = #tpu.dot_dimension_numbers<[1], [0], [0], [1], [0, 0, 1, 1], [], []>} : vector<32x32xf32>, vector<32x32xf32>, vector<32x32xf32> -> vector<32x32xf32>
    %c1_54 = arith.constant 1 : index
    %c0_55 = arith.constant 0 : index
    %c0_56 = arith.constant 0 : index
    %69 = vector.load %arg8[%c1_54, %c0_55, %c0_56] : memref<8x1x32xf32, #tpu.memory_space<vmem>>, vector<1x1x32xf32>
    %70 = vector.shape_cast %69 : vector<1x1x32xf32> to vector<1x32xf32>
    %71 = vector.broadcast %70 : vector<1x32xf32> to vector<32x32xf32>
    %72 = arith.addf %68, %71 : vector<32x32xf32>
    %73 = arith.negf %72 : vector<32x32xf32>
    %74 = math.exp %73 : vector<32x32xf32>
    %cst_57 = arith.constant 1.000000e+00 : f32
    %75 = vector.broadcast %cst_57 : f32 to vector<32x32xf32>
    %76 = arith.addf %75, %74 : vector<32x32xf32>
    %77 = arith.divf %75, %76 : vector<32x32xf32>
    %c2_58 = arith.constant 2 : index
    %c0_59 = arith.constant 0 : index
    %c0_60 = arith.constant 0 : index
    %78 = vector.load %arg7[%c2_58, %c0_59, %c0_60] : memref<8x32x32xf32, #tpu.memory_space<vmem>>, vector<1x32x32xf32>
    %79 = vector.shape_cast %78 : vector<1x32x32xf32> to vector<32x32xf32>
    %cst_61 = arith.constant dense<0.000000e+00> : vector<32x32xf32>
    %80 = tpu.matmul %51, %79, %cst_61 {dimension_numbers = #tpu.dot_dimension_numbers<[1], [0], [0], [1], [0, 0, 1, 1], [], []>} : vector<32x32xf32>, vector<32x32xf32>, vector<32x32xf32> -> vector<32x32xf32>
    %c2_62 = arith.constant 2 : index
    %c0_63 = arith.constant 0 : index
    %c0_64 = arith.constant 0 : index
    %81 = vector.load %arg8[%c2_62, %c0_63, %c0_64] : memref<8x1x32xf32, #tpu.memory_space<vmem>>, vector<1x1x32xf32>
    %82 = vector.shape_cast %81 : vector<1x1x32xf32> to vector<1x32xf32>
    %83 = vector.broadcast %82 : vector<1x32xf32> to vector<32x32xf32>
    %84 = arith.addf %80, %83 : vector<32x32xf32>
    %85 = math.tanh %84 : vector<32x32xf32>
    %c3 = arith.constant 3 : index
    %c0_65 = arith.constant 0 : index
    %c0_66 = arith.constant 0 : index
    %86 = vector.load %arg7[%c3, %c0_65, %c0_66] : memref<8x32x32xf32, #tpu.memory_space<vmem>>, vector<1x32x32xf32>
    %87 = vector.shape_cast %86 : vector<1x32x32xf32> to vector<32x32xf32>
    %cst_67 = arith.constant dense<0.000000e+00> : vector<32x32xf32>
    %88 = tpu.matmul %51, %87, %cst_67 {dimension_numbers = #tpu.dot_dimension_numbers<[1], [0], [0], [1], [0, 0, 1, 1], [], []>} : vector<32x32xf32>, vector<32x32xf32>, vector<32x32xf32> -> vector<32x32xf32>
    %c3_68 = arith.constant 3 : index
    %c0_69 = arith.constant 0 : index
    %c0_70 = arith.constant 0 : index
    %89 = vector.load %arg8[%c3_68, %c0_69, %c0_70] : memref<8x1x32xf32, #tpu.memory_space<vmem>>, vector<1x1x32xf32>
    %90 = vector.shape_cast %89 : vector<1x1x32xf32> to vector<1x32xf32>
    %91 = vector.broadcast %90 : vector<1x32xf32> to vector<32x32xf32>
    %92 = arith.addf %88, %91 : vector<32x32xf32>
    %93 = arith.negf %92 : vector<32x32xf32>
    %94 = math.exp %93 : vector<32x32xf32>
    %cst_71 = arith.constant 1.000000e+00 : f32
    %95 = vector.broadcast %cst_71 : f32 to vector<32x32xf32>
    %96 = arith.addf %95, %94 : vector<32x32xf32>
    %97 = arith.divf %95, %96 : vector<32x32xf32>
    %98 = arith.mulf %77, %53 : vector<32x32xf32>
    %99 = arith.mulf %65, %85 : vector<32x32xf32>
    %100 = arith.addf %98, %99 : vector<32x32xf32>
    %101 = math.tanh %100 : vector<32x32xf32>
    %102 = arith.mulf %97, %101 : vector<32x32xf32>
    %c0_72 = arith.constant 0 : index
    %c0_73 = arith.constant 0 : index
    %c0_74 = arith.constant 0 : index
    %103 = vector.load %arg15[%c0_72, %c0_73, %c0_74] : memref<2x32x32xf32, #tpu.memory_space<vmem>>, vector<1x32x32xf32>
    %104 = vector.shape_cast %103 : vector<1x32x32xf32> to vector<32x32xf32>
    %105 = vector.shape_cast %100 : vector<32x32xf32> to vector<1x32x32xf32>
    tpu.vector_store %arg15[%c0_72, %c0_73, %c0_74], %105 {strides = array<i32>} : memref<2x32x32xf32, #tpu.memory_space<vmem>>, vector<1x32x32xf32>,
    %c0_75 = arith.constant 0 : index
    %c0_76 = arith.constant 0 : index
    %c0_77 = arith.constant 0 : index
    %106 = vector.load %arg14[%c0_75, %c0_76, %c0_77] : memref<2x32x32xf32, #tpu.memory_space<vmem>>, vector<1x32x32xf32>
    %107 = vector.shape_cast %106 : vector<1x32x32xf32> to vector<32x32xf32>
    %108 = vector.shape_cast %102 : vector<32x32xf32> to vector<1x32x32xf32>
    tpu.vector_store %arg14[%c0_75, %c0_76, %c0_77], %108 {strides = array<i32>} : memref<2x32x32xf32, #tpu.memory_space<vmem>>, vector<1x32x32xf32>,
    %c0_78 = arith.constant 0 : index
    %c0_79 = arith.constant 0 : index
    %c0_80 = arith.constant 0 : index
    %109 = vector.load %arg3[%c0_78, %c0_79, %c0_80] : memref<1x16x16xf32, #tpu.memory_space<vmem>>, vector<1x16x16xf32>
    %110 = vector.shape_cast %109 : vector<1x16x16xf32> to vector<16x16xf32>
    %cst_81 = arith.constant dense<0.000000e+00> : vector<16x32xf32>
    %111 = tpu.matmul %110, %49, %cst_81 {dimension_numbers = #tpu.dot_dimension_numbers<[1], [0], [0], [1], [0, 0, 1, 1], [], []>} : vector<16x16xf32>, vector<16x32xf32>, vector<16x32xf32> -> vector<16x32xf32>
    %cst_82 = arith.constant 0.899999976 : f32
    %112 = vector.broadcast %cst_82 : f32 to vector<16x32xf32>
    %113 = arith.mulf %112, %111 : vector<16x32xf32>
    %cst_83 = arith.constant 1.000000e-01 : f32
    %114 = vector.broadcast %cst_83 : f32 to vector<16x32xf32>
    %115 = arith.mulf %114, %49 : vector<16x32xf32>
    %116 = arith.addf %113, %115 : vector<16x32xf32>
    %cst_84 = arith.constant 0.594534874 : f32
    %117 = vector.broadcast %cst_84 : f32 to vector<16x32xf32>
    %118 = arith.mulf %117, %116 : vector<16x32xf32>
    %cst_85 = arith.constant dense<0.000000e+00> : vector<16x32xf32>
    %119 = tpu.matmul %116, %102, %cst_85 {dimension_numbers = #tpu.dot_dimension_numbers<[1], [0], [0], [1], [0, 0, 1, 1], [], []>} : vector<16x32xf32>, vector<32x32xf32>, vector<16x32xf32> -> vector<16x32xf32>
    %cst_86 = arith.constant 0.405465096 : f32
    %120 = vector.broadcast %cst_86 : f32 to vector<16x32xf32>
    %121 = arith.mulf %120, %119 : vector<16x32xf32>
    %122 = arith.addf %118, %121 : vector<16x32xf32>
    %cst_87 = arith.constant dense<0.000000e+00> : vector<32xf32>
    %123 = vector.multi_reduction <add>, %122, %cst_87 [0] : vector<16x32xf32> to vector<32xf32>
    %124 = vector.shape_cast %123 : vector<32xf32> to vector<1x32xf32>
    %cst_88 = arith.constant 1.600000e+01 : f32
    %125 = vector.broadcast %cst_88 : f32 to vector<1x32xf32>
    %126 = arith.divf %124, %125 : vector<1x32xf32>
    %127 = vector.broadcast %126 : vector<1x32xf32> to vector<16x32xf32>
    %128 = arith.subf %122, %127 : vector<16x32xf32>
    %129 = arith.mulf %128, %128 : vector<16x32xf32>
    %cst_89 = arith.constant dense<0.000000e+00> : vector<32xf32>
    %130 = vector.multi_reduction <add>, %129, %cst_89 [0] : vector<16x32xf32> to vector<32xf32>
    %131 = vector.shape_cast %130 : vector<32xf32> to vector<1x32xf32>
    %cst_90 = arith.constant 1.600000e+01 : f32
    %132 = vector.broadcast %cst_90 : f32 to vector<1x32xf32>
    %133 = arith.divf %131, %132 : vector<1x32xf32>
    %134 = vector.broadcast %126 : vector<1x32xf32> to vector<16x32xf32>
    %135 = arith.subf %122, %134 : vector<16x32xf32>
    %cst_91 = arith.constant 9.99999974E-6 : f32
    %136 = vector.broadcast %cst_91 : f32 to vector<1x32xf32>
    %137 = arith.addf %133, %136 : vector<1x32xf32>
    %138 = math.rsqrt %137 : vector<1x32xf32>
    %139 = vector.broadcast %138 : vector<1x32xf32> to vector<16x32xf32>
    %140 = arith.mulf %135, %139 : vector<16x32xf32>
    %c0_92 = arith.constant 0 : index
    %c0_93 = arith.constant 0 : index
    %c0_94 = arith.constant 0 : index
    %141 = vector.load %arg11[%c0_92, %c0_93, %c0_94] : memref<1x1x32xf32, #tpu.memory_space<vmem>>, vector<1x1x32xf32>
    %142 = vector.shape_cast %141 : vector<1x1x32xf32> to vector<1x32xf32>
    %143 = vector.broadcast %142 : vector<1x32xf32> to vector<16x32xf32>
    %144 = arith.mulf %140, %143 : vector<16x32xf32>
    %c0_95 = arith.constant 0 : index
    %c0_96 = arith.constant 0 : index
    %c0_97 = arith.constant 0 : index
    %145 = vector.load %arg12[%c0_95, %c0_96, %c0_97] : memref<1x1x32xf32, #tpu.memory_space<vmem>>, vector<1x1x32xf32>
    %146 = vector.shape_cast %145 : vector<1x1x32xf32> to vector<1x32xf32>
    %147 = vector.broadcast %146 : vector<1x32xf32> to vector<16x32xf32>
    %148 = arith.addf %144, %147 : vector<16x32xf32>
    %cst_98 = arith.constant 0.000000e+00 : f32
    %149 = vector.broadcast %cst_98 : f32 to vector<16x32xf32>
    %150 = arith.maximumf %148, %149 : vector<16x32xf32>
    %c1_99 = arith.constant 1 : index
    %c0_100 = arith.constant 0 : index
    %c0_101 = arith.constant 0 : index
    %151 = vector.load %arg14[%c1_99, %c0_100, %c0_101] : memref<2x32x32xf32, #tpu.memory_space<vmem>>, vector<1x32x32xf32>
    %152 = vector.shape_cast %151 : vector<1x32x32xf32> to vector<32x32xf32>
    %c1_102 = arith.constant 1 : index
    %c0_103 = arith.constant 0 : index
    %c0_104 = arith.constant 0 : index
    %153 = vector.load %arg15[%c1_102, %c0_103, %c0_104] : memref<2x32x32xf32, #tpu.memory_space<vmem>>, vector<1x32x32xf32>
    %154 = vector.shape_cast %153 : vector<1x32x32xf32> to vector<32x32xf32>
    %c4 = arith.constant 4 : index
    %c0_105 = arith.constant 0 : index
    %c0_106 = arith.constant 0 : index
    %155 = vector.load %arg7[%c4, %c0_105, %c0_106] : memref<8x32x32xf32, #tpu.memory_space<vmem>>, vector<1x32x32xf32>
    %156 = vector.shape_cast %155 : vector<1x32x32xf32> to vector<32x32xf32>
    %cst_107 = arith.constant dense<0.000000e+00> : vector<32x32xf32>
    %157 = tpu.matmul %152, %156, %cst_107 {dimension_numbers = #tpu.dot_dimension_numbers<[1], [0], [0], [1], [0, 0, 1, 1], [], []>} : vector<32x32xf32>, vector<32x32xf32>, vector<32x32xf32> -> vector<32x32xf32>
    %c4_108 = arith.constant 4 : index
    %c0_109 = arith.constant 0 : index
    %c0_110 = arith.constant 0 : index
    %158 = vector.load %arg8[%c4_108, %c0_109, %c0_110] : memref<8x1x32xf32, #tpu.memory_space<vmem>>, vector<1x1x32xf32>
    %159 = vector.shape_cast %158 : vector<1x1x32xf32> to vector<1x32xf32>
    %160 = vector.broadcast %159 : vector<1x32xf32> to vector<32x32xf32>
    %161 = arith.addf %157, %160 : vector<32x32xf32>
    %162 = arith.negf %161 : vector<32x32xf32>
    %163 = math.exp %162 : vector<32x32xf32>
    %cst_111 = arith.constant 1.000000e+00 : f32
    %164 = vector.broadcast %cst_111 : f32 to vector<32x32xf32>
    %165 = arith.addf %164, %163 : vector<32x32xf32>
    %166 = arith.divf %164, %165 : vector<32x32xf32>
    %c5 = arith.constant 5 : index
    %c0_112 = arith.constant 0 : index
    %c0_113 = arith.constant 0 : index
    %167 = vector.load %arg7[%c5, %c0_112, %c0_113] : memref<8x32x32xf32, #tpu.memory_space<vmem>>, vector<1x32x32xf32>
    %168 = vector.shape_cast %167 : vector<1x32x32xf32> to vector<32x32xf32>
    %cst_114 = arith.constant dense<0.000000e+00> : vector<32x32xf32>
    %169 = tpu.matmul %152, %168, %cst_114 {dimension_numbers = #tpu.dot_dimension_numbers<[1], [0], [0], [1], [0, 0, 1, 1], [], []>} : vector<32x32xf32>, vector<32x32xf32>, vector<32x32xf32> -> vector<32x32xf32>
    %c5_115 = arith.constant 5 : index
    %c0_116 = arith.constant 0 : index
    %c0_117 = arith.constant 0 : index
    %170 = vector.load %arg8[%c5_115, %c0_116, %c0_117] : memref<8x1x32xf32, #tpu.memory_space<vmem>>, vector<1x1x32xf32>
    %171 = vector.shape_cast %170 : vector<1x1x32xf32> to vector<1x32xf32>
    %172 = vector.broadcast %171 : vector<1x32xf32> to vector<32x32xf32>
    %173 = arith.addf %169, %172 : vector<32x32xf32>
    %174 = arith.negf %173 : vector<32x32xf32>
    %175 = math.exp %174 : vector<32x32xf32>
    %cst_118 = arith.constant 1.000000e+00 : f32
    %176 = vector.broadcast %cst_118 : f32 to vector<32x32xf32>
    %177 = arith.addf %176, %175 : vector<32x32xf32>
    %178 = arith.divf %176, %177 : vector<32x32xf32>
    %c6 = arith.constant 6 : index
    %c0_119 = arith.constant 0 : index
    %c0_120 = arith.constant 0 : index
    %179 = vector.load %arg7[%c6, %c0_119, %c0_120] : memref<8x32x32xf32, #tpu.memory_space<vmem>>, vector<1x32x32xf32>
    %180 = vector.shape_cast %179 : vector<1x32x32xf32> to vector<32x32xf32>
    %cst_121 = arith.constant dense<0.000000e+00> : vector<32x32xf32>
    %181 = tpu.matmul %152, %180, %cst_121 {dimension_numbers = #tpu.dot_dimension_numbers<[1], [0], [0], [1], [0, 0, 1, 1], [], []>} : vector<32x32xf32>, vector<32x32xf32>, vector<32x32xf32> -> vector<32x32xf32>
    %c6_122 = arith.constant 6 : index
    %c0_123 = arith.constant 0 : index
    %c0_124 = arith.constant 0 : index
    %182 = vector.load %arg8[%c6_122, %c0_123, %c0_124] : memref<8x1x32xf32, #tpu.memory_space<vmem>>, vector<1x1x32xf32>
    %183 = vector.shape_cast %182 : vector<1x1x32xf32> to vector<1x32xf32>
    %184 = vector.broadcast %183 : vector<1x32xf32> to vector<32x32xf32>
    %185 = arith.addf %181, %184 : vector<32x32xf32>
    %186 = math.tanh %185 : vector<32x32xf32>
    %c7 = arith.constant 7 : index
    %c0_125 = arith.constant 0 : index
    %c0_126 = arith.constant 0 : index
    %187 = vector.load %arg7[%c7, %c0_125, %c0_126] : memref<8x32x32xf32, #tpu.memory_space<vmem>>, vector<1x32x32xf32>
    %188 = vector.shape_cast %187 : vector<1x32x32xf32> to vector<32x32xf32>
    %cst_127 = arith.constant dense<0.000000e+00> : vector<32x32xf32>
    %189 = tpu.matmul %152, %188, %cst_127 {dimension_numbers = #tpu.dot_dimension_numbers<[1], [0], [0], [1], [0, 0, 1, 1], [], []>} : vector<32x32xf32>, vector<32x32xf32>, vector<32x32xf32> -> vector<32x32xf32>
    %c7_128 = arith.constant 7 : index
    %c0_129 = arith.constant 0 : index
    %c0_130 = arith.constant 0 : index
    %190 = vector.load %arg8[%c7_128, %c0_129, %c0_130] : memref<8x1x32xf32, #tpu.memory_space<vmem>>, vector<1x1x32xf32>
    %191 = vector.shape_cast %190 : vector<1x1x32xf32> to vector<1x32xf32>
    %192 = vector.broadcast %191 : vector<1x32xf32> to vector<32x32xf32>
    %193 = arith.addf %189, %192 : vector<32x32xf32>
    %194 = arith.negf %193 : vector<32x32xf32>
    %195 = math.exp %194 : vector<32x32xf32>
    %cst_131 = arith.constant 1.000000e+00 : f32
    %196 = vector.broadcast %cst_131 : f32 to vector<32x32xf32>
    %197 = arith.addf %196, %195 : vector<32x32xf32>
    %198 = arith.divf %196, %197 : vector<32x32xf32>
    %199 = arith.mulf %178, %154 : vector<32x32xf32>
    %200 = arith.mulf %166, %186 : vector<32x32xf32>
    %201 = arith.addf %199, %200 : vector<32x32xf32>
    %202 = math.tanh %201 : vector<32x32xf32>
    %203 = arith.mulf %198, %202 : vector<32x32xf32>
    %c1_132 = arith.constant 1 : index
    %c0_133 = arith.constant 0 : index
    %c0_134 = arith.constant 0 : index
    %204 = vector.load %arg15[%c1_132, %c0_133, %c0_134] : memref<2x32x32xf32, #tpu.memory_space<vmem>>, vector<1x32x32xf32>
    %205 = vector.shape_cast %204 : vector<1x32x32xf32> to vector<32x32xf32>
    %206 = vector.shape_cast %201 : vector<32x32xf32> to vector<1x32x32xf32>
    tpu.vector_store %arg15[%c1_132, %c0_133, %c0_134], %206 {strides = array<i32>} : memref<2x32x32xf32, #tpu.memory_space<vmem>>, vector<1x32x32xf32>,
    %c1_135 = arith.constant 1 : index
    %c0_136 = arith.constant 0 : index
    %c0_137 = arith.constant 0 : index
    %207 = vector.load %arg14[%c1_135, %c0_136, %c0_137] : memref<2x32x32xf32, #tpu.memory_space<vmem>>, vector<1x32x32xf32>
    %208 = vector.shape_cast %207 : vector<1x32x32xf32> to vector<32x32xf32>
    %209 = vector.shape_cast %203 : vector<32x32xf32> to vector<1x32x32xf32>
    tpu.vector_store %arg14[%c1_135, %c0_136, %c0_137], %209 {strides = array<i32>} : memref<2x32x32xf32, #tpu.memory_space<vmem>>, vector<1x32x32xf32>,
    %c0_138 = arith.constant 0 : index
    %c0_139 = arith.constant 0 : index
    %c0_140 = arith.constant 0 : index
    %210 = vector.load %arg3[%c0_138, %c0_139, %c0_140] : memref<1x16x16xf32, #tpu.memory_space<vmem>>, vector<1x16x16xf32>
    %211 = vector.shape_cast %210 : vector<1x16x16xf32> to vector<16x16xf32>
    %cst_141 = arith.constant dense<0.000000e+00> : vector<16x32xf32>
    %212 = tpu.matmul %211, %150, %cst_141 {dimension_numbers = #tpu.dot_dimension_numbers<[1], [0], [0], [1], [0, 0, 1, 1], [], []>} : vector<16x16xf32>, vector<16x32xf32>, vector<16x32xf32> -> vector<16x32xf32>
    %cst_142 = arith.constant 0.899999976 : f32
    %213 = vector.broadcast %cst_142 : f32 to vector<16x32xf32>
    %214 = arith.mulf %213, %212 : vector<16x32xf32>
    %cst_143 = arith.constant 1.000000e-01 : f32
    %215 = vector.broadcast %cst_143 : f32 to vector<16x32xf32>
    %216 = arith.mulf %215, %49 : vector<16x32xf32>
    %217 = arith.addf %214, %216 : vector<16x32xf32>
    %cst_144 = arith.constant 0.776856422 : f32
    %218 = vector.broadcast %cst_144 : f32 to vector<16x32xf32>
    %219 = arith.mulf %218, %217 : vector<16x32xf32>
    %cst_145 = arith.constant dense<0.000000e+00> : vector<16x32xf32>
    %220 = tpu.matmul %217, %203, %cst_145 {dimension_numbers = #tpu.dot_dimension_numbers<[1], [0], [0], [1], [0, 0, 1, 1], [], []>} : vector<16x32xf32>, vector<32x32xf32>, vector<16x32xf32> -> vector<16x32xf32>
    %cst_146 = arith.constant 0.223143548 : f32
    %221 = vector.broadcast %cst_146 : f32 to vector<16x32xf32>
    %222 = arith.mulf %221, %220 : vector<16x32xf32>
    %223 = arith.addf %219, %222 : vector<16x32xf32>
    %c0_147 = arith.constant 0 : index
    %c0_148 = arith.constant 0 : index
    %c0_149 = arith.constant 0 : index
    %224 = vector.load %arg13[%c0_147, %c0_148, %c0_149] : memref<1x16x32xf32, #tpu.memory_space<vmem>>, vector<1x16x32xf32>
    %225 = vector.shape_cast %224 : vector<1x16x32xf32> to vector<16x32xf32>
    %226 = vector.shape_cast %223 : vector<16x32xf32> to vector<1x16x32xf32>
    tpu.vector_store %arg13[%c0_147, %c0_148, %c0_149], %226 {strides = array<i32>} : memref<1x16x32xf32, #tpu.memory_space<vmem>>, vector<1x16x32xf32>,
    return
  }
  func.func @transform_0(%arg0: i32) -> (i32, i32, i32) {
    %c0_i32 = arith.constant 0 : i32
    %c0_i32_0 = arith.constant 0 : i32
    %c0_i32_1 = arith.constant 0 : i32
    return %arg0, %c0_i32, %c0_i32_0 : i32, i32, i32
  }
  func.func @transform_1(%arg0: i32) -> (i32, i32, i32) {
    %c0_i32 = arith.constant 0 : i32
    %c0_i32_0 = arith.constant 0 : i32
    %c0_i32_1 = arith.constant 0 : i32
    return %arg0, %c0_i32, %c0_i32_0 : i32, i32, i32
  }
  func.func @transform_2(%arg0: i32) -> (i32, i32, i32) {
    %c0_i32 = arith.constant 0 : i32
    %c0_i32_0 = arith.constant 0 : i32
    %c0_i32_1 = arith.constant 0 : i32
    return %arg0, %c0_i32, %c0_i32_0 : i32, i32, i32
  }
  func.func @transform_3(%arg0: i32) -> (i32, i32) {
    %c0_i32 = arith.constant 0 : i32
    %c0_i32_0 = arith.constant 0 : i32
    %c0_i32_1 = arith.constant 0 : i32
    return %c0_i32, %c0_i32_0 : i32, i32
  }
  func.func @transform_4(%arg0: i32) -> (i32, i32) {
    %c0_i32 = arith.constant 0 : i32
    %c0_i32_0 = arith.constant 0 : i32
    %c0_i32_1 = arith.constant 0 : i32
    return %c0_i32, %c0_i32_0 : i32, i32
  }
  func.func @transform_5(%arg0: i32) -> (i32, i32, i32) {
    %c0_i32 = arith.constant 0 : i32
    %c0_i32_0 = arith.constant 0 : i32
    %c0_i32_1 = arith.constant 0 : i32
    %c0_i32_2 = arith.constant 0 : i32
    return %c0_i32, %c0_i32_0, %c0_i32_1 : i32, i32, i32
  }
  func.func @transform_6(%arg0: i32) -> (i32, i32, i32) {
    %c0_i32 = arith.constant 0 : i32
    %c0_i32_0 = arith.constant 0 : i32
    %c0_i32_1 = arith.constant 0 : i32
    %c0_i32_2 = arith.constant 0 : i32
    return %c0_i32, %c0_i32_0, %c0_i32_1 : i32, i32, i32
  }
  func.func @transform_7(%arg0: i32) -> (i32, i32, i32) {
    %c0_i32 = arith.constant 0 : i32
    %c0_i32_0 = arith.constant 0 : i32
    %c0_i32_1 = arith.constant 0 : i32
    %c0_i32_2 = arith.constant 0 : i32
    return %c0_i32, %c0_i32_0, %c0_i32_1 : i32, i32, i32
  }
  func.func @transform_8(%arg0: i32) -> (i32, i32, i32) {
    %c0_i32 = arith.constant 0 : i32
    %c0_i32_0 = arith.constant 0 : i32
    %c0_i32_1 = arith.constant 0 : i32
    %c0_i32_2 = arith.constant 0 : i32
    return %c0_i32, %c0_i32_0, %c0_i32_1 : i32, i32, i32
  }
  func.func @transform_9(%arg0: i32) -> (i32, i32, i32) {
    %c0_i32 = arith.constant 0 : i32
    %c0_i32_0 = arith.constant 0 : i32
    %c0_i32_1 = arith.constant 0 : i32
    %c0_i32_2 = arith.constant 0 : i32
    return %c0_i32, %c0_i32_0, %c0_i32_1 : i32, i32, i32
  }
  func.func @transform_10(%arg0: i32) -> (i32, i32, i32) {
    %c0_i32 = arith.constant 0 : i32
    %c0_i32_0 = arith.constant 0 : i32
    %c0_i32_1 = arith.constant 0 : i32
    %c0_i32_2 = arith.constant 0 : i32
    return %c0_i32, %c0_i32_0, %c0_i32_1 : i32, i32, i32
  }
  func.func @transform_11(%arg0: i32) -> (i32, i32, i32) {
    %c0_i32 = arith.constant 0 : i32
    %c0_i32_0 = arith.constant 0 : i32
    %c0_i32_1 = arith.constant 0 : i32
    %c0_i32_2 = arith.constant 0 : i32
    return %c0_i32, %c0_i32_0, %c0_i32_1 : i32, i32, i32
  }
  func.func @transform_12(%arg0: i32) -> (i32, i32, i32) {
    %c0_i32 = arith.constant 0 : i32
    %c0_i32_0 = arith.constant 0 : i32
    %c0_i32_1 = arith.constant 0 : i32
    return %arg0, %c0_i32, %c0_i32_0 : i32, i32, i32
  }
}

</mosaic_0001>

<llo_original>
// kernel: fwd.4
$region0: #{fwd.4}
  #allocation0 [shape = 'u32[]', space=smem, size = 0x4, offset = 0x4, fixed_abs, tag = 'smem constant byte address 0x4 - core index']
  #allocation1 [shape = 'u32[144,128]{1,0:T(1,128)}', space=vmem, size = 0x12000, scoped, tag = 'internal scratch']
  #allocation2 [shape = 'f32[16,32]{1,0:T(8,128)}', space=vmem, size = 0x2000, scoped, tag = 'scratch operand']
  #allocation3 [shape = 'f32[16,32]{1,0:T(8,128)}', space=vmem, size = 0x2000, scoped, tag = 'scratch operand']
  %s0 = inlined_call_operand.hbm [shape: f32[4,16,32], index: 0, kind: input, shape index: {}, may-alias: {0,5}]
  %s1 = inlined_call_operand.vmem [shape: f32[3,16,32], index: 1, kind: input, shape index: {}]
  %s2 = inlined_call_operand.vmem [shape: f32[4,32,32], index: 2, kind: input, shape index: {}]
  %s3 = inlined_call_operand.vmem [shape: f32[4,32,32], index: 3, kind: input, shape index: {}]
  %s4 = inlined_call_operand.vmem [shape: f32[4,1,32], index: 4, kind: input, shape index: {}]
  %s5 = inlined_call_operand.hbm [shape: f32[4,16,32], index: 5, kind: output, shape index: {}, may-alias: {0,5}]
  %s6 = scalar_lea.hbm %s5, 768
  %s7 = sld [smem:[#allocation0]]
  $region57: #{fwd.4} parent=0
    _
  %s9 = ssub.s32 1, %s7
  %s10 = scalar_select 0, %s9, %s7
  $region1: #{fwd.4} parent=0
    #allocation4 [shape = 'u8[8192]{0}', space=vmem, size = 0x2000, scoped, tag = 'output window, operand 0, single buffered']
    #allocation5 [shape = 's32[2]{0}', space=sflag, size = 0x8, scoped, tag = 'scoped memory for fwd.4']
    %11 = vsyncpa [#allocation5], 0
    loop: start=0, step=1, limit=5
    $region2: #{fwd.4} parent=1 // loop_pre_header
      _
    $region3: #{fwd.4} parent=1 // loop_header
      %s13 = sphi 0, %s17
      %p14 = scmp.ge.s32.totalorder %s13, 5
      %s23 = sphi 0, %s25
      %s26 = sphi 0, %s23
      %s27 = sphi 0, %s26
      %s43 = sphi 0, %s27
      %s47 = sphi 0, %s47
      %s49 = sphi 0, %s47
      %s50 = sphi 0, %s49
      %s64 = sphi 0, %s50
      %s68 = sphi 0, %s68
      %s70 = sphi 0, %s68
      %s71 = sphi 0, %s70
      %s85 = sphi 0, %s71
      %s89 = sphi 0, %s89
      %s91 = sphi 0, %s89
      %s92 = sphi 0, %s91
      %s106 = sphi 0, %s92
      %s110 = sphi 0, %s110
      %s112 = sphi 0, %s110
      %s113 = sphi 0, %s112
      %s127 = sphi 0, %s113
    $region4: #{fwd.4} parent=1 // loop_header_branch
      %16 = sbr.rel (%p14) target = $region8
    $region5: #{fwd.4} parent=1 // loop_body
      %s18 = ssub.s32 %s13, 1
      %s19 = ssub.s32 %s13, 2
      %s20 = sadd.s32 %s13, 1
      %s21 = ssub.s32 %s13, %s20
      %p22 = scmp.eq.s32.totalorder %s21, 0
      %s24 = sadd.s32 %s23, 1
      %s25 = scalar_select %p22, %s23, %s24
      %p28 = pneg %p22
      %p29 = scmp.eq.s32.totalorder %s13, 2
      %p30 = por %p28, %p29
      %p31 = scmp.ne.s32.totalorder %s23, %s26
      %p32 = scmp.eq.s32.totalorder %s13, 0
      %p33 = por %p31, %p32
      %p34 = scmp.ne.s32.totalorder %s23, %s26
      %p35 = scmp.eq.s32.totalorder %s18, 2
      %p36 = por %p34, %p35
      %p37 = scmp.ne.s32.totalorder %s26, %s27
      %p38 = scmp.eq.s32.totalorder %s18, 0
      %p39 = por %p37, %p38
      %p40 = scmp.ne.s32.totalorder %s26, %s27
      %p41 = scmp.eq.s32.totalorder %s19, 2
      %p42 = por %p40, %p41
      %p44 = scmp.ne.s32.totalorder %s27, %s43
      %p45 = scmp.eq.s32.totalorder %s19, 0
      %p46 = por %p44, %p45
      %s48 = sadd.s32 %s47, 1
      %p51 = scmp.eq.s32.totalorder %s13, 2
      %p52 = scmp.ne.s32.totalorder %s47, %s49
      %p53 = scmp.eq.s32.totalorder %s13, 0
      %p54 = por %p52, %p53
      %p55 = scmp.ne.s32.totalorder %s47, %s49
      %p56 = scmp.eq.s32.totalorder %s18, 2
      %p57 = por %p55, %p56
      %p58 = scmp.ne.s32.totalorder %s49, %s50
      %p59 = scmp.eq.s32.totalorder %s18, 0
      %p60 = por %p58, %p59
      %p61 = scmp.ne.s32.totalorder %s49, %s50
      %p62 = scmp.eq.s32.totalorder %s19, 2
      %p63 = por %p61, %p62
      %p65 = scmp.ne.s32.totalorder %s50, %s64
      %p66 = scmp.eq.s32.totalorder %s19, 0
      %p67 = por %p65, %p66
      %s69 = sadd.s32 %s68, 1
      %p72 = scmp.eq.s32.totalorder %s13, 2
      %p73 = scmp.ne.s32.totalorder %s68, %s70
      %p74 = scmp.eq.s32.totalorder %s13, 0
      %p75 = por %p73, %p74
      %p76 = scmp.ne.s32.totalorder %s68, %s70
      %p77 = scmp.eq.s32.totalorder %s18, 2
      %p78 = por %p76, %p77
      %p79 = scmp.ne.s32.totalorder %s70, %s71
      %p80 = scmp.eq.s32.totalorder %s18, 0
      %p81 = por %p79, %p80
      %p82 = scmp.ne.s32.totalorder %s70, %s71
      %p83 = scmp.eq.s32.totalorder %s19, 2
      %p84 = por %p82, %p83
      %p86 = scmp.ne.s32.totalorder %s71, %s85
      %p87 = scmp.eq.s32.totalorder %s19, 0
      %p88 = por %p86, %p87
      %s90 = sadd.s32 %s89, 1
      %p93 = scmp.eq.s32.totalorder %s13, 2
      %p94 = scmp.ne.s32.totalorder %s89, %s91
      %p95 = scmp.eq.s32.totalorder %s13, 0
      %p96 = por %p94, %p95
      %p97 = scmp.ne.s32.totalorder %s89, %s91
      %p98 = scmp.eq.s32.totalorder %s18, 2
      %p99 = por %p97, %p98
      %p100 = scmp.ne.s32.totalorder %s91, %s92
      %p101 = scmp.eq.s32.totalorder %s18, 0
      %p102 = por %p100, %p101
      %p103 = scmp.ne.s32.totalorder %s91, %s92
      %p104 = scmp.eq.s32.totalorder %s19, 2
      %p105 = por %p103, %p104
      %p107 = scmp.ne.s32.totalorder %s92, %s106
      %p108 = scmp.eq.s32.totalorder %s19, 0
      %p109 = por %p107, %p108
      %s111 = sadd.s32 %s110, 1
      %p114 = scmp.eq.s32.totalorder %s13, 2
      %p115 = scmp.ne.s32.totalorder %s110, %s112
      %p116 = scmp.eq.s32.totalorder %s13, 0
      %p117 = por %p115, %p116
      %p118 = scmp.ne.s32.totalorder %s110, %s112
      %p119 = scmp.eq.s32.totalorder %s18, 2
      %p120 = por %p118, %p119
      %p121 = scmp.ne.s32.totalorder %s112, %s113
      %p122 = scmp.eq.s32.totalorder %s18, 0
      %p123 = por %p121, %p122
      %p124 = scmp.ne.s32.totalorder %s112, %s113
      %p125 = scmp.eq.s32.totalorder %s19, 2
      %p126 = por %p124, %p125
      %p128 = scmp.ne.s32.totalorder %s113, %s127
      %p129 = scmp.eq.s32.totalorder %s19, 0
      %p130 = por %p128, %p129
      %p131 = scmp.le.s32.totalorder 1, %s13
      %p132 = scmp.lt.s32.totalorder %s13, 4
      %p133 = pnand %p131, %p132
      %p134 = pneg %p133
      // Predicated region
      $region9: #{fwd.4} parent=5 // pred_check
        _
      $region10: #{fwd.4} parent=5 // pred_check_branch
        %136 = sbr.rel (%p133) target = $region12
      $region11: #{fwd.4} parent=5 // pred_region
        %s137 = ssub.s32 %s13, 1
        // Predicated region
        $region13: #{fwd.4} parent=11 // pred_check
          %p138 = pneg %p60
        $region14: #{fwd.4} parent=11 // pred_check_branch
          %140 = sbr.rel (%p138) target = $region16
        $region15: #{fwd.4} parent=11 // pred_region
          _
        $region16: #{fwd.4} parent=11 // pred_fallthru
          _
        // Predicated region
        $region17: #{fwd.4} parent=11 // pred_check
          %p141 = pneg %p81
        $region18: #{fwd.4} parent=11 // pred_check_branch
          %143 = sbr.rel (%p141) target = $region20
        $region19: #{fwd.4} parent=11 // pred_region
          _
        $region20: #{fwd.4} parent=11 // pred_fallthru
          _
        // Predicated region
        $region21: #{fwd.4} parent=11 // pred_check
          %p144 = pneg %p102
        $region22: #{fwd.4} parent=11 // pred_check_branch
          %146 = sbr.rel (%p144) target = $region24
        $region23: #{fwd.4} parent=11 // pred_region
          _
        $region24: #{fwd.4} parent=11 // pred_fallthru
          _
      $region12: #{fwd.4} parent=5 // pred_fallthru
        _
      %p147 = scmp.lt.s32.totalorder %s13, 3
      // Predicated region
      $region25: #{fwd.4} parent=5 // pred_check
        %p148 = pneg %p147
      $region26: #{fwd.4} parent=5 // pred_check_branch
        %150 = sbr.rel (%p148) target = $region28
      $region27: #{fwd.4} parent=5 // pred_region
        // Predicated region
        $region29: #{fwd.4} parent=27 // pred_check
          %p151 = pneg %p33
        $region30: #{fwd.4} parent=27 // pred_check_branch
          %153 = sbr.rel (%p151) target = $region32
        $region31: #{fwd.4} parent=27 // pred_region
          %p154 = scmp.lt.s32.totalorder %s13, 2
          %s155 = scalar_select %p154, %s13, 2
          %s156 = smul.addr %s155, 2
          %s157 = smul.addr %s156, 8
          %s158 = scalar_lea.vmem %s1, %s157
        $region32: #{fwd.4} parent=27 // pred_fallthru
          _
      $region28: #{fwd.4} parent=5 // pred_fallthru
        _
      %p159 = scmp.le.s32.totalorder 1, %s13
      %p160 = scmp.lt.s32.totalorder %s13, 4
      %p161 = pnand %p159, %p160
      %p162 = pneg %p161
      // Predicated region
      $region33: #{fwd.4} parent=5 // pred_check
        _
      $region34: #{fwd.4} parent=5 // pred_check_branch
        %164 = sbr.rel (%p161) target = $region36
      $region35: #{fwd.4} parent=5 // pred_region
        %s165 = ssub.s32 %s13, 1
        %p166 = scmp.lt.s32.totalorder %s18, 2
        %s167 = scalar_select %p166, %s18, 2
        %s168 = smul.addr %s167, 2
        %s169 = smul.addr %s168, 8
        %s170 = scalar_lea.vmem %s1, %s169
        %p171 = pneg %p39
        %p172 = pneg %p36
        %p173 = pneg %p60
        %p174 = pneg %p57
        %p175 = pneg %p81
        %p176 = pneg %p78
        %p177 = pneg %p102
        %p178 = pneg %p99
        %p179 = pneg %p123
        %p180 = pneg %p120
        %p181 = scmp.lt.s32.totalorder %s18, 2
        %s182 = scalar_select %p181, %s18, 2
        %s183 = smul.addr %s182, 2
        %s184 = smul.addr %s183, 8
        %s185 = scalar_lea.vmem %s1, %s184
        %p186 = scmp.eq.s32.totalorder %s18, 0
        // Predicated region
        $region37: #{fwd.4} parent=35 // pred_check
          %p187 = pneg %p186
        $region38: #{fwd.4} parent=35 // pred_check_branch
          %189 = sbr.rel (%p187) target = $region40
        $region39: #{fwd.4} parent=35 // pred_region
          %vm190 = vcmask 261120
          %191 = vst.msk [vmem:[#allocation2] sm:$0xff] %vm190, 0.0
          %192 = vst.msk [vmem:[#allocation2 + $0x8] sm:$0xff] %vm190, 0.0
          %193 = vst.msk [vmem:[#allocation3] sm:$0xff] %vm190, 0.0
          %194 = vst.msk [vmem:[#allocation3 + $0x8] sm:$0xff] %vm190, 0.0
        $region40: #{fwd.4} parent=35 // pred_fallthru
          _
        %v195 = vld [vmem:[%s185] sm:$0xff]
        %v196 = vld [vmem:[%s185 + $0x8] sm:$0xff]
        %v197 = vld [vmem:[#allocation2] sm:$0xff]
        %v198 = vld [vmem:[#allocation2 + $0x8] sm:$0xff]
        %v199 = vld [vmem:[#allocation3] sm:$0xff]
        %v200 = vld [vmem:[#allocation3 + $0x8] sm:$0xff]
        %v201 = vld [vmem:[%s2] sm:$0xff]
        %v202 = vld [vmem:[%s2 + $0x8] sm:$0xff]
        %v203 = vld [vmem:[%s2 + $0x10] sm:$0xff]
        %v204 = vld [vmem:[%s2 + $0x18] sm:$0xff]
        %v205 = vld [vmem:[%s3] sm:$0xff]
        %v206 = vld [vmem:[%s3 + $0x8] sm:$0xff]
        %v207 = vld [vmem:[%s3 + $0x10] sm:$0xff]
        %v208 = vld [vmem:[%s3 + $0x18] sm:$0xff]
        %vm209 = vcmask 261120
        %v211 = vsel %vm209, %v197, 0
        %v214 = vsel %vm209, %v198, 0
        %216 = vmatprep.subr.mxu0 0.0
        %217 = vmatpush1.msra.mxu0 %v205
        %218 = vmatprep.subr.mxu0 0.0
        %219 = vmatpush1.msra.mxu0 %v206
        %220 = vmatprep.subr.mxu0 0.0
        %221 = vmatpush1.msra.mxu0 %v207
        %222 = vmatprep.subr.mxu0 0.0
        %223 = vmatpush1.msra.mxu0 %v208
        %224 = vmatprep.subr.mxu0 0.0
        %225 = vmatpush1.msra.mxu0 0.0
        %226 = vmatprep.subr.mxu0 0.0
        %227 = vmatpush1.msra.mxu0 0.0
        %228 = vmatprep.subr.mxu0 0.0
        %229 = vmatpush1.msra.mxu0 0.0
        %230 = vmatprep.subr.mxu0 0.0
        %231 = vmatpush1.msra.mxu0 0.0
        %232 = vmatprep.subr.mxu0 0.0
        %233 = vmatpush1.msra.mxu0 0.0
        %234 = vmatprep.subr.mxu0 0.0
        %235 = vmatpush1.msra.mxu0 0.0
        %236 = vmatprep.subr.mxu0 0.0
        %237 = vmatpush1.msra.mxu0 0.0
        %238 = vmatprep.subr.mxu0 0.0
        %239 = vmatpush1.msra.mxu0 0.0
        %240 = vmatprep.subr.mxu0 0.0
        %241 = vmatpush1.msra.mxu0 0.0
        %242 = vmatprep.subr.mxu0 0.0
        %243 = vmatpush1.msra.mxu0 0.0
        %244 = vmatprep.subr.mxu0 0.0
        %245 = vmatpush1.msra.mxu0 0.0
        %246 = vmatprep.subr.mxu0 0.0
        %247 = vmatpush1.msra.mxu0 0.0
        %248 = vmatprep.subr.mxu0 0.0
        %249 = vmatpush1.msra.mxu0 0.0
        %250 = vmatprep.subr.mxu0 0.0
        %251 = vmatpush1.msra.mxu0 0.0
        %252 = vmatprep.subr.mxu0 0.0
        %253 = vmatpush1.msra.mxu0 0.0
        %254 = vmatprep.subr.mxu0 0.0
        %255 = vmatpush1.msra.mxu0 0.0
        %256 = vmatprep.subr.mxu0 0.0
        %257 = vmatpush1.msra.mxu0 0.0
        %258 = vmatprep.subr.mxu0 0.0
        %259 = vmatpush1.msra.mxu0 0.0
        %260 = vmatprep.subr.mxu0 0.0
        %261 = vmatpush1.msra.mxu0 0.0
        %262 = vmatprep.subr.mxu0 0.0
        %263 = vmatpush1.msra.mxu0 0.0
        %264 = vmatprep.subr.mxu0 0.0
        %265 = vmatpush1.msra.mxu0 0.0
        %266 = vmatprep.subr.mxu0 0.0
        %267 = vmatpush1.msra.mxu0 0.0
        %268 = vmatprep.subr.mxu0 0.0
        %269 = vmatpush1.msra.mxu0 0.0
        %270 = vmatprep.subr.mxu0 0.0
        %271 = vmatpush1.msra.mxu0 0.0
        %272 = vmatprep.subr.mxu0 0.0
        %273 = vmatpush1.msra.mxu0 0.0
        %274 = vmatprep.subr.mxu0 0.0
        %275 = vmatpush1.msra.mxu0 0.0
        %276 = vmatprep.subr.mxu0 0.0
        %277 = vmatpush1.msra.mxu0 0.0
        %278 = vmatprep.subr.mxu0 0.0
        %279 = vmatpush1.msra.mxu0 0.0
        %280 = vmatprep.mubr.f32.mxu0 0.0
        %281 = vmatmul.mubr.f32.gmra.mrb[0].mxu0 %v211
        %v282 = vpop.f32.mrb[0].mxu0
        %v283 = vadd.f32 0.0, %v282
        %v284 = vpop.f32.mrb[0].mxu0
        %285 = vmatprep.mubr.f32.mxu0 0.0
        %286 = vmatmul.mubr.f32.gmra.mrb[0].mxu0 %v214
        %v287 = vpop.f32.mrb[0].mxu0
        %v288 = vadd.f32 0.0, %v287
        %v289 = vpop.f32.mrb[0].mxu0
        %290 = vdwg.mxu0
        %v292 = vsel %vm209, %v195, 0
        %v295 = vsel %vm209, %v196, 0
        %297 = vmatprep.subr.mxu0 0.0
        %298 = vmatpush1.msra.mxu0 %v201
        %299 = vmatprep.subr.mxu0 0.0
        %300 = vmatpush1.msra.mxu0 %v202
        %301 = vmatprep.subr.mxu0 0.0
        %302 = vmatpush1.msra.mxu0 %v203
        %303 = vmatprep.subr.mxu0 0.0
        %304 = vmatpush1.msra.mxu0 %v204
        %305 = vmatprep.subr.mxu0 0.0
        %306 = vmatpush1.msra.mxu0 0.0
        %307 = vmatprep.subr.mxu0 0.0
        %308 = vmatpush1.msra.mxu0 0.0
        %309 = vmatprep.subr.mxu0 0.0
        %310 = vmatpush1.msra.mxu0 0.0
        %311 = vmatprep.subr.mxu0 0.0
        %312 = vmatpush1.msra.mxu0 0.0
        %313 = vmatprep.subr.mxu0 0.0
        %314 = vmatpush1.msra.mxu0 0.0
        %315 = vmatprep.subr.mxu0 0.0
        %316 = vmatpush1.msra.mxu0 0.0
        %317 = vmatprep.subr.mxu0 0.0
        %318 = vmatpush1.msra.mxu0 0.0
        %319 = vmatprep.subr.mxu0 0.0
        %320 = vmatpush1.msra.mxu0 0.0
        %321 = vmatprep.subr.mxu0 0.0
        %322 = vmatpush1.msra.mxu0 0.0
        %323 = vmatprep.subr.mxu0 0.0
        %324 = vmatpush1.msra.mxu0 0.0
        %325 = vmatprep.subr.mxu0 0.0
        %326 = vmatpush1.msra.mxu0 0.0
        %327 = vmatprep.subr.mxu0 0.0
        %328 = vmatpush1.msra.mxu0 0.0
        %329 = vmatprep.subr.mxu0 0.0
        %330 = vmatpush1.msra.mxu0 0.0
        %331 = vmatprep.subr.mxu0 0.0
        %332 = vmatpush1.msra.mxu0 0.0
        %333 = vmatprep.subr.mxu0 0.0
        %334 = vmatpush1.msra.mxu0 0.0
        %335 = vmatprep.subr.mxu0 0.0
        %336 = vmatpush1.msra.mxu0 0.0
        %337 = vmatprep.subr.mxu0 0.0
        %338 = vmatpush1.msra.mxu0 0.0
        %339 = vmatprep.subr.mxu0 0.0
        %340 = vmatpush1.msra.mxu0 0.0
        %341 = vmatprep.subr.mxu0 0.0
        %342 = vmatpush1.msra.mxu0 0.0
        %343 = vmatprep.subr.mxu0 0.0
        %344 = vmatpush1.msra.mxu0 0.0
        %345 = vmatprep.subr.mxu0 0.0
        %346 = vmatpush1.msra.mxu0 0.0
        %347 = vmatprep.subr.mxu0 0.0
        %348 = vmatpush1.msra.mxu0 0.0
        %349 = vmatprep.subr.mxu0 0.0
        %350 = vmatpush1.msra.mxu0 0.0
        %351 = vmatprep.subr.mxu0 0.0
        %352 = vmatpush1.msra.mxu0 0.0
        %353 = vmatprep.subr.mxu0 0.0
        %354 = vmatpush1.msra.mxu0 0.0
        %355 = vmatprep.subr.mxu0 0.0
        %356 = vmatpush1.msra.mxu0 0.0
        %357 = vmatprep.subr.mxu0 0.0
        %358 = vmatpush1.msra.mxu0 0.0
        %359 = vmatprep.subr.mxu0 0.0
        %360 = vmatpush1.msra.mxu0 0.0
        %361 = vmatprep.mubr.f32.mxu0 0.0
        %362 = vmatmul.mubr.f32.gmra.mrb[0].mxu0 %v292
        %v363 = vpop.f32.mrb[0].mxu0
        %v364 = vadd.f32 %v283, %v363
        %v365 = vpop.f32.mrb[0].mxu0
        %366 = vmatprep.mubr.f32.mxu0 0.0
        %367 = vmatmul.mubr.f32.gmra.mrb[0].mxu0 %v295
        %v368 = vpop.f32.mrb[0].mxu0
        %v369 = vadd.f32 %v288, %v368
        %v370 = vpop.f32.mrb[0].mxu0
        %371 = vdwg.mxu0
        %v372 = vld [vmem:[%s4] sm:$0x1]
        %v374 = vlaneseq
        %v375 = vshrl.u32 %v374, 7
        %v376 = vsub.s32 0, %v375
        %v377 = vrot.slane %v372, %v376
        %v379 = vadd.f32 %v364, %v377
        %v380 = vadd.f32 %v369, %v377
        %v381 = vxor.u32 %v379, 2147483648
        %v382 = vxor.u32 %v380, 2147483648
        %v383 = vmul.f32 %v381, 1.442695
        %v384 = vpow.pop %v383
        %v385 = vmul.f32 %v382, 1.442695
        %v386 = vpow.pop %v385
        %v387 = vadd.f32 %v384, 1.0
        %v388 = vadd.f32 %v386, 1.0
        %v389 = vrcp.pop %v387
        %v390 = vmul.f32 1.0, %v389
        %v391 = vrcp.pop %v388
        %v392 = vmul.f32 1.0, %v391
        %s393 = scalar_lea.vmem %s2, 32
        %v394 = vld [vmem:[%s393] sm:$0xff]
        %v395 = vld [vmem:[%s393 + $0x8] sm:$0xff]
        %v396 = vld [vmem:[%s393 + $0x10] sm:$0xff]
        %v397 = vld [vmem:[%s393 + $0x18] sm:$0xff]
        %s398 = scalar_lea.vmem %s3, 32
        %v399 = vld [vmem:[%s398] sm:$0xff]
        %v400 = vld [vmem:[%s398 + $0x8] sm:$0xff]
        %v401 = vld [vmem:[%s398 + $0x10] sm:$0xff]
        %v402 = vld [vmem:[%s398 + $0x18] sm:$0xff]
        %403 = vmatprep.subr.mxu0 0.0
        %404 = vmatpush1.msra.mxu0 %v399
        %405 = vmatprep.subr.mxu0 0.0
        %406 = vmatpush1.msra.mxu0 %v400
        %407 = vmatprep.subr.mxu0 0.0
        %408 = vmatpush1.msra.mxu0 %v401
        %409 = vmatprep.subr.mxu0 0.0
        %410 = vmatpush1.msra.mxu0 %v402
        %411 = vmatprep.subr.mxu0 0.0
        %412 = vmatpush1.msra.mxu0 0.0
        %413 = vmatprep.subr.mxu0 0.0
        %414 = vmatpush1.msra.mxu0 0.0
        %415 = vmatprep.subr.mxu0 0.0
        %416 = vmatpush1.msra.mxu0 0.0
        %417 = vmatprep.subr.mxu0 0.0
        %418 = vmatpush1.msra.mxu0 0.0
        %419 = vmatprep.subr.mxu0 0.0
        %420 = vmatpush1.msra.mxu0 0.0
        %421 = vmatprep.subr.mxu0 0.0
        %422 = vmatpush1.msra.mxu0 0.0
        %423 = vmatprep.subr.mxu0 0.0
        %424 = vmatpush1.msra.mxu0 0.0
        %425 = vmatprep.subr.mxu0 0.0
        %426 = vmatpush1.msra.mxu0 0.0
        %427 = vmatprep.subr.mxu0 0.0
        %428 = vmatpush1.msra.mxu0 0.0
        %429 = vmatprep.subr.mxu0 0.0
        %430 = vmatpush1.msra.mxu0 0.0
        %431 = vmatprep.subr.mxu0 0.0
        %432 = vmatpush1.msra.mxu0 0.0
        %433 = vmatprep.subr.mxu0 0.0
        %434 = vmatpush1.msra.mxu0 0.0
        %435 = vmatprep.subr.mxu0 0.0
        %436 = vmatpush1.msra.mxu0 0.0
        %437 = vmatprep.subr.mxu0 0.0
        %438 = vmatpush1.msra.mxu0 0.0
        %439 = vmatprep.subr.mxu0 0.0
        %440 = vmatpush1.msra.mxu0 0.0
        %441 = vmatprep.subr.mxu0 0.0
        %442 = vmatpush1.msra.mxu0 0.0
        %443 = vmatprep.subr.mxu0 0.0
        %444 = vmatpush1.msra.mxu0 0.0
        %445 = vmatprep.subr.mxu0 0.0
        %446 = vmatpush1.msra.mxu0 0.0
        %447 = vmatprep.subr.mxu0 0.0
        %448 = vmatpush1.msra.mxu0 0.0
        %449 = vmatprep.subr.mxu0 0.0
        %450 = vmatpush1.msra.mxu0 0.0
        %451 = vmatprep.subr.mxu0 0.0
        %452 = vmatpush1.msra.mxu0 0.0
        %453 = vmatprep.subr.mxu0 0.0
        %454 = vmatpush1.msra.mxu0 0.0
        %455 = vmatprep.subr.mxu0 0.0
        %456 = vmatpush1.msra.mxu0 0.0
        %457 = vmatprep.subr.mxu0 0.0
        %458 = vmatpush1.msra.mxu0 0.0
        %459 = vmatprep.subr.mxu0 0.0
        %460 = vmatpush1.msra.mxu0 0.0
        %461 = vmatprep.subr.mxu0 0.0
        %462 = vmatpush1.msra.mxu0 0.0
        %463 = vmatprep.subr.mxu0 0.0
        %464 = vmatpush1.msra.mxu0 0.0
        %465 = vmatprep.subr.mxu0 0.0
        %466 = vmatpush1.msra.mxu0 0.0
        %467 = vmatprep.mubr.f32.mxu0 0.0
        %468 = vmatmul.mubr.f32.gmra.mrb[0].mxu0 %v211
        %v469 = vpop.f32.mrb[0].mxu0
        %v470 = vadd.f32 0.0, %v469
        %v471 = vpop.f32.mrb[0].mxu0
        %472 = vmatprep.mubr.f32.mxu0 0.0
        %473 = vmatmul.mubr.f32.gmra.mrb[0].mxu0 %v214
        %v474 = vpop.f32.mrb[0].mxu0
        %v475 = vadd.f32 0.0, %v474
        %v476 = vpop.f32.mrb[0].mxu0
        %477 = vdwg.mxu0
        %478 = vmatprep.subr.mxu0 0.0
        %479 = vmatpush1.msra.mxu0 %v394
        %480 = vmatprep.subr.mxu0 0.0
        %481 = vmatpush1.msra.mxu0 %v395
        %482 = vmatprep.subr.mxu0 0.0
        %483 = vmatpush1.msra.mxu0 %v396
        %484 = vmatprep.subr.mxu0 0.0
        %485 = vmatpush1.msra.mxu0 %v397
        %486 = vmatprep.subr.mxu0 0.0
        %487 = vmatpush1.msra.mxu0 0.0
        %488 = vmatprep.subr.mxu0 0.0
        %489 = vmatpush1.msra.mxu0 0.0
        %490 = vmatprep.subr.mxu0 0.0
        %491 = vmatpush1.msra.mxu0 0.0
        %492 = vmatprep.subr.mxu0 0.0
        %493 = vmatpush1.msra.mxu0 0.0
        %494 = vmatprep.subr.mxu0 0.0
        %495 = vmatpush1.msra.mxu0 0.0
        %496 = vmatprep.subr.mxu0 0.0
        %497 = vmatpush1.msra.mxu0 0.0
        %498 = vmatprep.subr.mxu0 0.0
        %499 = vmatpush1.msra.mxu0 0.0
        %500 = vmatprep.subr.mxu0 0.0
        %501 = vmatpush1.msra.mxu0 0.0
        %502 = vmatprep.subr.mxu0 0.0
        %503 = vmatpush1.msra.mxu0 0.0
        %504 = vmatprep.subr.mxu0 0.0
        %505 = vmatpush1.msra.mxu0 0.0
        %506 = vmatprep.subr.mxu0 0.0
        %507 = vmatpush1.msra.mxu0 0.0
        %508 = vmatprep.subr.mxu0 0.0
        %509 = vmatpush1.msra.mxu0 0.0
        %510 = vmatprep.subr.mxu0 0.0
        %511 = vmatpush1.msra.mxu0 0.0
        %512 = vmatprep.subr.mxu0 0.0
        %513 = vmatpush1.msra.mxu0 0.0
        %514 = vmatprep.subr.mxu0 0.0
        %515 = vmatpush1.msra.mxu0 0.0
        %516 = vmatprep.subr.mxu0 0.0
        %517 = vmatpush1.msra.mxu0 0.0
        %518 = vmatprep.subr.mxu0 0.0
        %519 = vmatpush1.msra.mxu0 0.0
        %520 = vmatprep.subr.mxu0 0.0
        %521 = vmatpush1.msra.mxu0 0.0
        %522 = vmatprep.subr.mxu0 0.0
        %523 = vmatpush1.msra.mxu0 0.0
        %524 = vmatprep.subr.mxu0 0.0
        %525 = vmatpush1.msra.mxu0 0.0
        %526 = vmatprep.subr.mxu0 0.0
        %527 = vmatpush1.msra.mxu0 0.0
        %528 = vmatprep.subr.mxu0 0.0
        %529 = vmatpush1.msra.mxu0 0.0
        %530 = vmatprep.subr.mxu0 0.0
        %531 = vmatpush1.msra.mxu0 0.0
        %532 = vmatprep.subr.mxu0 0.0
        %533 = vmatpush1.msra.mxu0 0.0
        %534 = vmatprep.subr.mxu0 0.0
        %535 = vmatpush1.msra.mxu0 0.0
        %536 = vmatprep.subr.mxu0 0.0
        %537 = vmatpush1.msra.mxu0 0.0
        %538 = vmatprep.subr.mxu0 0.0
        %539 = vmatpush1.msra.mxu0 0.0
        %540 = vmatprep.subr.mxu0 0.0
        %541 = vmatpush1.msra.mxu0 0.0
        %542 = vmatprep.mubr.f32.mxu0 0.0
        %543 = vmatmul.mubr.f32.gmra.mrb[0].mxu0 %v292
        %v544 = vpop.f32.mrb[0].mxu0
        %v545 = vadd.f32 %v470, %v544
        %v546 = vpop.f32.mrb[0].mxu0
        %547 = vmatprep.mubr.f32.mxu0 0.0
        %548 = vmatmul.mubr.f32.gmra.mrb[0].mxu0 %v295
        %v549 = vpop.f32.mrb[0].mxu0
        %v550 = vadd.f32 %v475, %v549
        %v551 = vpop.f32.mrb[0].mxu0
        %552 = vdwg.mxu0
        %s553 = scalar_lea.vmem %s4, 1
        %v554 = vld [vmem:[%s553] sm:$0x1]
        %v556 = vlaneseq
        %v557 = vshrl.u32 %v556, 7
        %v558 = vsub.s32 0, %v557
        %v559 = vrot.slane %v554, %v558
        %v561 = vadd.f32 %v545, %v559
        %v562 = vadd.f32 %v550, %v559
        %v563 = vxor.u32 %v561, 2147483648
        %v564 = vxor.u32 %v562, 2147483648
        %v565 = vmul.f32 %v563, 1.442695
        %v566 = vpow.pop %v565
        %v567 = vmul.f32 %v564, 1.442695
        %v568 = vpow.pop %v567
        %v569 = vadd.f32 %v566, 1.0
        %v570 = vadd.f32 %v568, 1.0
        %v571 = vrcp.pop %v569
        %v572 = vmul.f32 1.0, %v571
        %v573 = vrcp.pop %v570
        %v574 = vmul.f32 1.0, %v573
        %s575 = scalar_lea.vmem %s2, 64
        %v576 = vld [vmem:[%s575] sm:$0xff]
        %v577 = vld [vmem:[%s575 + $0x8] sm:$0xff]
        %v578 = vld [vmem:[%s575 + $0x10] sm:$0xff]
        %v579 = vld [vmem:[%s575 + $0x18] sm:$0xff]
        %s580 = scalar_lea.vmem %s3, 64
        %v581 = vld [vmem:[%s580] sm:$0xff]
        %v582 = vld [vmem:[%s580 + $0x8] sm:$0xff]
        %v583 = vld [vmem:[%s580 + $0x10] sm:$0xff]
        %v584 = vld [vmem:[%s580 + $0x18] sm:$0xff]
        %585 = vmatprep.subr.mxu0 0.0
        %586 = vmatpush1.msra.mxu0 %v581
        %587 = vmatprep.subr.mxu0 0.0
        %588 = vmatpush1.msra.mxu0 %v582
        %589 = vmatprep.subr.mxu0 0.0
        %590 = vmatpush1.msra.mxu0 %v583
        %591 = vmatprep.subr.mxu0 0.0
        %592 = vmatpush1.msra.mxu0 %v584
        %593 = vmatprep.subr.mxu0 0.0
        %594 = vmatpush1.msra.mxu0 0.0
        %595 = vmatprep.subr.mxu0 0.0
        %596 = vmatpush1.msra.mxu0 0.0
        %597 = vmatprep.subr.mxu0 0.0
        %598 = vmatpush1.msra.mxu0 0.0
        %599 = vmatprep.subr.mxu0 0.0
        %600 = vmatpush1.msra.mxu0 0.0
        %601 = vmatprep.subr.mxu0 0.0
        %602 = vmatpush1.msra.mxu0 0.0
        %603 = vmatprep.subr.mxu0 0.0
        %604 = vmatpush1.msra.mxu0 0.0
        %605 = vmatprep.subr.mxu0 0.0
        %606 = vmatpush1.msra.mxu0 0.0
        %607 = vmatprep.subr.mxu0 0.0
        %608 = vmatpush1.msra.mxu0 0.0
        %609 = vmatprep.subr.mxu0 0.0
        %610 = vmatpush1.msra.mxu0 0.0
        %611 = vmatprep.subr.mxu0 0.0
        %612 = vmatpush1.msra.mxu0 0.0
        %613 = vmatprep.subr.mxu0 0.0
        %614 = vmatpush1.msra.mxu0 0.0
        %615 = vmatprep.subr.mxu0 0.0
        %616 = vmatpush1.msra.mxu0 0.0
        %617 = vmatprep.subr.mxu0 0.0
        %618 = vmatpush1.msra.mxu0 0.0
        %619 = vmatprep.subr.mxu0 0.0
        %620 = vmatpush1.msra.mxu0 0.0
        %621 = vmatprep.subr.mxu0 0.0
        %622 = vmatpush1.msra.mxu0 0.0
        %623 = vmatprep.subr.mxu0 0.0
        %624 = vmatpush1.msra.mxu0 0.0
        %625 = vmatprep.subr.mxu0 0.0
        %626 = vmatpush1.msra.mxu0 0.0
        %627 = vmatprep.subr.mxu0 0.0
        %628 = vmatpush1.msra.mxu0 0.0
        %629 = vmatprep.subr.mxu0 0.0
        %630 = vmatpush1.msra.mxu0 0.0
        %631 = vmatprep.subr.mxu0 0.0
        %632 = vmatpush1.msra.mxu0 0.0
        %633 = vmatprep.subr.mxu0 0.0
        %634 = vmatpush1.msra.mxu0 0.0
        %635 = vmatprep.subr.mxu0 0.0
        %636 = vmatpush1.msra.mxu0 0.0
        %637 = vmatprep.subr.mxu0 0.0
        %638 = vmatpush1.msra.mxu0 0.0
        %639 = vmatprep.subr.mxu0 0.0
        %640 = vmatpush1.msra.mxu0 0.0
        %641 = vmatprep.subr.mxu0 0.0
        %642 = vmatpush1.msra.mxu0 0.0
        %643 = vmatprep.subr.mxu0 0.0
        %644 = vmatpush1.msra.mxu0 0.0
        %645 = vmatprep.subr.mxu0 0.0
        %646 = vmatpush1.msra.mxu0 0.0
        %647 = vmatprep.subr.mxu0 0.0
        %648 = vmatpush1.msra.mxu0 0.0
        %649 = vmatprep.mubr.f32.mxu0 0.0
        %650 = vmatmul.mubr.f32.gmra.mrb[0].mxu0 %v211
        %v651 = vpop.f32.mrb[0].mxu0
        %v652 = vadd.f32 0.0, %v651
        %v653 = vpop.f32.mrb[0].mxu0
        %654 = vmatprep.mubr.f32.mxu0 0.0
        %655 = vmatmul.mubr.f32.gmra.mrb[0].mxu0 %v214
        %v656 = vpop.f32.mrb[0].mxu0
        %v657 = vadd.f32 0.0, %v656
        %v658 = vpop.f32.mrb[0].mxu0
        %659 = vdwg.mxu0
        %660 = vmatprep.subr.mxu0 0.0
        %661 = vmatpush1.msra.mxu0 %v576
        %662 = vmatprep.subr.mxu0 0.0
        %663 = vmatpush1.msra.mxu0 %v577
        %664 = vmatprep.subr.mxu0 0.0
        %665 = vmatpush1.msra.mxu0 %v578
        %666 = vmatprep.subr.mxu0 0.0
        %667 = vmatpush1.msra.mxu0 %v579
        %668 = vmatprep.subr.mxu0 0.0
        %669 = vmatpush1.msra.mxu0 0.0
        %670 = vmatprep.subr.mxu0 0.0
        %671 = vmatpush1.msra.mxu0 0.0
        %672 = vmatprep.subr.mxu0 0.0
        %673 = vmatpush1.msra.mxu0 0.0
        %674 = vmatprep.subr.mxu0 0.0
        %675 = vmatpush1.msra.mxu0 0.0
        %676 = vmatprep.subr.mxu0 0.0
        %677 = vmatpush1.msra.mxu0 0.0
        %678 = vmatprep.subr.mxu0 0.0
        %679 = vmatpush1.msra.mxu0 0.0
        %680 = vmatprep.subr.mxu0 0.0
        %681 = vmatpush1.msra.mxu0 0.0
        %682 = vmatprep.subr.mxu0 0.0
        %683 = vmatpush1.msra.mxu0 0.0
        %684 = vmatprep.subr.mxu0 0.0
        %685 = vmatpush1.msra.mxu0 0.0
        %686 = vmatprep.subr.mxu0 0.0
        %687 = vmatpush1.msra.mxu0 0.0
        %688 = vmatprep.subr.mxu0 0.0
        %689 = vmatpush1.msra.mxu0 0.0
        %690 = vmatprep.subr.mxu0 0.0
        %691 = vmatpush1.msra.mxu0 0.0
        %692 = vmatprep.subr.mxu0 0.0
        %693 = vmatpush1.msra.mxu0 0.0
        %694 = vmatprep.subr.mxu0 0.0
        %695 = vmatpush1.msra.mxu0 0.0
        %696 = vmatprep.subr.mxu0 0.0
        %697 = vmatpush1.msra.mxu0 0.0
        %698 = vmatprep.subr.mxu0 0.0
        %699 = vmatpush1.msra.mxu0 0.0
        %700 = vmatprep.subr.mxu0 0.0
        %701 = vmatpush1.msra.mxu0 0.0
        %702 = vmatprep.subr.mxu0 0.0
        %703 = vmatpush1.msra.mxu0 0.0
        %704 = vmatprep.subr.mxu0 0.0
        %705 = vmatpush1.msra.mxu0 0.0
        %706 = vmatprep.subr.mxu0 0.0
        %707 = vmatpush1.msra.mxu0 0.0
        %708 = vmatprep.subr.mxu0 0.0
        %709 = vmatpush1.msra.mxu0 0.0
        %710 = vmatprep.subr.mxu0 0.0
        %711 = vmatpush1.msra.mxu0 0.0
        %712 = vmatprep.subr.mxu0 0.0
        %713 = vmatpush1.msra.mxu0 0.0
        %714 = vmatprep.subr.mxu0 0.0
        %715 = vmatpush1.msra.mxu0 0.0
        %716 = vmatprep.subr.mxu0 0.0
        %717 = vmatpush1.msra.mxu0 0.0
        %718 = vmatprep.subr.mxu0 0.0
        %719 = vmatpush1.msra.mxu0 0.0
        %720 = vmatprep.subr.mxu0 0.0
        %721 = vmatpush1.msra.mxu0 0.0
        %722 = vmatprep.subr.mxu0 0.0
        %723 = vmatpush1.msra.mxu0 0.0
        %724 = vmatprep.mubr.f32.mxu0 0.0
        %725 = vmatmul.mubr.f32.gmra.mrb[0].mxu0 %v292
        %v726 = vpop.f32.mrb[0].mxu0
        %v727 = vadd.f32 %v652, %v726
        %v728 = vpop.f32.mrb[0].mxu0
        %729 = vmatprep.mubr.f32.mxu0 0.0
        %730 = vmatmul.mubr.f32.gmra.mrb[0].mxu0 %v295
        %v731 = vpop.f32.mrb[0].mxu0
        %v732 = vadd.f32 %v657, %v731
        %v733 = vpop.f32.mrb[0].mxu0
        %734 = vdwg.mxu0
        %s735 = scalar_lea.vmem %s4, 2
        %v736 = vld [vmem:[%s735] sm:$0x1]
        %v738 = vlaneseq
        %v739 = vshrl.u32 %v738, 7
        %v740 = vsub.s32 0, %v739
        %v741 = vrot.slane %v736, %v740
        %v743 = vadd.f32 %v727, %v741
        %v744 = vadd.f32 %v732, %v741
        %v745 = vtanh.pop %v743
        %v746 = vtanh.pop %v744
        %s747 = scalar_lea.vmem %s2, 96
        %v748 = vld [vmem:[%s747] sm:$0xff]
        %v749 = vld [vmem:[%s747 + $0x8] sm:$0xff]
        %v750 = vld [vmem:[%s747 + $0x10] sm:$0xff]
        %v751 = vld [vmem:[%s747 + $0x18] sm:$0xff]
        %s752 = scalar_lea.vmem %s3, 96
        %v753 = vld [vmem:[%s752] sm:$0xff]
        %v754 = vld [vmem:[%s752 + $0x8] sm:$0xff]
        %v755 = vld [vmem:[%s752 + $0x10] sm:$0xff]
        %v756 = vld [vmem:[%s752 + $0x18] sm:$0xff]
        %757 = vmatprep.subr.mxu0 0.0
        %758 = vmatpush1.msra.mxu0 %v753
        %759 = vmatprep.subr.mxu0 0.0
        %760 = vmatpush1.msra.mxu0 %v754
        %761 = vmatprep.subr.mxu0 0.0
        %762 = vmatpush1.msra.mxu0 %v755
        %763 = vmatprep.subr.mxu0 0.0
        %764 = vmatpush1.msra.mxu0 %v756
        %765 = vmatprep.subr.mxu0 0.0
        %766 = vmatpush1.msra.mxu0 0.0
        %767 = vmatprep.subr.mxu0 0.0
        %768 = vmatpush1.msra.mxu0 0.0
        %769 = vmatprep.subr.mxu0 0.0
        %770 = vmatpush1.msra.mxu0 0.0
        %771 = vmatprep.subr.mxu0 0.0
        %772 = vmatpush1.msra.mxu0 0.0
        %773 = vmatprep.subr.mxu0 0.0
        %774 = vmatpush1.msra.mxu0 0.0
        %775 = vmatprep.subr.mxu0 0.0
        %776 = vmatpush1.msra.mxu0 0.0
        %777 = vmatprep.subr.mxu0 0.0
        %778 = vmatpush1.msra.mxu0 0.0
        %779 = vmatprep.subr.mxu0 0.0
        %780 = vmatpush1.msra.mxu0 0.0
        %781 = vmatprep.subr.mxu0 0.0
        %782 = vmatpush1.msra.mxu0 0.0
        %783 = vmatprep.subr.mxu0 0.0
        %784 = vmatpush1.msra.mxu0 0.0
        %785 = vmatprep.subr.mxu0 0.0
        %786 = vmatpush1.msra.mxu0 0.0
        %787 = vmatprep.subr.mxu0 0.0
        %788 = vmatpush1.msra.mxu0 0.0
        %789 = vmatprep.subr.mxu0 0.0
        %790 = vmatpush1.msra.mxu0 0.0
        %791 = vmatprep.subr.mxu0 0.0
        %792 = vmatpush1.msra.mxu0 0.0
        %793 = vmatprep.subr.mxu0 0.0
        %794 = vmatpush1.msra.mxu0 0.0
        %795 = vmatprep.subr.mxu0 0.0
        %796 = vmatpush1.msra.mxu0 0.0
        %797 = vmatprep.subr.mxu0 0.0
        %798 = vmatpush1.msra.mxu0 0.0
        %799 = vmatprep.subr.mxu0 0.0
        %800 = vmatpush1.msra.mxu0 0.0
        %801 = vmatprep.subr.mxu0 0.0
        %802 = vmatpush1.msra.mxu0 0.0
        %803 = vmatprep.subr.mxu0 0.0
        %804 = vmatpush1.msra.mxu0 0.0
        %805 = vmatprep.subr.mxu0 0.0
        %806 = vmatpush1.msra.mxu0 0.0
        %807 = vmatprep.subr.mxu0 0.0
        %808 = vmatpush1.msra.mxu0 0.0
        %809 = vmatprep.subr.mxu0 0.0
        %810 = vmatpush1.msra.mxu0 0.0
        %811 = vmatprep.subr.mxu0 0.0
        %812 = vmatpush1.msra.mxu0 0.0
        %813 = vmatprep.subr.mxu0 0.0
        %814 = vmatpush1.msra.mxu0 0.0
        %815 = vmatprep.subr.mxu0 0.0
        %816 = vmatpush1.msra.mxu0 0.0
        %817 = vmatprep.subr.mxu0 0.0
        %818 = vmatpush1.msra.mxu0 0.0
        %819 = vmatprep.subr.mxu0 0.0
        %820 = vmatpush1.msra.mxu0 0.0
        %821 = vmatprep.mubr.f32.mxu0 0.0
        %822 = vmatmul.mubr.f32.gmra.mrb[0].mxu0 %v211
        %v823 = vpop.f32.mrb[0].mxu0
        %v824 = vadd.f32 0.0, %v823
        %v825 = vpop.f32.mrb[0].mxu0
        %826 = vmatprep.mubr.f32.mxu0 0.0
        %827 = vmatmul.mubr.f32.gmra.mrb[0].mxu0 %v214
        %v828 = vpop.f32.mrb[0].mxu0
        %v829 = vadd.f32 0.0, %v828
        %v830 = vpop.f32.mrb[0].mxu0
        %831 = vdwg.mxu0
        %832 = vmatprep.subr.mxu0 0.0
        %833 = vmatpush1.msra.mxu0 %v748
        %834 = vmatprep.subr.mxu0 0.0
        %835 = vmatpush1.msra.mxu0 %v749
        %836 = vmatprep.subr.mxu0 0.0
        %837 = vmatpush1.msra.mxu0 %v750
        %838 = vmatprep.subr.mxu0 0.0
        %839 = vmatpush1.msra.mxu0 %v751
        %840 = vmatprep.subr.mxu0 0.0
        %841 = vmatpush1.msra.mxu0 0.0
        %842 = vmatprep.subr.mxu0 0.0
        %843 = vmatpush1.msra.mxu0 0.0
        %844 = vmatprep.subr.mxu0 0.0
        %845 = vmatpush1.msra.mxu0 0.0
        %846 = vmatprep.subr.mxu0 0.0
        %847 = vmatpush1.msra.mxu0 0.0
        %848 = vmatprep.subr.mxu0 0.0
        %849 = vmatpush1.msra.mxu0 0.0
        %850 = vmatprep.subr.mxu0 0.0
        %851 = vmatpush1.msra.mxu0 0.0
        %852 = vmatprep.subr.mxu0 0.0
        %853 = vmatpush1.msra.mxu0 0.0
        %854 = vmatprep.subr.mxu0 0.0
        %855 = vmatpush1.msra.mxu0 0.0
        %856 = vmatprep.subr.mxu0 0.0
        %857 = vmatpush1.msra.mxu0 0.0
        %858 = vmatprep.subr.mxu0 0.0
        %859 = vmatpush1.msra.mxu0 0.0
        %860 = vmatprep.subr.mxu0 0.0
        %861 = vmatpush1.msra.mxu0 0.0
        %862 = vmatprep.subr.mxu0 0.0
        %863 = vmatpush1.msra.mxu0 0.0
        %864 = vmatprep.subr.mxu0 0.0
        %865 = vmatpush1.msra.mxu0 0.0
        %866 = vmatprep.subr.mxu0 0.0
        %867 = vmatpush1.msra.mxu0 0.0
        %868 = vmatprep.subr.mxu0 0.0
        %869 = vmatpush1.msra.mxu0 0.0
        %870 = vmatprep.subr.mxu0 0.0
        %871 = vmatpush1.msra.mxu0 0.0
        %872 = vmatprep.subr.mxu0 0.0
        %873 = vmatpush1.msra.mxu0 0.0
        %874 = vmatprep.subr.mxu0 0.0
        %875 = vmatpush1.msra.mxu0 0.0
        %876 = vmatprep.subr.mxu0 0.0
        %877 = vmatpush1.msra.mxu0 0.0
        %878 = vmatprep.subr.mxu0 0.0
        %879 = vmatpush1.msra.mxu0 0.0
        %880 = vmatprep.subr.mxu0 0.0
        %881 = vmatpush1.msra.mxu0 0.0
        %882 = vmatprep.subr.mxu0 0.0
        %883 = vmatpush1.msra.mxu0 0.0
        %884 = vmatprep.subr.mxu0 0.0
        %885 = vmatpush1.msra.mxu0 0.0
        %886 = vmatprep.subr.mxu0 0.0
        %887 = vmatpush1.msra.mxu0 0.0
        %888 = vmatprep.subr.mxu0 0.0
        %889 = vmatpush1.msra.mxu0 0.0
        %890 = vmatprep.subr.mxu0 0.0
        %891 = vmatpush1.msra.mxu0 0.0
        %892 = vmatprep.subr.mxu0 0.0
        %893 = vmatpush1.msra.mxu0 0.0
        %894 = vmatprep.subr.mxu0 0.0
        %895 = vmatpush1.msra.mxu0 0.0
        %896 = vmatprep.mubr.f32.mxu0 0.0
        %897 = vmatmul.mubr.f32.gmra.mrb[0].mxu0 %v292
        %v898 = vpop.f32.mrb[0].mxu0
        %v899 = vadd.f32 %v824, %v898
        %v900 = vpop.f32.mrb[0].mxu0
        %901 = vmatprep.mubr.f32.mxu0 0.0
        %902 = vmatmul.mubr.f32.gmra.mrb[0].mxu0 %v295
        %v903 = vpop.f32.mrb[0].mxu0
        %v904 = vadd.f32 %v829, %v903
        %v905 = vpop.f32.mrb[0].mxu0
        %906 = vdwg.mxu0
        %s907 = scalar_lea.vmem %s4, 3
        %v908 = vld [vmem:[%s907] sm:$0x1]
        %v910 = vlaneseq
        %v911 = vshrl.u32 %v910, 7
        %v912 = vsub.s32 0, %v911
        %v913 = vrot.slane %v908, %v912
        %v915 = vadd.f32 %v899, %v913
        %v916 = vadd.f32 %v904, %v913
        %v917 = vxor.u32 %v915, 2147483648
        %v918 = vxor.u32 %v916, 2147483648
        %v919 = vmul.f32 %v917, 1.442695
        %v920 = vpow.pop %v919
        %v921 = vmul.f32 %v918, 1.442695
        %v922 = vpow.pop %v921
        %v923 = vadd.f32 %v920, 1.0
        %v924 = vadd.f32 %v922, 1.0
        %v925 = vrcp.pop %v923
        %v926 = vmul.f32 1.0, %v925
        %v927 = vrcp.pop %v924
        %v928 = vmul.f32 1.0, %v927
        %v929 = vmul.f32 %v572, %v199
        %v930 = vmul.f32 %v574, %v200
        %v931 = vmul.f32 %v390, %v745
        %v932 = vmul.f32 %v392, %v746
        %v933 = vadd.f32 %v929, %v931
        %v934 = vadd.f32 %v930, %v932
        %v935 = vtanh.pop %v933
        %v936 = vtanh.pop %v934
        %v937 = vmul.f32 %v926, %v935
        %v938 = vmul.f32 %v928, %v936
        %939 = vst.msk [vmem:[#allocation2] sm:$0xff] %vm209, %v937
        %940 = vst.msk [vmem:[#allocation2 + $0x8] sm:$0xff] %vm209, %v938
        %941 = vst.msk [vmem:[#allocation3] sm:$0xff] %vm209, %v933
        %942 = vst.msk [vmem:[#allocation3 + $0x8] sm:$0xff] %vm209, %v934
        %p943 = scmp.eq.s32.totalorder %s18, 2
        // Predicated region
        $region41: #{fwd.4} parent=35 // pred_check
          %p944 = pneg %p943
        $region42: #{fwd.4} parent=35 // pred_check_branch
          %946 = sbr.rel (%p944) target = $region44
        $region43: #{fwd.4} parent=35 // pred_region
          %v947 = vld [vmem:[%s2] sm:$0xff]
          %v948 = vld [vmem:[%s2 + $0x8] sm:$0xff]
          %v949 = vld [vmem:[%s2 + $0x10] sm:$0xff]
          %v950 = vld [vmem:[%s2 + $0x18] sm:$0xff]
          %v951 = vld [vmem:[%s4] sm:$0x1]
          %v953 = vlaneseq
          %v954 = vshrl.u32 %v953, 7
          %v955 = vsub.s32 0, %v954
          %v956 = vrot.slane %v951, %v955
          %v959 = vsel %vm209, %v937, 0
          %v962 = vsel %vm209, %v938, 0
          %964 = vmatprep.subr.mxu0 0.0
          %965 = vmatpush1.msra.mxu0 %v947
          %966 = vmatprep.subr.mxu0 0.0
          %967 = vmatpush1.msra.mxu0 %v948
          %968 = vmatprep.subr.mxu0 0.0
          %969 = vmatpush1.msra.mxu0 %v949
          %970 = vmatprep.subr.mxu0 0.0
          %971 = vmatpush1.msra.mxu0 %v950
          %972 = vmatprep.subr.mxu0 0.0
          %973 = vmatpush1.msra.mxu0 0.0
          %974 = vmatprep.subr.mxu0 0.0
          %975 = vmatpush1.msra.mxu0 0.0
          %976 = vmatprep.subr.mxu0 0.0
          %977 = vmatpush1.msra.mxu0 0.0
          %978 = vmatprep.subr.mxu0 0.0
          %979 = vmatpush1.msra.mxu0 0.0
          %980 = vmatprep.subr.mxu0 0.0
          %981 = vmatpush1.msra.mxu0 0.0
          %982 = vmatprep.subr.mxu0 0.0
          %983 = vmatpush1.msra.mxu0 0.0
          %984 = vmatprep.subr.mxu0 0.0
          %985 = vmatpush1.msra.mxu0 0.0
          %986 = vmatprep.subr.mxu0 0.0
          %987 = vmatpush1.msra.mxu0 0.0
          %988 = vmatprep.subr.mxu0 0.0
          %989 = vmatpush1.msra.mxu0 0.0
          %990 = vmatprep.subr.mxu0 0.0
          %991 = vmatpush1.msra.mxu0 0.0
          %992 = vmatprep.subr.mxu0 0.0
          %993 = vmatpush1.msra.mxu0 0.0
          %994 = vmatprep.subr.mxu0 0.0
          %995 = vmatpush1.msra.mxu0 0.0
          %996 = vmatprep.subr.mxu0 0.0
          %997 = vmatpush1.msra.mxu0 0.0
          %998 = vmatprep.subr.mxu0 0.0
          %999 = vmatpush1.msra.mxu0 0.0
          %1000 = vmatprep.subr.mxu0 0.0
          %1001 = vmatpush1.msra.mxu0 0.0
          %1002 = vmatprep.subr.mxu0 0.0
          %1003 = vmatpush1.msra.mxu0 0.0
          %1004 = vmatprep.subr.mxu0 0.0
          %1005 = vmatpush1.msra.mxu0 0.0
          %1006 = vmatprep.subr.mxu0 0.0
          %1007 = vmatpush1.msra.mxu0 0.0
          %1008 = vmatprep.subr.mxu0 0.0
          %1009 = vmatpush1.msra.mxu0 0.0
          %1010 = vmatprep.subr.mxu0 0.0
          %1011 = vmatpush1.msra.mxu0 0.0
          %1012 = vmatprep.subr.mxu0 0.0
          %1013 = vmatpush1.msra.mxu0 0.0
          %1014 = vmatprep.subr.mxu0 0.0
          %1015 = vmatpush1.msra.mxu0 0.0
          %1016 = vmatprep.subr.mxu0 0.0
          %1017 = vmatpush1.msra.mxu0 0.0
          %1018 = vmatprep.subr.mxu0 0.0
          %1019 = vmatpush1.msra.mxu0 0.0
          %1020 = vmatprep.subr.mxu0 0.0
          %1021 = vmatpush1.msra.mxu0 0.0
          %1022 = vmatprep.subr.mxu0 0.0
          %1023 = vmatpush1.msra.mxu0 0.0
          %1024 = vmatprep.subr.mxu0 0.0
          %1025 = vmatpush1.msra.mxu0 0.0
          %1026 = vmatprep.subr.mxu0 0.0
          %1027 = vmatpush1.msra.mxu0 0.0
          %1028 = vmatprep.mubr.f32.mxu0 0.0
          %1029 = vmatmul.mubr.f32.gmra.mrb[0].mxu0 %v959
          %v1030 = vpop.f32.mrb[0].mxu0
          %v1031 = vadd.f32 %v956, %v1030
          %v1032 = vpop.f32.mrb[0].mxu0
          %1033 = vmatprep.mubr.f32.mxu0 0.0
          %1034 = vmatmul.mubr.f32.gmra.mrb[0].mxu0 %v962
          %v1035 = vpop.f32.mrb[0].mxu0
          %v1036 = vadd.f32 %v956, %v1035
          %v1037 = vpop.f32.mrb[0].mxu0
          %1038 = vdwg.mxu0
          %v1039 = vxor.u32 %v1031, 2147483648
          %v1040 = vxor.u32 %v1036, 2147483648
          %v1041 = vmul.f32 %v1039, 1.442695
          %v1042 = vpow.pop %v1041
          %v1043 = vmul.f32 %v1040, 1.442695
          %v1044 = vpow.pop %v1043
          %v1045 = vadd.f32 %v1042, 1.0
          %v1046 = vadd.f32 %v1044, 1.0
          %v1047 = vrcp.pop %v1045
          %v1048 = vmul.f32 1.0, %v1047
          %v1049 = vrcp.pop %v1046
          %v1050 = vmul.f32 1.0, %v1049
          %v1051 = vld [vmem:[%s393] sm:$0xff]
          %v1052 = vld [vmem:[%s393 + $0x8] sm:$0xff]
          %v1053 = vld [vmem:[%s393 + $0x10] sm:$0xff]
          %v1054 = vld [vmem:[%s393 + $0x18] sm:$0xff]
          %v1055 = vld [vmem:[%s553] sm:$0x1]
          %v1057 = vlaneseq
          %v1058 = vshrl.u32 %v1057, 7
          %v1059 = vsub.s32 0, %v1058
          %v1060 = vrot.slane %v1055, %v1059
          %1062 = vmatprep.subr.mxu0 0.0
          %1063 = vmatpush1.msra.mxu0 %v1051
          %1064 = vmatprep.subr.mxu0 0.0
          %1065 = vmatpush1.msra.mxu0 %v1052
          %1066 = vmatprep.subr.mxu0 0.0
          %1067 = vmatpush1.msra.mxu0 %v1053
          %1068 = vmatprep.subr.mxu0 0.0
          %1069 = vmatpush1.msra.mxu0 %v1054
          %1070 = vmatprep.subr.mxu0 0.0
          %1071 = vmatpush1.msra.mxu0 0.0
          %1072 = vmatprep.subr.mxu0 0.0
          %1073 = vmatpush1.msra.mxu0 0.0
          %1074 = vmatprep.subr.mxu0 0.0
          %1075 = vmatpush1.msra.mxu0 0.0
          %1076 = vmatprep.subr.mxu0 0.0
          %1077 = vmatpush1.msra.mxu0 0.0
          %1078 = vmatprep.subr.mxu0 0.0
          %1079 = vmatpush1.msra.mxu0 0.0
          %1080 = vmatprep.subr.mxu0 0.0
          %1081 = vmatpush1.msra.mxu0 0.0
          %1082 = vmatprep.subr.mxu0 0.0
          %1083 = vmatpush1.msra.mxu0 0.0
          %1084 = vmatprep.subr.mxu0 0.0
          %1085 = vmatpush1.msra.mxu0 0.0
          %1086 = vmatprep.subr.mxu0 0.0
          %1087 = vmatpush1.msra.mxu0 0.0
          %1088 = vmatprep.subr.mxu0 0.0
          %1089 = vmatpush1.msra.mxu0 0.0
          %1090 = vmatprep.subr.mxu0 0.0
          %1091 = vmatpush1.msra.mxu0 0.0
          %1092 = vmatprep.subr.mxu0 0.0
          %1093 = vmatpush1.msra.mxu0 0.0
          %1094 = vmatprep.subr.mxu0 0.0
          %1095 = vmatpush1.msra.mxu0 0.0
          %1096 = vmatprep.subr.mxu0 0.0
          %1097 = vmatpush1.msra.mxu0 0.0
          %1098 = vmatprep.subr.mxu0 0.0
          %1099 = vmatpush1.msra.mxu0 0.0
          %1100 = vmatprep.subr.mxu0 0.0
          %1101 = vmatpush1.msra.mxu0 0.0
          %1102 = vmatprep.subr.mxu0 0.0
          %1103 = vmatpush1.msra.mxu0 0.0
          %1104 = vmatprep.subr.mxu0 0.0
          %1105 = vmatpush1.msra.mxu0 0.0
          %1106 = vmatprep.subr.mxu0 0.0
          %1107 = vmatpush1.msra.mxu0 0.0
          %1108 = vmatprep.subr.mxu0 0.0
          %1109 = vmatpush1.msra.mxu0 0.0
          %1110 = vmatprep.subr.mxu0 0.0
          %1111 = vmatpush1.msra.mxu0 0.0
          %1112 = vmatprep.subr.mxu0 0.0
          %1113 = vmatpush1.msra.mxu0 0.0
          %1114 = vmatprep.subr.mxu0 0.0
          %1115 = vmatpush1.msra.mxu0 0.0
          %1116 = vmatprep.subr.mxu0 0.0
          %1117 = vmatpush1.msra.mxu0 0.0
          %1118 = vmatprep.subr.mxu0 0.0
          %1119 = vmatpush1.msra.mxu0 0.0
          %1120 = vmatprep.subr.mxu0 0.0
          %1121 = vmatpush1.msra.mxu0 0.0
          %1122 = vmatprep.subr.mxu0 0.0
          %1123 = vmatpush1.msra.mxu0 0.0
          %1124 = vmatprep.subr.mxu0 0.0
          %1125 = vmatpush1.msra.mxu0 0.0
          %1126 = vmatprep.mubr.f32.mxu0 0.0
          %1127 = vmatmul.mubr.f32.gmra.mrb[0].mxu0 %v959
          %v1128 = vpop.f32.mrb[0].mxu0
          %v1129 = vadd.f32 %v1060, %v1128
          %v1130 = vpop.f32.mrb[0].mxu0
          %1131 = vmatprep.mubr.f32.mxu0 0.0
          %1132 = vmatmul.mubr.f32.gmra.mrb[0].mxu0 %v962
          %v1133 = vpop.f32.mrb[0].mxu0
          %v1134 = vadd.f32 %v1060, %v1133
          %v1135 = vpop.f32.mrb[0].mxu0
          %1136 = vdwg.mxu0
          %v1137 = vxor.u32 %v1129, 2147483648
          %v1138 = vxor.u32 %v1134, 2147483648
          %v1139 = vmul.f32 %v1137, 1.442695
          %v1140 = vpow.pop %v1139
          %v1141 = vmul.f32 %v1138, 1.442695
          %v1142 = vpow.pop %v1141
          %v1143 = vadd.f32 %v1140, 1.0
          %v1144 = vadd.f32 %v1142, 1.0
          %v1145 = vrcp.pop %v1143
          %v1146 = vmul.f32 1.0, %v1145
          %v1147 = vrcp.pop %v1144
          %v1148 = vmul.f32 1.0, %v1147
          %v1149 = vld [vmem:[%s575] sm:$0xff]
          %v1150 = vld [vmem:[%s575 + $0x8] sm:$0xff]
          %v1151 = vld [vmem:[%s575 + $0x10] sm:$0xff]
          %v1152 = vld [vmem:[%s575 + $0x18] sm:$0xff]
          %v1153 = vld [vmem:[%s735] sm:$0x1]
          %v1155 = vlaneseq
          %v1156 = vshrl.u32 %v1155, 7
          %v1157 = vsub.s32 0, %v1156
          %v1158 = vrot.slane %v1153, %v1157
          %1160 = vmatprep.subr.mxu0 0.0
          %1161 = vmatpush1.msra.mxu0 %v1149
          %1162 = vmatprep.subr.mxu0 0.0
          %1163 = vmatpush1.msra.mxu0 %v1150
          %1164 = vmatprep.subr.mxu0 0.0
          %1165 = vmatpush1.msra.mxu0 %v1151
          %1166 = vmatprep.subr.mxu0 0.0
          %1167 = vmatpush1.msra.mxu0 %v1152
          %1168 = vmatprep.subr.mxu0 0.0
          %1169 = vmatpush1.msra.mxu0 0.0
          %1170 = vmatprep.subr.mxu0 0.0
          %1171 = vmatpush1.msra.mxu0 0.0
          %1172 = vmatprep.subr.mxu0 0.0
          %1173 = vmatpush1.msra.mxu0 0.0
          %1174 = vmatprep.subr.mxu0 0.0
          %1175 = vmatpush1.msra.mxu0 0.0
          %1176 = vmatprep.subr.mxu0 0.0
          %1177 = vmatpush1.msra.mxu0 0.0
          %1178 = vmatprep.subr.mxu0 0.0
          %1179 = vmatpush1.msra.mxu0 0.0
          %1180 = vmatprep.subr.mxu0 0.0
          %1181 = vmatpush1.msra.mxu0 0.0
          %1182 = vmatprep.subr.mxu0 0.0
          %1183 = vmatpush1.msra.mxu0 0.0
          %1184 = vmatprep.subr.mxu0 0.0
          %1185 = vmatpush1.msra.mxu0 0.0
          %1186 = vmatprep.subr.mxu0 0.0
          %1187 = vmatpush1.msra.mxu0 0.0
          %1188 = vmatprep.subr.mxu0 0.0
          %1189 = vmatpush1.msra.mxu0 0.0
          %1190 = vmatprep.subr.mxu0 0.0
          %1191 = vmatpush1.msra.mxu0 0.0
          %1192 = vmatprep.subr.mxu0 0.0
          %1193 = vmatpush1.msra.mxu0 0.0
          %1194 = vmatprep.subr.mxu0 0.0
          %1195 = vmatpush1.msra.mxu0 0.0
          %1196 = vmatprep.subr.mxu0 0.0
          %1197 = vmatpush1.msra.mxu0 0.0
          %1198 = vmatprep.subr.mxu0 0.0
          %1199 = vmatpush1.msra.mxu0 0.0
          %1200 = vmatprep.subr.mxu0 0.0
          %1201 = vmatpush1.msra.mxu0 0.0
          %1202 = vmatprep.subr.mxu0 0.0
          %1203 = vmatpush1.msra.mxu0 0.0
          %1204 = vmatprep.subr.mxu0 0.0
          %1205 = vmatpush1.msra.mxu0 0.0
          %1206 = vmatprep.subr.mxu0 0.0
          %1207 = vmatpush1.msra.mxu0 0.0
          %1208 = vmatprep.subr.mxu0 0.0
          %1209 = vmatpush1.msra.mxu0 0.0
          %1210 = vmatprep.subr.mxu0 0.0
          %1211 = vmatpush1.msra.mxu0 0.0
          %1212 = vmatprep.subr.mxu0 0.0
          %1213 = vmatpush1.msra.mxu0 0.0
          %1214 = vmatprep.subr.mxu0 0.0
          %1215 = vmatpush1.msra.mxu0 0.0
          %1216 = vmatprep.subr.mxu0 0.0
          %1217 = vmatpush1.msra.mxu0 0.0
          %1218 = vmatprep.subr.mxu0 0.0
          %1219 = vmatpush1.msra.mxu0 0.0
          %1220 = vmatprep.subr.mxu0 0.0
          %1221 = vmatpush1.msra.mxu0 0.0
          %1222 = vmatprep.subr.mxu0 0.0
          %1223 = vmatpush1.msra.mxu0 0.0
          %1224 = vmatprep.mubr.f32.mxu0 0.0
          %1225 = vmatmul.mubr.f32.gmra.mrb[0].mxu0 %v959
          %v1226 = vpop.f32.mrb[0].mxu0
          %v1227 = vadd.f32 %v1158, %v1226
          %v1228 = vpop.f32.mrb[0].mxu0
          %1229 = vmatprep.mubr.f32.mxu0 0.0
          %1230 = vmatmul.mubr.f32.gmra.mrb[0].mxu0 %v962
          %v1231 = vpop.f32.mrb[0].mxu0
          %v1232 = vadd.f32 %v1158, %v1231
          %v1233 = vpop.f32.mrb[0].mxu0
          %1234 = vdwg.mxu0
          %v1235 = vtanh.pop %v1227
          %v1236 = vtanh.pop %v1232
          %v1237 = vld [vmem:[%s747] sm:$0xff]
          %v1238 = vld [vmem:[%s747 + $0x8] sm:$0xff]
          %v1239 = vld [vmem:[%s747 + $0x10] sm:$0xff]
          %v1240 = vld [vmem:[%s747 + $0x18] sm:$0xff]
          %v1241 = vld [vmem:[%s907] sm:$0x1]
          %v1243 = vlaneseq
          %v1244 = vshrl.u32 %v1243, 7
          %v1245 = vsub.s32 0, %v1244
          %v1246 = vrot.slane %v1241, %v1245
          %1248 = vmatprep.subr.mxu0 0.0
          %1249 = vmatpush1.msra.mxu0 %v1237
          %1250 = vmatprep.subr.mxu0 0.0
          %1251 = vmatpush1.msra.mxu0 %v1238
          %1252 = vmatprep.subr.mxu0 0.0
          %1253 = vmatpush1.msra.mxu0 %v1239
          %1254 = vmatprep.subr.mxu0 0.0
          %1255 = vmatpush1.msra.mxu0 %v1240
          %1256 = vmatprep.subr.mxu0 0.0
          %1257 = vmatpush1.msra.mxu0 0.0
          %1258 = vmatprep.subr.mxu0 0.0
          %1259 = vmatpush1.msra.mxu0 0.0
          %1260 = vmatprep.subr.mxu0 0.0
          %1261 = vmatpush1.msra.mxu0 0.0
          %1262 = vmatprep.subr.mxu0 0.0
          %1263 = vmatpush1.msra.mxu0 0.0
          %1264 = vmatprep.subr.mxu0 0.0
          %1265 = vmatpush1.msra.mxu0 0.0
          %1266 = vmatprep.subr.mxu0 0.0
          %1267 = vmatpush1.msra.mxu0 0.0
          %1268 = vmatprep.subr.mxu0 0.0
          %1269 = vmatpush1.msra.mxu0 0.0
          %1270 = vmatprep.subr.mxu0 0.0
          %1271 = vmatpush1.msra.mxu0 0.0
          %1272 = vmatprep.subr.mxu0 0.0
          %1273 = vmatpush1.msra.mxu0 0.0
          %1274 = vmatprep.subr.mxu0 0.0
          %1275 = vmatpush1.msra.mxu0 0.0
          %1276 = vmatprep.subr.mxu0 0.0
          %1277 = vmatpush1.msra.mxu0 0.0
          %1278 = vmatprep.subr.mxu0 0.0
          %1279 = vmatpush1.msra.mxu0 0.0
          %1280 = vmatprep.subr.mxu0 0.0
          %1281 = vmatpush1.msra.mxu0 0.0
          %1282 = vmatprep.subr.mxu0 0.0
          %1283 = vmatpush1.msra.mxu0 0.0
          %1284 = vmatprep.subr.mxu0 0.0
          %1285 = vmatpush1.msra.mxu0 0.0
          %1286 = vmatprep.subr.mxu0 0.0
          %1287 = vmatpush1.msra.mxu0 0.0
          %1288 = vmatprep.subr.mxu0 0.0
          %1289 = vmatpush1.msra.mxu0 0.0
          %1290 = vmatprep.subr.mxu0 0.0
          %1291 = vmatpush1.msra.mxu0 0.0
          %1292 = vmatprep.subr.mxu0 0.0
          %1293 = vmatpush1.msra.mxu0 0.0
          %1294 = vmatprep.subr.mxu0 0.0
          %1295 = vmatpush1.msra.mxu0 0.0
          %1296 = vmatprep.subr.mxu0 0.0
          %1297 = vmatpush1.msra.mxu0 0.0
          %1298 = vmatprep.subr.mxu0 0.0
          %1299 = vmatpush1.msra.mxu0 0.0
          %1300 = vmatprep.subr.mxu0 0.0
          %1301 = vmatpush1.msra.mxu0 0.0
          %1302 = vmatprep.subr.mxu0 0.0
          %1303 = vmatpush1.msra.mxu0 0.0
          %1304 = vmatprep.subr.mxu0 0.0
          %1305 = vmatpush1.msra.mxu0 0.0
          %1306 = vmatprep.subr.mxu0 0.0
          %1307 = vmatpush1.msra.mxu0 0.0
          %1308 = vmatprep.subr.mxu0 0.0
          %1309 = vmatpush1.msra.mxu0 0.0
          %1310 = vmatprep.subr.mxu0 0.0
          %1311 = vmatpush1.msra.mxu0 0.0
          %1312 = vmatprep.mubr.f32.mxu0 0.0
          %1313 = vmatmul.mubr.f32.gmra.mrb[0].mxu0 %v959
          %v1314 = vpop.f32.mrb[0].mxu0
          %v1315 = vadd.f32 %v1246, %v1314
          %v1316 = vpop.f32.mrb[0].mxu0
          %1317 = vmatprep.mubr.f32.mxu0 0.0
          %1318 = vmatmul.mubr.f32.gmra.mrb[0].mxu0 %v962
          %v1319 = vpop.f32.mrb[0].mxu0
          %v1320 = vadd.f32 %v1246, %v1319
          %v1321 = vpop.f32.mrb[0].mxu0
          %1322 = vdwg.mxu0
          %v1323 = vxor.u32 %v1315, 2147483648
          %v1324 = vxor.u32 %v1320, 2147483648
          %v1325 = vmul.f32 %v1323, 1.442695
          %v1326 = vpow.pop %v1325
          %v1327 = vmul.f32 %v1324, 1.442695
          %v1328 = vpow.pop %v1327
          %v1329 = vadd.f32 %v1326, 1.0
          %v1330 = vadd.f32 %v1328, 1.0
          %v1331 = vrcp.pop %v1329
          %v1332 = vmul.f32 1.0, %v1331
          %v1333 = vrcp.pop %v1330
          %v1334 = vmul.f32 1.0, %v1333
          %v1335 = vmul.f32 %v1146, %v933
          %v1336 = vmul.f32 %v1148, %v934
          %v1337 = vmul.f32 %v1048, %v1235
          %v1338 = vmul.f32 %v1050, %v1236
          %v1339 = vadd.f32 %v1335, %v1337
          %v1340 = vadd.f32 %v1336, %v1338
          %v1341 = vtanh.pop %v1339
          %v1342 = vtanh.pop %v1340
          %v1343 = vmul.f32 %v1332, %v1341
          %v1344 = vmul.f32 %v1334, %v1342
          %1345 = vst.msk [vmem:[#allocation4] sm:$0xff] %vm209, %v1343
          %1346 = vst.msk [vmem:[#allocation4 + $0x8] sm:$0xff] %vm209, %v1344
        $region44: #{fwd.4} parent=35 // pred_fallthru
          _
        // Predicated region
        $region45: #{fwd.4} parent=35 // pred_check
          %p1347 = pneg %p120
        $region46: #{fwd.4} parent=35 // pred_check_branch
          %1349 = sbr.rel (%p1347) target = $region48
        $region47: #{fwd.4} parent=35 // pred_region
          %s1351 = ssub.s32 256, 256
          %1352 = vsyncadd [#allocation5], %s1351
          %s1353 = sshll.u32 [#allocation4], 4
          %s1354 = int_to_ptr.vmem [resolvable:$true] %s1353
          %1359 = dma.vmem_to_hbm [thread:$0]  %s1354, 256, %s6, [#allocation5], 128, 128, 8
        $region48: #{fwd.4} parent=35 // pred_fallthru
          _
        // Predicated region
        $region49: #{fwd.4} parent=35 // pred_check
          %p1360 = pneg %p120
        $region50: #{fwd.4} parent=35 // pred_check_branch
          %1362 = sbr.rel (%p1360) target = $region52
        $region51: #{fwd.4} parent=35 // pred_region
          %1363 = dma.done [#allocation5], 256
        $region52: #{fwd.4} parent=35 // pred_fallthru
          _
      $region36: #{fwd.4} parent=5 // pred_fallthru
        _
      %p1364 = scmp.le.s32.totalorder 2, %s13
      // Predicated region
      $region53: #{fwd.4} parent=5 // pred_check
        %p1365 = pneg %p1364
      $region54: #{fwd.4} parent=5 // pred_check_branch
        %1367 = sbr.rel (%p1365) target = $region56
      $region55: #{fwd.4} parent=5 // pred_region
        %s1368 = ssub.s32 %s13, 2
      $region56: #{fwd.4} parent=5 // pred_fallthru
        _
    $region6: #{fwd.4} parent=1 // loop_footer
      %s17 = sadd.s32 1, %s13
    $region7: #{fwd.4} parent=1 // loop_footer_branch
      %12 = sbr.rel target = $region3
    $region8: #{fwd.4} parent=1 // loop_exit
      _
    %1369 = vsyncpa [#allocation5], 1
    %s1370 = scalar_lea.sflag [#allocation5], 1
    %1371 = vsyncpa %s1370, 1

// kernel: fwd.3
$region0: #{fwd.3}
  #allocation0 [shape = 'u32[]', space=smem, size = 0x4, offset = 0x4, fixed_abs, tag = 'smem constant byte address 0x4 - core index']
  #allocation1 [shape = 'u32[144,128]{1,0:T(1,128)}', space=vmem, size = 0x12000, scoped, tag = 'internal scratch']
  #allocation2 [shape = 'f32[2,32,32]{2,1,0:T(8,128)}', space=vmem, size = 0x8000, scoped, tag = 'scratch operand']
  #allocation3 [shape = 'f32[2,32,32]{2,1,0:T(8,128)}', space=vmem, size = 0x8000, scoped, tag = 'scratch operand']
  #allocation4 [shape = 'f32[8,32]{1,0:T(8,128)}', space=vmem, size = 0x1000, scoped, tag = 'scratch operand']
  %s0 = inlined_call_operand.vmem [shape: f32[4,16,8], index: 0, kind: input, shape index: {}]
  %s1 = inlined_call_operand.vmem [shape: f32[4,16,16], index: 1, kind: input, shape index: {}]
  %s2 = inlined_call_operand.vmem [shape: f32[4,16,16], index: 2, kind: input, shape index: {}]
  %s3 = inlined_call_operand.vmem [shape: f32[8,32], index: 3, kind: input, shape index: {}]
  %s4 = inlined_call_operand.vmem [shape: f32[1,32], index: 4, kind: input, shape index: {}]
  %s5 = inlined_call_operand.vmem [shape: f32[2,32,32], index: 5, kind: input, shape index: {}]
  %s6 = inlined_call_operand.vmem [shape: f32[8,32,32], index: 6, kind: input, shape index: {}]
  %s7 = inlined_call_operand.vmem [shape: f32[8,1,32], index: 7, kind: input, shape index: {}]
  %s8 = inlined_call_operand.vmem [shape: f32[4,32,32], index: 8, kind: input, shape index: {}]
  %s9 = inlined_call_operand.vmem [shape: f32[4,1,32], index: 9, kind: input, shape index: {}]
  %s10 = inlined_call_operand.vmem [shape: f32[1,1,32], index: 10, kind: input, shape index: {}]
  %s11 = inlined_call_operand.vmem [shape: f32[1,1,32], index: 11, kind: input, shape index: {}]
  %s12 = inlined_call_operand.vmem [shape: f32[4,16,32], index: 12, kind: output, shape index: {}]
  %s13 = sld [smem:[#allocation0]]
  $region85: #{fwd.3} parent=0
    _
  %s15 = ssub.s32 1, %s13
  %s16 = scalar_select 0, %s15, %s13
  loop: start=0, step=1, limit=6
  $region2: #{fwd.3} parent=0 // loop_pre_header
    _
  $region3: #{fwd.3} parent=0 // loop_header
    %s18 = sphi 0, %s22
    %p19 = scmp.ge.s32.totalorder %s18, 6
    %s28 = sphi 0, %s30
    %s31 = sphi 0, %s28
    %s32 = sphi 0, %s31
    %s48 = sphi 0, %s32
    %s54 = sphi 0, %s56
    %s57 = sphi 0, %s54
    %s58 = sphi 0, %s57
    %s74 = sphi 0, %s58
    %s80 = sphi 0, %s82
    %s83 = sphi 0, %s80
    %s84 = sphi 0, %s83
    %s100 = sphi 0, %s84
    %s104 = sphi 0, %s104
    %s106 = sphi 0, %s104
    %s107 = sphi 0, %s106
    %s121 = sphi 0, %s107
    %s125 = sphi 0, %s125
    %s127 = sphi 0, %s125
    %s128 = sphi 0, %s127
    %s142 = sphi 0, %s128
    %s146 = sphi 0, %s146
    %s148 = sphi 0, %s146
    %s149 = sphi 0, %s148
    %s163 = sphi 0, %s149
    %s167 = sphi 0, %s167
    %s169 = sphi 0, %s167
    %s170 = sphi 0, %s169
    %s184 = sphi 0, %s170
    %s188 = sphi 0, %s188
    %s190 = sphi 0, %s188
    %s191 = sphi 0, %s190
    %s205 = sphi 0, %s191
    %s209 = sphi 0, %s209
    %s211 = sphi 0, %s209
    %s212 = sphi 0, %s211
    %s226 = sphi 0, %s212
    %s230 = sphi 0, %s230
    %s232 = sphi 0, %s230
    %s233 = sphi 0, %s232
    %s247 = sphi 0, %s233
    %s251 = sphi 0, %s251
    %s253 = sphi 0, %s251
    %s254 = sphi 0, %s253
    %s268 = sphi 0, %s254
    %s272 = sphi 0, %s272
    %s274 = sphi 0, %s272
    %s275 = sphi 0, %s274
    %s289 = sphi 0, %s275
    %s295 = sphi 0, %s297
    %s298 = sphi 0, %s295
    %s299 = sphi 0, %s298
    %s315 = sphi 0, %s299
  $region4: #{fwd.3} parent=0 // loop_header_branch
    %21 = sbr.rel (%p19) target = $region8
  $region5: #{fwd.3} parent=0 // loop_body
    %s23 = ssub.s32 %s18, 1
    %s24 = ssub.s32 %s18, 2
    %s25 = sadd.s32 %s18, 1
    %s26 = ssub.s32 %s18, %s25
    %p27 = scmp.eq.s32.totalorder %s26, 0
    %s29 = sadd.s32 %s28, 1
    %s30 = scalar_select %p27, %s28, %s29
    %p33 = pneg %p27
    %p34 = scmp.eq.s32.totalorder %s18, 3
    %p35 = por %p33, %p34
    %p36 = scmp.ne.s32.totalorder %s28, %s31
    %p37 = scmp.eq.s32.totalorder %s18, 0
    %p38 = por %p36, %p37
    %p39 = scmp.ne.s32.totalorder %s28, %s31
    %p40 = scmp.eq.s32.totalorder %s23, 3
    %p41 = por %p39, %p40
    %p42 = scmp.ne.s32.totalorder %s31, %s32
    %p43 = scmp.eq.s32.totalorder %s23, 0
    %p44 = por %p42, %p43
    %p45 = scmp.ne.s32.totalorder %s31, %s32
    %p46 = scmp.eq.s32.totalorder %s24, 3
    %p47 = por %p45, %p46
    %p49 = scmp.ne.s32.totalorder %s32, %s48
    %p50 = scmp.eq.s32.totalorder %s24, 0
    %p51 = por %p49, %p50
    %s52 = ssub.s32 %s18, %s25
    %p53 = scmp.eq.s32.totalorder %s52, 0
    %s55 = sadd.s32 %s54, 1
    %s56 = scalar_select %p53, %s54, %s55
    %p59 = pneg %p53
    %p60 = scmp.eq.s32.totalorder %s18, 3
    %p61 = por %p59, %p60
    %p62 = scmp.ne.s32.totalorder %s54, %s57
    %p63 = scmp.eq.s32.totalorder %s18, 0
    %p64 = por %p62, %p63
    %p65 = scmp.ne.s32.totalorder %s54, %s57
    %p66 = scmp.eq.s32.totalorder %s23, 3
    %p67 = por %p65, %p66
    %p68 = scmp.ne.s32.totalorder %s57, %s58
    %p69 = scmp.eq.s32.totalorder %s23, 0
    %p70 = por %p68, %p69
    %p71 = scmp.ne.s32.totalorder %s57, %s58
    %p72 = scmp.eq.s32.totalorder %s24, 3
    %p73 = por %p71, %p72
    %p75 = scmp.ne.s32.totalorder %s58, %s74
    %p76 = scmp.eq.s32.totalorder %s24, 0
    %p77 = por %p75, %p76
    %s78 = ssub.s32 %s18, %s25
    %p79 = scmp.eq.s32.totalorder %s78, 0
    %s81 = sadd.s32 %s80, 1
    %s82 = scalar_select %p79, %s80, %s81
    %p85 = pneg %p79
    %p86 = scmp.eq.s32.totalorder %s18, 3
    %p87 = por %p85, %p86
    %p88 = scmp.ne.s32.totalorder %s80, %s83
    %p89 = scmp.eq.s32.totalorder %s18, 0
    %p90 = por %p88, %p89
    %p91 = scmp.ne.s32.totalorder %s80, %s83
    %p92 = scmp.eq.s32.totalorder %s23, 3
    %p93 = por %p91, %p92
    %p94 = scmp.ne.s32.totalorder %s83, %s84
    %p95 = scmp.eq.s32.totalorder %s23, 0
    %p96 = por %p94, %p95
    %p97 = scmp.ne.s32.totalorder %s83, %s84
    %p98 = scmp.eq.s32.totalorder %s24, 3
    %p99 = por %p97, %p98
    %p101 = scmp.ne.s32.totalorder %s84, %s100
    %p102 = scmp.eq.s32.totalorder %s24, 0
    %p103 = por %p101, %p102
    %s105 = sadd.s32 %s104, 1
    %p108 = scmp.eq.s32.totalorder %s18, 3
    %p109 = scmp.ne.s32.totalorder %s104, %s106
    %p110 = scmp.eq.s32.totalorder %s18, 0
    %p111 = por %p109, %p110
    %p112 = scmp.ne.s32.totalorder %s104, %s106
    %p113 = scmp.eq.s32.totalorder %s23, 3
    %p114 = por %p112, %p113
    %p115 = scmp.ne.s32.totalorder %s106, %s107
    %p116 = scmp.eq.s32.totalorder %s23, 0
    %p117 = por %p115, %p116
    %p118 = scmp.ne.s32.totalorder %s106, %s107
    %p119 = scmp.eq.s32.totalorder %s24, 3
    %p120 = por %p118, %p119
    %p122 = scmp.ne.s32.totalorder %s107, %s121
    %p123 = scmp.eq.s32.totalorder %s24, 0
    %p124 = por %p122, %p123
    %s126 = sadd.s32 %s125, 1
    %p129 = scmp.eq.s32.totalorder %s18, 3
    %p130 = scmp.ne.s32.totalorder %s125, %s127
    %p131 = scmp.eq.s32.totalorder %s18, 0
    %p132 = por %p130, %p131
    %p133 = scmp.ne.s32.totalorder %s125, %s127
    %p134 = scmp.eq.s32.totalorder %s23, 3
    %p135 = por %p133, %p134
    %p136 = scmp.ne.s32.totalorder %s127, %s128
    %p137 = scmp.eq.s32.totalorder %s23, 0
    %p138 = por %p136, %p137
    %p139 = scmp.ne.s32.totalorder %s127, %s128
    %p140 = scmp.eq.s32.totalorder %s24, 3
    %p141 = por %p139, %p140
    %p143 = scmp.ne.s32.totalorder %s128, %s142
    %p144 = scmp.eq.s32.totalorder %s24, 0
    %p145 = por %p143, %p144
    %s147 = sadd.s32 %s146, 1
    %p150 = scmp.eq.s32.totalorder %s18, 3
    %p151 = scmp.ne.s32.totalorder %s146, %s148
    %p152 = scmp.eq.s32.totalorder %s18, 0
    %p153 = por %p151, %p152
    %p154 = scmp.ne.s32.totalorder %s146, %s148
    %p155 = scmp.eq.s32.totalorder %s23, 3
    %p156 = por %p154, %p155
    %p157 = scmp.ne.s32.totalorder %s148, %s149
    %p158 = scmp.eq.s32.totalorder %s23, 0
    %p159 = por %p157, %p158
    %p160 = scmp.ne.s32.totalorder %s148, %s149
    %p161 = scmp.eq.s32.totalorder %s24, 3
    %p162 = por %p160, %p161
    %p164 = scmp.ne.s32.totalorder %s149, %s163
    %p165 = scmp.eq.s32.totalorder %s24, 0
    %p166 = por %p164, %p165
    %s168 = sadd.s32 %s167, 1
    %p171 = scmp.eq.s32.totalorder %s18, 3
    %p172 = scmp.ne.s32.totalorder %s167, %s169
    %p173 = scmp.eq.s32.totalorder %s18, 0
    %p174 = por %p172, %p173
    %p175 = scmp.ne.s32.totalorder %s167, %s169
    %p176 = scmp.eq.s32.totalorder %s23, 3
    %p177 = por %p175, %p176
    %p178 = scmp.ne.s32.totalorder %s169, %s170
    %p179 = scmp.eq.s32.totalorder %s23, 0
    %p180 = por %p178, %p179
    %p181 = scmp.ne.s32.totalorder %s169, %s170
    %p182 = scmp.eq.s32.totalorder %s24, 3
    %p183 = por %p181, %p182
    %p185 = scmp.ne.s32.totalorder %s170, %s184
    %p186 = scmp.eq.s32.totalorder %s24, 0
    %p187 = por %p185, %p186
    %s189 = sadd.s32 %s188, 1
    %p192 = scmp.eq.s32.totalorder %s18, 3
    %p193 = scmp.ne.s32.totalorder %s188, %s190
    %p194 = scmp.eq.s32.totalorder %s18, 0
    %p195 = por %p193, %p194
    %p196 = scmp.ne.s32.totalorder %s188, %s190
    %p197 = scmp.eq.s32.totalorder %s23, 3
    %p198 = por %p196, %p197
    %p199 = scmp.ne.s32.totalorder %s190, %s191
    %p200 = scmp.eq.s32.totalorder %s23, 0
    %p201 = por %p199, %p200
    %p202 = scmp.ne.s32.totalorder %s190, %s191
    %p203 = scmp.eq.s32.totalorder %s24, 3
    %p204 = por %p202, %p203
    %p206 = scmp.ne.s32.totalorder %s191, %s205
    %p207 = scmp.eq.s32.totalorder %s24, 0
    %p208 = por %p206, %p207
    %s210 = sadd.s32 %s209, 1
    %p213 = scmp.eq.s32.totalorder %s18, 3
    %p214 = scmp.ne.s32.totalorder %s209, %s211
    %p215 = scmp.eq.s32.totalorder %s18, 0
    %p216 = por %p214, %p215
    %p217 = scmp.ne.s32.totalorder %s209, %s211
    %p218 = scmp.eq.s32.totalorder %s23, 3
    %p219 = por %p217, %p218
    %p220 = scmp.ne.s32.totalorder %s211, %s212
    %p221 = scmp.eq.s32.totalorder %s23, 0
    %p222 = por %p220, %p221
    %p223 = scmp.ne.s32.totalorder %s211, %s212
    %p224 = scmp.eq.s32.totalorder %s24, 3
    %p225 = por %p223, %p224
    %p227 = scmp.ne.s32.totalorder %s212, %s226
    %p228 = scmp.eq.s32.totalorder %s24, 0
    %p229 = por %p227, %p228
    %s231 = sadd.s32 %s230, 1
    %p234 = scmp.eq.s32.totalorder %s18, 3
    %p235 = scmp.ne.s32.totalorder %s230, %s232
    %p236 = scmp.eq.s32.totalorder %s18, 0
    %p237 = por %p235, %p236
    %p238 = scmp.ne.s32.totalorder %s230, %s232
    %p239 = scmp.eq.s32.totalorder %s23, 3
    %p240 = por %p238, %p239
    %p241 = scmp.ne.s32.totalorder %s232, %s233
    %p242 = scmp.eq.s32.totalorder %s23, 0
    %p243 = por %p241, %p242
    %p244 = scmp.ne.s32.totalorder %s232, %s233
    %p245 = scmp.eq.s32.totalorder %s24, 3
    %p246 = por %p244, %p245
    %p248 = scmp.ne.s32.totalorder %s233, %s247
    %p249 = scmp.eq.s32.totalorder %s24, 0
    %p250 = por %p248, %p249
    %s252 = sadd.s32 %s251, 1
    %p255 = scmp.eq.s32.totalorder %s18, 3
    %p256 = scmp.ne.s32.totalorder %s251, %s253
    %p257 = scmp.eq.s32.totalorder %s18, 0
    %p258 = por %p256, %p257
    %p259 = scmp.ne.s32.totalorder %s251, %s253
    %p260 = scmp.eq.s32.totalorder %s23, 3
    %p261 = por %p259, %p260
    %p262 = scmp.ne.s32.totalorder %s253, %s254
    %p263 = scmp.eq.s32.totalorder %s23, 0
    %p264 = por %p262, %p263
    %p265 = scmp.ne.s32.totalorder %s253, %s254
    %p266 = scmp.eq.s32.totalorder %s24, 3
    %p267 = por %p265, %p266
    %p269 = scmp.ne.s32.totalorder %s254, %s268
    %p270 = scmp.eq.s32.totalorder %s24, 0
    %p271 = por %p269, %p270
    %s273 = sadd.s32 %s272, 1
    %p276 = scmp.eq.s32.totalorder %s18, 3
    %p277 = scmp.ne.s32.totalorder %s272, %s274
    %p278 = scmp.eq.s32.totalorder %s18, 0
    %p279 = por %p277, %p278
    %p280 = scmp.ne.s32.totalorder %s272, %s274
    %p281 = scmp.eq.s32.totalorder %s23, 3
    %p282 = por %p280, %p281
    %p283 = scmp.ne.s32.totalorder %s274, %s275
    %p284 = scmp.eq.s32.totalorder %s23, 0
    %p285 = por %p283, %p284
    %p286 = scmp.ne.s32.totalorder %s274, %s275
    %p287 = scmp.eq.s32.totalorder %s24, 3
    %p288 = por %p286, %p287
    %p290 = scmp.ne.s32.totalorder %s275, %s289
    %p291 = scmp.eq.s32.totalorder %s24, 0
    %p292 = por %p290, %p291
    %s293 = ssub.s32 %s18, %s25
    %p294 = scmp.eq.s32.totalorder %s293, 0
    %s296 = sadd.s32 %s295, 1
    %s297 = scalar_select %p294, %s295, %s296
    %p300 = pneg %p294
    %p301 = scmp.eq.s32.totalorder %s18, 3
    %p302 = por %p300, %p301
    %p303 = scmp.ne.s32.totalorder %s295, %s298
    %p304 = scmp.eq.s32.totalorder %s18, 0
    %p305 = por %p303, %p304
    %p306 = scmp.ne.s32.totalorder %s295, %s298
    %p307 = scmp.eq.s32.totalorder %s23, 3
    %p308 = por %p306, %p307
    %p309 = scmp.ne.s32.totalorder %s298, %s299
    %p310 = scmp.eq.s32.totalorder %s23, 0
    %p311 = por %p309, %p310
    %p312 = scmp.ne.s32.totalorder %s298, %s299
    %p313 = scmp.eq.s32.totalorder %s24, 3
    %p314 = por %p312, %p313
    %p316 = scmp.ne.s32.totalorder %s299, %s315
    %p317 = scmp.eq.s32.totalorder %s24, 0
    %p318 = por %p316, %p317
    %p319 = scmp.le.s32.totalorder 1, %s18
    %p320 = scmp.lt.s32.totalorder %s18, 5
    %p321 = pnand %p319, %p320
    %p322 = pneg %p321
    // Predicated region
    $region9: #{fwd.3} parent=5 // pred_check
      _
    $region10: #{fwd.3} parent=5 // pred_check_branch
      %324 = sbr.rel (%p321) target = $region12
    $region11: #{fwd.3} parent=5 // pred_region
      %s325 = ssub.s32 %s18, 1
      // Predicated region
      $region13: #{fwd.3} parent=11 // pred_check
        %p326 = pneg %p117
      $region14: #{fwd.3} parent=11 // pred_check_branch
        %328 = sbr.rel (%p326) target = $region16
      $region15: #{fwd.3} parent=11 // pred_region
        _
      $region16: #{fwd.3} parent=11 // pred_fallthru
        _
      // Predicated region
      $region17: #{fwd.3} parent=11 // pred_check
        %p329 = pneg %p138
      $region18: #{fwd.3} parent=11 // pred_check_branch
        %331 = sbr.rel (%p329) target = $region20
      $region19: #{fwd.3} parent=11 // pred_region
        _
      $region20: #{fwd.3} parent=11 // pred_fallthru
        _
      // Predicated region
      $region21: #{fwd.3} parent=11 // pred_check
        %p332 = pneg %p159
      $region22: #{fwd.3} parent=11 // pred_check_branch
        %334 = sbr.rel (%p332) target = $region24
      $region23: #{fwd.3} parent=11 // pred_region
        _
      $region24: #{fwd.3} parent=11 // pred_fallthru
        _
      // Predicated region
      $region25: #{fwd.3} parent=11 // pred_check
        %p335 = pneg %p180
      $region26: #{fwd.3} parent=11 // pred_check_branch
        %337 = sbr.rel (%p335) target = $region28
      $region27: #{fwd.3} parent=11 // pred_region
        _
      $region28: #{fwd.3} parent=11 // pred_fallthru
        _
      // Predicated region
      $region29: #{fwd.3} parent=11 // pred_check
        %p338 = pneg %p201
      $region30: #{fwd.3} parent=11 // pred_check_branch
        %340 = sbr.rel (%p338) target = $region32
      $region31: #{fwd.3} parent=11 // pred_region
        _
      $region32: #{fwd.3} parent=11 // pred_fallthru
        _
      // Predicated region
      $region33: #{fwd.3} parent=11 // pred_check
        %p341 = pneg %p222
      $region34: #{fwd.3} parent=11 // pred_check_branch
        %343 = sbr.rel (%p341) target = $region36
      $region35: #{fwd.3} parent=11 // pred_region
        _
      $region36: #{fwd.3} parent=11 // pred_fallthru
        _
      // Predicated region
      $region37: #{fwd.3} parent=11 // pred_check
        %p344 = pneg %p243
      $region38: #{fwd.3} parent=11 // pred_check_branch
        %346 = sbr.rel (%p344) target = $region40
      $region39: #{fwd.3} parent=11 // pred_region
        _
      $region40: #{fwd.3} parent=11 // pred_fallthru
        _
      // Predicated region
      $region41: #{fwd.3} parent=11 // pred_check
        %p347 = pneg %p264
      $region42: #{fwd.3} parent=11 // pred_check_branch
        %349 = sbr.rel (%p347) target = $region44
      $region43: #{fwd.3} parent=11 // pred_region
        _
      $region44: #{fwd.3} parent=11 // pred_fallthru
        _
      // Predicated region
      $region45: #{fwd.3} parent=11 // pred_check
        %p350 = pneg %p285
      $region46: #{fwd.3} parent=11 // pred_check_branch
        %352 = sbr.rel (%p350) target = $region48
      $region47: #{fwd.3} parent=11 // pred_region
        _
      $region48: #{fwd.3} parent=11 // pred_fallthru
        _
    $region12: #{fwd.3} parent=5 // pred_fallthru
      _
    %p353 = scmp.lt.s32.totalorder %s18, 4
    // Predicated region
    $region49: #{fwd.3} parent=5 // pred_check
      %p354 = pneg %p353
    $region50: #{fwd.3} parent=5 // pred_check_branch
      %356 = sbr.rel (%p354) target = $region52
    $region51: #{fwd.3} parent=5 // pred_region
      // Predicated region
      $region53: #{fwd.3} parent=51 // pred_check
        %p357 = pneg %p38
      $region54: #{fwd.3} parent=51 // pred_check_branch
        %359 = sbr.rel (%p357) target = $region56
      $region55: #{fwd.3} parent=51 // pred_region
        %p360 = scmp.lt.s32.totalorder %s18, 3
        %s361 = scalar_select %p360, %s18, 3
        %s362 = smul.addr %s361, 2
        %s363 = smul.addr %s362, 8
        %s364 = scalar_lea.vmem %s0, %s363
      $region56: #{fwd.3} parent=51 // pred_fallthru
        _
      // Predicated region
      $region57: #{fwd.3} parent=51 // pred_check
        %p365 = pneg %p64
      $region58: #{fwd.3} parent=51 // pred_check_branch
        %367 = sbr.rel (%p365) target = $region60
      $region59: #{fwd.3} parent=51 // pred_region
        %p368 = scmp.lt.s32.totalorder %s18, 3
        %s369 = scalar_select %p368, %s18, 3
        %s370 = smul.addr %s369, 2
        %s371 = smul.addr %s370, 8
        %s372 = scalar_lea.vmem %s1, %s371
      $region60: #{fwd.3} parent=51 // pred_fallthru
        _
      // Predicated region
      $region61: #{fwd.3} parent=51 // pred_check
        %p373 = pneg %p90
      $region62: #{fwd.3} parent=51 // pred_check_branch
        %375 = sbr.rel (%p373) target = $region64
      $region63: #{fwd.3} parent=51 // pred_region
        %p376 = scmp.lt.s32.totalorder %s18, 3
        %s377 = scalar_select %p376, %s18, 3
        %s378 = smul.addr %s377, 2
        %s379 = smul.addr %s378, 8
        %s380 = scalar_lea.vmem %s2, %s379
      $region64: #{fwd.3} parent=51 // pred_fallthru
        _
    $region52: #{fwd.3} parent=5 // pred_fallthru
      _
    %p381 = scmp.le.s32.totalorder 1, %s18
    %p382 = scmp.lt.s32.totalorder %s18, 5
    %p383 = pnand %p381, %p382
    %p384 = pneg %p383
    // Predicated region
    $region65: #{fwd.3} parent=5 // pred_check
      _
    $region66: #{fwd.3} parent=5 // pred_check_branch
      %386 = sbr.rel (%p383) target = $region68
    $region67: #{fwd.3} parent=5 // pred_region
      %s387 = ssub.s32 %s18, 1
      %p388 = scmp.lt.s32.totalorder %s23, 3
      %s389 = scalar_select %p388, %s23, 3
      %s390 = smul.addr %s389, 2
      %s391 = smul.addr %s390, 8
      %s392 = scalar_lea.vmem %s0, %s391
      %p393 = pneg %p44
      %p394 = pneg %p41
      %p395 = scmp.lt.s32.totalorder %s23, 3
      %s396 = scalar_select %p395, %s23, 3
      %s397 = smul.addr %s396, 2
      %s398 = smul.addr %s397, 8
      %s399 = scalar_lea.vmem %s1, %s398
      %p400 = pneg %p70
      %p401 = pneg %p67
      %p402 = scmp.lt.s32.totalorder %s23, 3
      %s403 = scalar_select %p402, %s23, 3
      %s404 = smul.addr %s403, 2
      %s405 = smul.addr %s404, 8
      %s406 = scalar_lea.vmem %s2, %s405
      %p407 = pneg %p96
      %p408 = pneg %p93
      %p409 = pneg %p117
      %p410 = pneg %p114
      %p411 = pneg %p138
      %p412 = pneg %p135
      %p413 = pneg %p159
      %p414 = pneg %p156
      %p415 = pneg %p180
      %p416 = pneg %p177
      %p417 = pneg %p201
      %p418 = pneg %p198
      %p419 = pneg %p222
      %p420 = pneg %p219
      %p421 = pneg %p243
      %p422 = pneg %p240
      %p423 = pneg %p264
      %p424 = pneg %p261
      %p425 = pneg %p285
      %p426 = pneg %p282
      %p427 = pneg %p311
      %p428 = pneg %p308
      %p429 = scmp.lt.s32.totalorder %s23, 3
      %s430 = scalar_select %p429, %s23, 3
      %s431 = smul.addr %s430, 2
      %s432 = smul.addr %s431, 8
      %s433 = scalar_lea.vmem %s12, %s432
      %p434 = scmp.lt.s32.totalorder %s23, 3
      %s435 = scalar_select %p434, %s23, 3
      %s436 = smul.addr %s435, 2
      %s437 = smul.addr %s436, 8
      %s438 = scalar_lea.vmem %s0, %s437
      %p439 = scmp.lt.s32.totalorder %s23, 3
      %s440 = scalar_select %p439, %s23, 3
      %s441 = smul.addr %s440, 2
      %s442 = smul.addr %s441, 8
      %s443 = scalar_lea.vmem %s1, %s442
      %p444 = scmp.lt.s32.totalorder %s23, 3
      %s445 = scalar_select %p444, %s23, 3
      %s446 = smul.addr %s445, 2
      %s447 = smul.addr %s446, 8
      %s448 = scalar_lea.vmem %s2, %s447
      %p449 = scmp.lt.s32.totalorder %s23, 3
      %s450 = scalar_select %p449, %s23, 3
      %s451 = smul.addr %s450, 2
      %s452 = smul.addr %s451, 8
      %s453 = scalar_lea.vmem %s12, %s452
      %p454 = scmp.eq.s32.totalorder %s23, 0
      // Predicated region
      $region69: #{fwd.3} parent=67 // pred_check
        %p455 = pneg %p454
      $region70: #{fwd.3} parent=67 // pred_check_branch
        %457 = sbr.rel (%p455) target = $region72
      $region71: #{fwd.3} parent=67 // pred_region
        %v458 = vld [vmem:[%s5] sm:$0xff]
        %v459 = vld [vmem:[%s5 + $0x8] sm:$0xff]
        %v460 = vld [vmem:[%s5 + $0x10] sm:$0xff]
        %v461 = vld [vmem:[%s5 + $0x18] sm:$0xff]
        %v462 = vld [vmem:[%s5 + $0x20] sm:$0xff]
        %v463 = vld [vmem:[%s5 + $0x28] sm:$0xff]
        %v464 = vld [vmem:[%s5 + $0x30] sm:$0xff]
        %v465 = vld [vmem:[%s5 + $0x38] sm:$0xff]
        %vm466 = vcmask 261120
        %467 = vst.msk [vmem:[#allocation2] sm:$0xff] %vm466, %v458
        %468 = vst.msk [vmem:[#allocation2 + $0x8] sm:$0xff] %vm466, %v459
        %469 = vst.msk [vmem:[#allocation2 + $0x10] sm:$0xff] %vm466, %v460
        %470 = vst.msk [vmem:[#allocation2 + $0x18] sm:$0xff] %vm466, %v461
        %471 = vst.msk [vmem:[#allocation2 + $0x20] sm:$0xff] %vm466, %v462
        %472 = vst.msk [vmem:[#allocation2 + $0x28] sm:$0xff] %vm466, %v463
        %473 = vst.msk [vmem:[#allocation2 + $0x30] sm:$0xff] %vm466, %v464
        %474 = vst.msk [vmem:[#allocation2 + $0x38] sm:$0xff] %vm466, %v465
        %475 = vst.msk [vmem:[#allocation3] sm:$0xff] %vm466, 0.0
        %476 = vst.msk [vmem:[#allocation3 + $0x8] sm:$0xff] %vm466, 0.0
        %477 = vst.msk [vmem:[#allocation3 + $0x10] sm:$0xff] %vm466, 0.0
        %478 = vst.msk [vmem:[#allocation3 + $0x18] sm:$0xff] %vm466, 0.0
        %479 = vst.msk [vmem:[#allocation3 + $0x20] sm:$0xff] %vm466, 0.0
        %480 = vst.msk [vmem:[#allocation3 + $0x28] sm:$0xff] %vm466, 0.0
        %481 = vst.msk [vmem:[#allocation3 + $0x30] sm:$0xff] %vm466, 0.0
        %482 = vst.msk [vmem:[#allocation3 + $0x38] sm:$0xff] %vm466, 0.0
        %483 = vst.msk [vmem:[#allocation4] sm:$0xff] %vm466, 0.0
      $region72: #{fwd.3} parent=67 // pred_fallthru
        _
      %v484 = vld [vmem:[%s3] sm:$0xff]
      %v485 = vld [vmem:[%s8] sm:$0xff]
      %v486 = vld [vmem:[%s8 + $0x8] sm:$0xff]
      %v487 = vld [vmem:[%s8 + $0x10] sm:$0xff]
      %v488 = vld [vmem:[%s8 + $0x18] sm:$0xff]
      %v489 = vld [vmem:[%s9] sm:$0x1]
      %v491 = vlaneseq
      %v492 = vshrl.u32 %v491, 7
      %v493 = vsub.s32 0, %v492
      %v494 = vrot.slane %v489, %v493
      %vm496 = vcmask 261120
      %v498 = vsel %vm496, %v484, 0
      %500 = vmatprep.subr.mxu0 0.0
      %501 = vmatpush1.msra.mxu0 %v485
      %502 = vmatprep.subr.mxu0 0.0
      %503 = vmatpush1.msra.mxu0 %v486
      %504 = vmatprep.subr.mxu0 0.0
      %505 = vmatpush1.msra.mxu0 %v487
      %506 = vmatprep.subr.mxu0 0.0
      %507 = vmatpush1.msra.mxu0 %v488
      %508 = vmatprep.subr.mxu0 0.0
      %509 = vmatpush1.msra.mxu0 0.0
      %510 = vmatprep.subr.mxu0 0.0
      %511 = vmatpush1.msra.mxu0 0.0
      %512 = vmatprep.subr.mxu0 0.0
      %513 = vmatpush1.msra.mxu0 0.0
      %514 = vmatprep.subr.mxu0 0.0
      %515 = vmatpush1.msra.mxu0 0.0
      %516 = vmatprep.subr.mxu0 0.0
      %517 = vmatpush1.msra.mxu0 0.0
      %518 = vmatprep.subr.mxu0 0.0
      %519 = vmatpush1.msra.mxu0 0.0
      %520 = vmatprep.subr.mxu0 0.0
      %521 = vmatpush1.msra.mxu0 0.0
      %522 = vmatprep.subr.mxu0 0.0
      %523 = vmatpush1.msra.mxu0 0.0
      %524 = vmatprep.subr.mxu0 0.0
      %525 = vmatpush1.msra.mxu0 0.0
      %526 = vmatprep.subr.mxu0 0.0
      %527 = vmatpush1.msra.mxu0 0.0
      %528 = vmatprep.subr.mxu0 0.0
      %529 = vmatpush1.msra.mxu0 0.0
      %530 = vmatprep.subr.mxu0 0.0
      %531 = vmatpush1.msra.mxu0 0.0
      %532 = vmatprep.subr.mxu0 0.0
      %533 = vmatpush1.msra.mxu0 0.0
      %534 = vmatprep.subr.mxu0 0.0
      %535 = vmatpush1.msra.mxu0 0.0
      %536 = vmatprep.subr.mxu0 0.0
      %537 = vmatpush1.msra.mxu0 0.0
      %538 = vmatprep.subr.mxu0 0.0
      %539 = vmatpush1.msra.mxu0 0.0
      %540 = vmatprep.subr.mxu0 0.0
      %541 = vmatpush1.msra.mxu0 0.0
      %542 = vmatprep.subr.mxu0 0.0
      %543 = vmatpush1.msra.mxu0 0.0
      %544 = vmatprep.subr.mxu0 0.0
      %545 = vmatpush1.msra.mxu0 0.0
      %546 = vmatprep.subr.mxu0 0.0
      %547 = vmatpush1.msra.mxu0 0.0
      %548 = vmatprep.subr.mxu0 0.0
      %549 = vmatpush1.msra.mxu0 0.0
      %550 = vmatprep.subr.mxu0 0.0
      %551 = vmatpush1.msra.mxu0 0.0
      %552 = vmatprep.subr.mxu0 0.0
      %553 = vmatpush1.msra.mxu0 0.0
      %554 = vmatprep.subr.mxu0 0.0
      %555 = vmatpush1.msra.mxu0 0.0
      %556 = vmatprep.subr.mxu0 0.0
      %557 = vmatpush1.msra.mxu0 0.0
      %558 = vmatprep.subr.mxu0 0.0
      %559 = vmatpush1.msra.mxu0 0.0
      %560 = vmatprep.subr.mxu0 0.0
      %561 = vmatpush1.msra.mxu0 0.0
      %562 = vmatprep.subr.mxu0 0.0
      %563 = vmatpush1.msra.mxu0 0.0
      %564 = vmatprep.mubr.f32.mxu0 0.0
      %565 = vmatmul.mubr.f32.gmra.mrb[0].mxu0 %v498
      %v566 = vpop.f32.mrb[0].mxu0
      %v567 = vadd.f32 %v494, %v566
      %v568 = vpop.f32.mrb[0].mxu0
      %569 = vdwg.mxu0
      %v570 = vxor.u32 %v567, 2147483648
      %v571 = vmul.f32 %v570, 1.442695
      %v572 = vpow.pop %v571
      %v573 = vadd.f32 %v572, 1.0
      %v574 = vrcp.pop %v573
      %v575 = vmul.f32 1.0, %v574
      %s576 = scalar_lea.vmem %s8, 32
      %v577 = vld [vmem:[%s576] sm:$0xff]
      %v578 = vld [vmem:[%s576 + $0x8] sm:$0xff]
      %v579 = vld [vmem:[%s576 + $0x10] sm:$0xff]
      %v580 = vld [vmem:[%s576 + $0x18] sm:$0xff]
      %s581 = scalar_lea.vmem %s9, 1
      %v582 = vld [vmem:[%s581] sm:$0x1]
      %v584 = vlaneseq
      %v585 = vshrl.u32 %v584, 7
      %v586 = vsub.s32 0, %v585
      %v587 = vrot.slane %v582, %v586
      %589 = vmatprep.subr.mxu0 0.0
      %590 = vmatpush1.msra.mxu0 %v577
      %591 = vmatprep.subr.mxu0 0.0
      %592 = vmatpush1.msra.mxu0 %v578
      %593 = vmatprep.subr.mxu0 0.0
      %594 = vmatpush1.msra.mxu0 %v579
      %595 = vmatprep.subr.mxu0 0.0
      %596 = vmatpush1.msra.mxu0 %v580
      %597 = vmatprep.subr.mxu0 0.0
      %598 = vmatpush1.msra.mxu0 0.0
      %599 = vmatprep.subr.mxu0 0.0
      %600 = vmatpush1.msra.mxu0 0.0
      %601 = vmatprep.subr.mxu0 0.0
      %602 = vmatpush1.msra.mxu0 0.0
      %603 = vmatprep.subr.mxu0 0.0
      %604 = vmatpush1.msra.mxu0 0.0
      %605 = vmatprep.subr.mxu0 0.0
      %606 = vmatpush1.msra.mxu0 0.0
      %607 = vmatprep.subr.mxu0 0.0
      %608 = vmatpush1.msra.mxu0 0.0
      %609 = vmatprep.subr.mxu0 0.0
      %610 = vmatpush1.msra.mxu0 0.0
      %611 = vmatprep.subr.mxu0 0.0
      %612 = vmatpush1.msra.mxu0 0.0
      %613 = vmatprep.subr.mxu0 0.0
      %614 = vmatpush1.msra.mxu0 0.0
      %615 = vmatprep.subr.mxu0 0.0
      %616 = vmatpush1.msra.mxu0 0.0
      %617 = vmatprep.subr.mxu0 0.0
      %618 = vmatpush1.msra.mxu0 0.0
      %619 = vmatprep.subr.mxu0 0.0
      %620 = vmatpush1.msra.mxu0 0.0
      %621 = vmatprep.subr.mxu0 0.0
      %622 = vmatpush1.msra.mxu0 0.0
      %623 = vmatprep.subr.mxu0 0.0
      %624 = vmatpush1.msra.mxu0 0.0
      %625 = vmatprep.subr.mxu0 0.0
      %626 = vmatpush1.msra.mxu0 0.0
      %627 = vmatprep.subr.mxu0 0.0
      %628 = vmatpush1.msra.mxu0 0.0
      %629 = vmatprep.subr.mxu0 0.0
      %630 = vmatpush1.msra.mxu0 0.0
      %631 = vmatprep.subr.mxu0 0.0
      %632 = vmatpush1.msra.mxu0 0.0
      %633 = vmatprep.subr.mxu0 0.0
      %634 = vmatpush1.msra.mxu0 0.0
      %635 = vmatprep.subr.mxu0 0.0
      %636 = vmatpush1.msra.mxu0 0.0
      %637 = vmatprep.subr.mxu0 0.0
      %638 = vmatpush1.msra.mxu0 0.0
      %639 = vmatprep.subr.mxu0 0.0
      %640 = vmatpush1.msra.mxu0 0.0
      %641 = vmatprep.subr.mxu0 0.0
      %642 = vmatpush1.msra.mxu0 0.0
      %643 = vmatprep.subr.mxu0 0.0
      %644 = vmatpush1.msra.mxu0 0.0
      %645 = vmatprep.subr.mxu0 0.0
      %646 = vmatpush1.msra.mxu0 0.0
      %647 = vmatprep.subr.mxu0 0.0
      %648 = vmatpush1.msra.mxu0 0.0
      %649 = vmatprep.subr.mxu0 0.0
      %650 = vmatpush1.msra.mxu0 0.0
      %651 = vmatprep.subr.mxu0 0.0
      %652 = vmatpush1.msra.mxu0 0.0
      %653 = vmatprep.mubr.f32.mxu0 0.0
      %654 = vmatmul.mubr.f32.gmra.mrb[0].mxu0 %v498
      %v655 = vpop.f32.mrb[0].mxu0
      %v656 = vadd.f32 %v587, %v655
      %v657 = vpop.f32.mrb[0].mxu0
      %658 = vdwg.mxu0
      %v659 = vxor.u32 %v656, 2147483648
      %v660 = vmul.f32 %v659, 1.442695
      %v661 = vpow.pop %v660
      %v662 = vadd.f32 %v661, 1.0
      %v663 = vrcp.pop %v662
      %v664 = vmul.f32 1.0, %v663
      %s665 = scalar_lea.vmem %s8, 64
      %v666 = vld [vmem:[%s665] sm:$0xff]
      %v667 = vld [vmem:[%s665 + $0x8] sm:$0xff]
      %v668 = vld [vmem:[%s665 + $0x10] sm:$0xff]
      %v669 = vld [vmem:[%s665 + $0x18] sm:$0xff]
      %s670 = scalar_lea.vmem %s9, 2
      %v671 = vld [vmem:[%s670] sm:$0x1]
      %v673 = vlaneseq
      %v674 = vshrl.u32 %v673, 7
      %v675 = vsub.s32 0, %v674
      %v676 = vrot.slane %v671, %v675
      %678 = vmatprep.subr.mxu0 0.0
      %679 = vmatpush1.msra.mxu0 %v666
      %680 = vmatprep.subr.mxu0 0.0
      %681 = vmatpush1.msra.mxu0 %v667
      %682 = vmatprep.subr.mxu0 0.0
      %683 = vmatpush1.msra.mxu0 %v668
      %684 = vmatprep.subr.mxu0 0.0
      %685 = vmatpush1.msra.mxu0 %v669
      %686 = vmatprep.subr.mxu0 0.0
      %687 = vmatpush1.msra.mxu0 0.0
      %688 = vmatprep.subr.mxu0 0.0
      %689 = vmatpush1.msra.mxu0 0.0
      %690 = vmatprep.subr.mxu0 0.0
      %691 = vmatpush1.msra.mxu0 0.0
      %692 = vmatprep.subr.mxu0 0.0
      %693 = vmatpush1.msra.mxu0 0.0
      %694 = vmatprep.subr.mxu0 0.0
      %695 = vmatpush1.msra.mxu0 0.0
      %696 = vmatprep.subr.mxu0 0.0
      %697 = vmatpush1.msra.mxu0 0.0
      %698 = vmatprep.subr.mxu0 0.0
      %699 = vmatpush1.msra.mxu0 0.0
      %700 = vmatprep.subr.mxu0 0.0
      %701 = vmatpush1.msra.mxu0 0.0
      %702 = vmatprep.subr.mxu0 0.0
      %703 = vmatpush1.msra.mxu0 0.0
      %704 = vmatprep.subr.mxu0 0.0
      %705 = vmatpush1.msra.mxu0 0.0
      %706 = vmatprep.subr.mxu0 0.0
      %707 = vmatpush1.msra.mxu0 0.0
      %708 = vmatprep.subr.mxu0 0.0
      %709 = vmatpush1.msra.mxu0 0.0
      %710 = vmatprep.subr.mxu0 0.0
      %711 = vmatpush1.msra.mxu0 0.0
      %712 = vmatprep.subr.mxu0 0.0
      %713 = vmatpush1.msra.mxu0 0.0
      %714 = vmatprep.subr.mxu0 0.0
      %715 = vmatpush1.msra.mxu0 0.0
      %716 = vmatprep.subr.mxu0 0.0
      %717 = vmatpush1.msra.mxu0 0.0
      %718 = vmatprep.subr.mxu0 0.0
      %719 = vmatpush1.msra.mxu0 0.0
      %720 = vmatprep.subr.mxu0 0.0
      %721 = vmatpush1.msra.mxu0 0.0
      %722 = vmatprep.subr.mxu0 0.0
      %723 = vmatpush1.msra.mxu0 0.0
      %724 = vmatprep.subr.mxu0 0.0
      %725 = vmatpush1.msra.mxu0 0.0
      %726 = vmatprep.subr.mxu0 0.0
      %727 = vmatpush1.msra.mxu0 0.0
      %728 = vmatprep.subr.mxu0 0.0
      %729 = vmatpush1.msra.mxu0 0.0
      %730 = vmatprep.subr.mxu0 0.0
      %731 = vmatpush1.msra.mxu0 0.0
      %732 = vmatprep.subr.mxu0 0.0
      %733 = vmatpush1.msra.mxu0 0.0
      %734 = vmatprep.subr.mxu0 0.0
      %735 = vmatpush1.msra.mxu0 0.0
      %736 = vmatprep.subr.mxu0 0.0
      %737 = vmatpush1.msra.mxu0 0.0
      %738 = vmatprep.subr.mxu0 0.0
      %739 = vmatpush1.msra.mxu0 0.0
      %740 = vmatprep.subr.mxu0 0.0
      %741 = vmatpush1.msra.mxu0 0.0
      %742 = vmatprep.mubr.f32.mxu0 0.0
      %743 = vmatmul.mubr.f32.gmra.mrb[0].mxu0 %v498
      %v744 = vpop.f32.mrb[0].mxu0
      %v745 = vadd.f32 %v676, %v744
      %v746 = vpop.f32.mrb[0].mxu0
      %747 = vdwg.mxu0
      %v748 = vtanh.pop %v745
      %v749 = vld [vmem:[#allocation4] sm:$0xff]
      %v750 = vmul.f32 %v664, %v749
      %v751 = vmul.f32 %v575, %v748
      %v752 = vadd.f32 %v750, %v751
      %753 = vst.msk [vmem:[#allocation4] sm:$0xff] %vm496, %v752
      %v754 = vld [vmem:[%s443] sm:$0xff]
      %v755 = vld [vmem:[%s443 + $0x8] sm:$0xff]
      %v756 = vld [vmem:[%s438] sm:$0xff]
      %v757 = vld [vmem:[%s438 + $0x8] sm:$0xff]
      %vm758 = vcmask 130048
      %v760 = vsel %vm758, %v754, 0
      %v763 = vsel %vm758, %v755, 0
      %765 = vmatprep.subr.mxu0 0.0
      %766 = vmatpush1.msra.mxu0 %v756
      %767 = vmatprep.subr.mxu0 0.0
      %768 = vmatpush1.msra.mxu0 %v757
      %769 = vmatprep.subr.mxu0 0.0
      %770 = vmatpush1.msra.mxu0 0.0
      %771 = vmatprep.subr.mxu0 0.0
      %772 = vmatpush1.msra.mxu0 0.0
      %773 = vmatprep.subr.mxu0 0.0
      %774 = vmatpush1.msra.mxu0 0.0
      %775 = vmatprep.subr.mxu0 0.0
      %776 = vmatpush1.msra.mxu0 0.0
      %777 = vmatprep.subr.mxu0 0.0
      %778 = vmatpush1.msra.mxu0 0.0
      %779 = vmatprep.subr.mxu0 0.0
      %780 = vmatpush1.msra.mxu0 0.0
      %781 = vmatprep.subr.mxu0 0.0
      %782 = vmatpush1.msra.mxu0 0.0
      %783 = vmatprep.subr.mxu0 0.0
      %784 = vmatpush1.msra.mxu0 0.0
      %785 = vmatprep.subr.mxu0 0.0
      %786 = vmatpush1.msra.mxu0 0.0
      %787 = vmatprep.subr.mxu0 0.0
      %788 = vmatpush1.msra.mxu0 0.0
      %789 = vmatprep.subr.mxu0 0.0
      %790 = vmatpush1.msra.mxu0 0.0
      %791 = vmatprep.subr.mxu0 0.0
      %792 = vmatpush1.msra.mxu0 0.0
      %793 = vmatprep.subr.mxu0 0.0
      %794 = vmatpush1.msra.mxu0 0.0
      %795 = vmatprep.subr.mxu0 0.0
      %796 = vmatpush1.msra.mxu0 0.0
      %797 = vmatprep.subr.mxu0 0.0
      %798 = vmatpush1.msra.mxu0 0.0
      %799 = vmatprep.subr.mxu0 0.0
      %800 = vmatpush1.msra.mxu0 0.0
      %801 = vmatprep.subr.mxu0 0.0
      %802 = vmatpush1.msra.mxu0 0.0
      %803 = vmatprep.subr.mxu0 0.0
      %804 = vmatpush1.msra.mxu0 0.0
      %805 = vmatprep.subr.mxu0 0.0
      %806 = vmatpush1.msra.mxu0 0.0
      %807 = vmatprep.subr.mxu0 0.0
      %808 = vmatpush1.msra.mxu0 0.0
      %809 = vmatprep.subr.mxu0 0.0
      %810 = vmatpush1.msra.mxu0 0.0
      %811 = vmatprep.subr.mxu0 0.0
      %812 = vmatpush1.msra.mxu0 0.0
      %813 = vmatprep.subr.mxu0 0.0
      %814 = vmatpush1.msra.mxu0 0.0
      %815 = vmatprep.subr.mxu0 0.0
      %816 = vmatpush1.msra.mxu0 0.0
      %817 = vmatprep.subr.mxu0 0.0
      %818 = vmatpush1.msra.mxu0 0.0
      %819 = vmatprep.subr.mxu0 0.0
      %820 = vmatpush1.msra.mxu0 0.0
      %821 = vmatprep.subr.mxu0 0.0
      %822 = vmatpush1.msra.mxu0 0.0
      %823 = vmatprep.subr.mxu0 0.0
      %824 = vmatpush1.msra.mxu0 0.0
      %825 = vmatprep.subr.mxu0 0.0
      %826 = vmatpush1.msra.mxu0 0.0
      %827 = vmatprep.subr.mxu0 0.0
      %828 = vmatpush1.msra.mxu0 0.0
      %829 = vmatprep.mubr.f32.mxu0 0.0
      %830 = vmatmul.mubr.f32.gmra.mrb[0].mxu0 %v760
      %v831 = vpop.f32.mrb[0].mxu0
      %v832 = vadd.f32 0.0, %v831
      %v833 = vpop.f32.mrb[0].mxu0
      %834 = vmatprep.mubr.f32.mxu0 0.0
      %835 = vmatmul.mubr.f32.gmra.mrb[0].mxu0 %v763
      %v836 = vpop.f32.mrb[0].mxu0
      %v837 = vadd.f32 0.0, %v836
      %v838 = vpop.f32.mrb[0].mxu0
      %839 = vdwg.mxu0
      %v840 = vld [vmem:[%s4] sm:$0x1]
      %v842 = vlaneseq
      %v843 = vshrl.u32 %v842, 7
      %v844 = vsub.s32 0, %v843
      %v845 = vrot.slane %v840, %v844
      %vm847 = vcmask 64512
      %v849 = vsel %vm847, %v832, 0
      %v852 = vsel %vm847, %v837, 0
      %854 = vmatprep.subr.mxu0 0.0
      %855 = vmatpush1.msra.mxu0 %v484
      %856 = vmatprep.subr.mxu0 0.0
      %857 = vmatpush1.msra.mxu0 0.0
      %858 = vmatprep.subr.mxu0 0.0
      %859 = vmatpush1.msra.mxu0 0.0
      %860 = vmatprep.subr.mxu0 0.0
      %861 = vmatpush1.msra.mxu0 0.0
      %862 = vmatprep.subr.mxu0 0.0
      %863 = vmatpush1.msra.mxu0 0.0
      %864 = vmatprep.subr.mxu0 0.0
      %865 = vmatpush1.msra.mxu0 0.0
      %866 = vmatprep.subr.mxu0 0.0
      %867 = vmatpush1.msra.mxu0 0.0
      %868 = vmatprep.subr.mxu0 0.0
      %869 = vmatpush1.msra.mxu0 0.0
      %870 = vmatprep.subr.mxu0 0.0
      %871 = vmatpush1.msra.mxu0 0.0
      %872 = vmatprep.subr.mxu0 0.0
      %873 = vmatpush1.msra.mxu0 0.0
      %874 = vmatprep.subr.mxu0 0.0
      %875 = vmatpush1.msra.mxu0 0.0
      %876 = vmatprep.subr.mxu0 0.0
      %877 = vmatpush1.msra.mxu0 0.0
      %878 = vmatprep.subr.mxu0 0.0
      %879 = vmatpush1.msra.mxu0 0.0
      %880 = vmatprep.subr.mxu0 0.0
      %881 = vmatpush1.msra.mxu0 0.0
      %882 = vmatprep.subr.mxu0 0.0
      %883 = vmatpush1.msra.mxu0 0.0
      %884 = vmatprep.subr.mxu0 0.0
      %885 = vmatpush1.msra.mxu0 0.0
      %886 = vmatprep.subr.mxu0 0.0
      %887 = vmatpush1.msra.mxu0 0.0
      %888 = vmatprep.subr.mxu0 0.0
      %889 = vmatpush1.msra.mxu0 0.0
      %890 = vmatprep.subr.mxu0 0.0
      %891 = vmatpush1.msra.mxu0 0.0
      %892 = vmatprep.subr.mxu0 0.0
      %893 = vmatpush1.msra.mxu0 0.0
      %894 = vmatprep.subr.mxu0 0.0
      %895 = vmatpush1.msra.mxu0 0.0
      %896 = vmatprep.subr.mxu0 0.0
      %897 = vmatpush1.msra.mxu0 0.0
      %898 = vmatprep.subr.mxu0 0.0
      %899 = vmatpush1.msra.mxu0 0.0
      %900 = vmatprep.subr.mxu0 0.0
      %901 = vmatpush1.msra.mxu0 0.0
      %902 = vmatprep.subr.mxu0 0.0
      %903 = vmatpush1.msra.mxu0 0.0
      %904 = vmatprep.subr.mxu0 0.0
      %905 = vmatpush1.msra.mxu0 0.0
      %906 = vmatprep.subr.mxu0 0.0
      %907 = vmatpush1.msra.mxu0 0.0
      %908 = vmatprep.subr.mxu0 0.0
      %909 = vmatpush1.msra.mxu0 0.0
      %910 = vmatprep.subr.mxu0 0.0
      %911 = vmatpush1.msra.mxu0 0.0
      %912 = vmatprep.subr.mxu0 0.0
      %913 = vmatpush1.msra.mxu0 0.0
      %914 = vmatprep.subr.mxu0 0.0
      %915 = vmatpush1.msra.mxu0 0.0
      %916 = vmatprep.subr.mxu0 0.0
      %917 = vmatpush1.msra.mxu0 0.0
      %918 = vmatprep.mubr.f32.mxu0 0.0
      %919 = vmatmul.mubr.f32.gmra.mrb[0].mxu0 %v849
      %v920 = vpop.f32.mrb[0].mxu0
      %v921 = vadd.f32 %v845, %v920
      %v922 = vpop.f32.mrb[0].mxu0
      %923 = vmatprep.mubr.f32.mxu0 0.0
      %924 = vmatmul.mubr.f32.gmra.mrb[0].mxu0 %v852
      %v925 = vpop.f32.mrb[0].mxu0
      %v926 = vadd.f32 %v845, %v925
      %v927 = vpop.f32.mrb[0].mxu0
      %928 = vdwg.mxu0
      %v929 = vld [vmem:[#allocation2] sm:$0xff]
      %v930 = vld [vmem:[#allocation2 + $0x8] sm:$0xff]
      %v931 = vld [vmem:[#allocation2 + $0x10] sm:$0xff]
      %v932 = vld [vmem:[#allocation2 + $0x18] sm:$0xff]
      %v933 = vld [vmem:[#allocation3] sm:$0xff]
      %v934 = vld [vmem:[#allocation3 + $0x8] sm:$0xff]
      %v935 = vld [vmem:[#allocation3 + $0x10] sm:$0xff]
      %v936 = vld [vmem:[#allocation3 + $0x18] sm:$0xff]
      %v937 = vld [vmem:[%s6] sm:$0xff]
      %v938 = vld [vmem:[%s6 + $0x8] sm:$0xff]
      %v939 = vld [vmem:[%s6 + $0x10] sm:$0xff]
      %v940 = vld [vmem:[%s6 + $0x18] sm:$0xff]
      %v941 = vld [vmem:[%s7] sm:$0x1]
      %v943 = vlaneseq
      %v944 = vshrl.u32 %v943, 7
      %v945 = vsub.s32 0, %v944
      %v946 = vrot.slane %v941, %v945
      %v949 = vsel %vm496, %v929, 0
      %v952 = vsel %vm496, %v930, 0
      %v955 = vsel %vm496, %v931, 0
      %v958 = vsel %vm496, %v932, 0
      %960 = vmatprep.subr.mxu0 0.0
      %961 = vmatpush1.msra.mxu0 %v937
      %962 = vmatprep.subr.mxu0 0.0
      %963 = vmatpush1.msra.mxu0 %v938
      %964 = vmatprep.subr.mxu0 0.0
      %965 = vmatpush1.msra.mxu0 %v939
      %966 = vmatprep.subr.mxu0 0.0
      %967 = vmatpush1.msra.mxu0 %v940
      %968 = vmatprep.subr.mxu0 0.0
      %969 = vmatpush1.msra.mxu0 0.0
      %970 = vmatprep.subr.mxu0 0.0
      %971 = vmatpush1.msra.mxu0 0.0
      %972 = vmatprep.subr.mxu0 0.0
      %973 = vmatpush1.msra.mxu0 0.0
      %974 = vmatprep.subr.mxu0 0.0
      %975 = vmatpush1.msra.mxu0 0.0
      %976 = vmatprep.subr.mxu0 0.0
      %977 = vmatpush1.msra.mxu0 0.0
      %978 = vmatprep.subr.mxu0 0.0
      %979 = vmatpush1.msra.mxu0 0.0
      %980 = vmatprep.subr.mxu0 0.0
      %981 = vmatpush1.msra.mxu0 0.0
      %982 = vmatprep.subr.mxu0 0.0
      %983 = vmatpush1.msra.mxu0 0.0
      %984 = vmatprep.subr.mxu0 0.0
      %985 = vmatpush1.msra.mxu0 0.0
      %986 = vmatprep.subr.mxu0 0.0
      %987 = vmatpush1.msra.mxu0 0.0
      %988 = vmatprep.subr.mxu0 0.0
      %989 = vmatpush1.msra.mxu0 0.0
      %990 = vmatprep.subr.mxu0 0.0
      %991 = vmatpush1.msra.mxu0 0.0
      %992 = vmatprep.subr.mxu0 0.0
      %993 = vmatpush1.msra.mxu0 0.0
      %994 = vmatprep.subr.mxu0 0.0
      %995 = vmatpush1.msra.mxu0 0.0
      %996 = vmatprep.subr.mxu0 0.0
      %997 = vmatpush1.msra.mxu0 0.0
      %998 = vmatprep.subr.mxu0 0.0
      %999 = vmatpush1.msra.mxu0 0.0
      %1000 = vmatprep.subr.mxu0 0.0
      %1001 = vmatpush1.msra.mxu0 0.0
      %1002 = vmatprep.subr.mxu0 0.0
      %1003 = vmatpush1.msra.mxu0 0.0
      %1004 = vmatprep.subr.mxu0 0.0
      %1005 = vmatpush1.msra.mxu0 0.0
      %1006 = vmatprep.subr.mxu0 0.0
      %1007 = vmatpush1.msra.mxu0 0.0
      %1008 = vmatprep.subr.mxu0 0.0
      %1009 = vmatpush1.msra.mxu0 0.0
      %1010 = vmatprep.subr.mxu0 0.0
      %1011 = vmatpush1.msra.mxu0 0.0
      %1012 = vmatprep.subr.mxu0 0.0
      %1013 = vmatpush1.msra.mxu0 0.0
      %1014 = vmatprep.subr.mxu0 0.0
      %1015 = vmatpush1.msra.mxu0 0.0
      %1016 = vmatprep.subr.mxu0 0.0
      %1017 = vmatpush1.msra.mxu0 0.0
      %1018 = vmatprep.subr.mxu0 0.0
      %1019 = vmatpush1.msra.mxu0 0.0
      %1020 = vmatprep.subr.mxu0 0.0
      %1021 = vmatpush1.msra.mxu0 0.0
      %1022 = vmatprep.subr.mxu0 0.0
      %1023 = vmatpush1.msra.mxu0 0.0
      %1024 = vmatprep.mubr.f32.mxu0 0.0
      %1025 = vmatmul.mubr.f32.gmra.mrb[0].mxu0 %v949
      %v1026 = vpop.f32.mrb[0].mxu0
      %v1027 = vadd.f32 %v946, %v1026
      %v1028 = vpop.f32.mrb[0].mxu0
      %1029 = vmatprep.mubr.f32.mxu0 0.0
      %1030 = vmatmul.mubr.f32.gmra.mrb[0].mxu0 %v952
      %v1031 = vpop.f32.mrb[0].mxu0
      %v1032 = vadd.f32 %v946, %v1031
      %v1033 = vpop.f32.mrb[0].mxu0
      %1034 = vmatprep.mubr.f32.mxu0 0.0
      %1035 = vmatmul.mubr.f32.gmra.mrb[0].mxu0 %v955
      %v1036 = vpop.f32.mrb[0].mxu0
      %v1037 = vadd.f32 %v946, %v1036
      %v1038 = vpop.f32.mrb[0].mxu0
      %1039 = vmatprep.mubr.f32.mxu0 0.0
      %1040 = vmatmul.mubr.f32.gmra.mrb[0].mxu0 %v958
      %v1041 = vpop.f32.mrb[0].mxu0
      %v1042 = vadd.f32 %v946, %v1041
      %v1043 = vpop.f32.mrb[0].mxu0
      %1044 = vdwg.mxu0
      %v1045 = vxor.u32 %v1027, 2147483648
      %v1046 = vxor.u32 %v1032, 2147483648
      %v1047 = vxor.u32 %v1037, 2147483648
      %v1048 = vxor.u32 %v1042, 2147483648
      %v1049 = vmul.f32 %v1045, 1.442695
      %v1050 = vpow.pop %v1049
      %v1051 = vmul.f32 %v1046, 1.442695
      %v1052 = vpow.pop %v1051
      %v1053 = vmul.f32 %v1047, 1.442695
      %v1054 = vpow.pop %v1053
      %v1055 = vmul.f32 %v1048, 1.442695
      %v1056 = vpow.pop %v1055
      %v1057 = vadd.f32 %v1050, 1.0
      %v1058 = vadd.f32 %v1052, 1.0
      %v1059 = vadd.f32 %v1054, 1.0
      %v1060 = vadd.f32 %v1056, 1.0
      %v1061 = vrcp.pop %v1057
      %v1062 = vmul.f32 1.0, %v1061
      %v1063 = vrcp.pop %v1058
      %v1064 = vmul.f32 1.0, %v1063
      %v1065 = vrcp.pop %v1059
      %v1066 = vmul.f32 1.0, %v1065
      %v1067 = vrcp.pop %v1060
      %v1068 = vmul.f32 1.0, %v1067
      %s1069 = scalar_lea.vmem %s6, 32
      %v1070 = vld [vmem:[%s1069] sm:$0xff]
      %v1071 = vld [vmem:[%s1069 + $0x8] sm:$0xff]
      %v1072 = vld [vmem:[%s1069 + $0x10] sm:$0xff]
      %v1073 = vld [vmem:[%s1069 + $0x18] sm:$0xff]
      %s1074 = scalar_lea.vmem %s7, 1
      %v1075 = vld [vmem:[%s1074] sm:$0x1]
      %v1077 = vlaneseq
      %v1078 = vshrl.u32 %v1077, 7
      %v1079 = vsub.s32 0, %v1078
      %v1080 = vrot.slane %v1075, %v1079
      %1082 = vmatprep.subr.mxu0 0.0
      %1083 = vmatpush1.msra.mxu0 %v1070
      %1084 = vmatprep.subr.mxu0 0.0
      %1085 = vmatpush1.msra.mxu0 %v1071
      %1086 = vmatprep.subr.mxu0 0.0
      %1087 = vmatpush1.msra.mxu0 %v1072
      %1088 = vmatprep.subr.mxu0 0.0
      %1089 = vmatpush1.msra.mxu0 %v1073
      %1090 = vmatprep.subr.mxu0 0.0
      %1091 = vmatpush1.msra.mxu0 0.0
      %1092 = vmatprep.subr.mxu0 0.0
      %1093 = vmatpush1.msra.mxu0 0.0
      %1094 = vmatprep.subr.mxu0 0.0
      %1095 = vmatpush1.msra.mxu0 0.0
      %1096 = vmatprep.subr.mxu0 0.0
      %1097 = vmatpush1.msra.mxu0 0.0
      %1098 = vmatprep.subr.mxu0 0.0
      %1099 = vmatpush1.msra.mxu0 0.0
      %1100 = vmatprep.subr.mxu0 0.0
      %1101 = vmatpush1.msra.mxu0 0.0
      %1102 = vmatprep.subr.mxu0 0.0
      %1103 = vmatpush1.msra.mxu0 0.0
      %1104 = vmatprep.subr.mxu0 0.0
      %1105 = vmatpush1.msra.mxu0 0.0
      %1106 = vmatprep.subr.mxu0 0.0
      %1107 = vmatpush1.msra.mxu0 0.0
      %1108 = vmatprep.subr.mxu0 0.0
      %1109 = vmatpush1.msra.mxu0 0.0
      %1110 = vmatprep.subr.mxu0 0.0
      %1111 = vmatpush1.msra.mxu0 0.0
      %1112 = vmatprep.subr.mxu0 0.0
      %1113 = vmatpush1.msra.mxu0 0.0
      %1114 = vmatprep.subr.mxu0 0.0
      %1115 = vmatpush1.msra.mxu0 0.0
      %1116 = vmatprep.subr.mxu0 0.0
      %1117 = vmatpush1.msra.mxu0 0.0
      %1118 = vmatprep.subr.mxu0 0.0
      %1119 = vmatpush1.msra.mxu0 0.0
      %1120 = vmatprep.subr.mxu0 0.0
      %1121 = vmatpush1.msra.mxu0 0.0
      %1122 = vmatprep.subr.mxu0 0.0
      %1123 = vmatpush1.msra.mxu0 0.0
      %1124 = vmatprep.subr.mxu0 0.0
      %1125 = vmatpush1.msra.mxu0 0.0
      %1126 = vmatprep.subr.mxu0 0.0
      %1127 = vmatpush1.msra.mxu0 0.0
      %1128 = vmatprep.subr.mxu0 0.0
      %1129 = vmatpush1.msra.mxu0 0.0
      %1130 = vmatprep.subr.mxu0 0.0
      %1131 = vmatpush1.msra.mxu0 0.0
      %1132 = vmatprep.subr.mxu0 0.0
      %1133 = vmatpush1.msra.mxu0 0.0
      %1134 = vmatprep.subr.mxu0 0.0
      %1135 = vmatpush1.msra.mxu0 0.0
      %1136 = vmatprep.subr.mxu0 0.0
      %1137 = vmatpush1.msra.mxu0 0.0
      %1138 = vmatprep.subr.mxu0 0.0
      %1139 = vmatpush1.msra.mxu0 0.0
      %1140 = vmatprep.subr.mxu0 0.0
      %1141 = vmatpush1.msra.mxu0 0.0
      %1142 = vmatprep.subr.mxu0 0.0
      %1143 = vmatpush1.msra.mxu0 0.0
      %1144 = vmatprep.subr.mxu0 0.0
      %1145 = vmatpush1.msra.mxu0 0.0
      %1146 = vmatprep.mubr.f32.mxu0 0.0
      %1147 = vmatmul.mubr.f32.gmra.mrb[0].mxu0 %v949
      %v1148 = vpop.f32.mrb[0].mxu0
      %v1149 = vadd.f32 %v1080, %v1148
      %v1150 = vpop.f32.mrb[0].mxu0
      %1151 = vmatprep.mubr.f32.mxu0 0.0
      %1152 = vmatmul.mubr.f32.gmra.mrb[0].mxu0 %v952
      %v1153 = vpop.f32.mrb[0].mxu0
      %v1154 = vadd.f32 %v1080, %v1153
      %v1155 = vpop.f32.mrb[0].mxu0
      %1156 = vmatprep.mubr.f32.mxu0 0.0
      %1157 = vmatmul.mubr.f32.gmra.mrb[0].mxu0 %v955
      %v1158 = vpop.f32.mrb[0].mxu0
      %v1159 = vadd.f32 %v1080, %v1158
      %v1160 = vpop.f32.mrb[0].mxu0
      %1161 = vmatprep.mubr.f32.mxu0 0.0
      %1162 = vmatmul.mubr.f32.gmra.mrb[0].mxu0 %v958
      %v1163 = vpop.f32.mrb[0].mxu0
      %v1164 = vadd.f32 %v1080, %v1163
      %v1165 = vpop.f32.mrb[0].mxu0
      %1166 = vdwg.mxu0
      %v1167 = vxor.u32 %v1149, 2147483648
      %v1168 = vxor.u32 %v1154, 2147483648
      %v1169 = vxor.u32 %v1159, 2147483648
      %v1170 = vxor.u32 %v1164, 2147483648
      %v1171 = vmul.f32 %v1167, 1.442695
      %v1172 = vpow.pop %v1171
      %v1173 = vmul.f32 %v1168, 1.442695
      %v1174 = vpow.pop %v1173
      %v1175 = vmul.f32 %v1169, 1.442695
      %v1176 = vpow.pop %v1175
      %v1177 = vmul.f32 %v1170, 1.442695
      %v1178 = vpow.pop %v1177
      %v1179 = vadd.f32 %v1172, 1.0
      %v1180 = vadd.f32 %v1174, 1.0
      %v1181 = vadd.f32 %v1176, 1.0
      %v1182 = vadd.f32 %v1178, 1.0
      %v1183 = vrcp.pop %v1179
      %v1184 = vmul.f32 1.0, %v1183
      %v1185 = vrcp.pop %v1180
      %v1186 = vmul.f32 1.0, %v1185
      %v1187 = vrcp.pop %v1181
      %v1188 = vmul.f32 1.0, %v1187
      %v1189 = vrcp.pop %v1182
      %v1190 = vmul.f32 1.0, %v1189
      %s1191 = scalar_lea.vmem %s6, 64
      %v1192 = vld [vmem:[%s1191] sm:$0xff]
      %v1193 = vld [vmem:[%s1191 + $0x8] sm:$0xff]
      %v1194 = vld [vmem:[%s1191 + $0x10] sm:$0xff]
      %v1195 = vld [vmem:[%s1191 + $0x18] sm:$0xff]
      %s1196 = scalar_lea.vmem %s7, 2
      %v1197 = vld [vmem:[%s1196] sm:$0x1]
      %v1199 = vlaneseq
      %v1200 = vshrl.u32 %v1199, 7
      %v1201 = vsub.s32 0, %v1200
      %v1202 = vrot.slane %v1197, %v1201
      %1204 = vmatprep.subr.mxu0 0.0
      %1205 = vmatpush1.msra.mxu0 %v1192
      %1206 = vmatprep.subr.mxu0 0.0
      %1207 = vmatpush1.msra.mxu0 %v1193
      %1208 = vmatprep.subr.mxu0 0.0
      %1209 = vmatpush1.msra.mxu0 %v1194
      %1210 = vmatprep.subr.mxu0 0.0
      %1211 = vmatpush1.msra.mxu0 %v1195
      %1212 = vmatprep.subr.mxu0 0.0
      %1213 = vmatpush1.msra.mxu0 0.0
      %1214 = vmatprep.subr.mxu0 0.0
      %1215 = vmatpush1.msra.mxu0 0.0
      %1216 = vmatprep.subr.mxu0 0.0
      %1217 = vmatpush1.msra.mxu0 0.0
      %1218 = vmatprep.subr.mxu0 0.0
      %1219 = vmatpush1.msra.mxu0 0.0
      %1220 = vmatprep.subr.mxu0 0.0
      %1221 = vmatpush1.msra.mxu0 0.0
      %1222 = vmatprep.subr.mxu0 0.0
      %1223 = vmatpush1.msra.mxu0 0.0
      %1224 = vmatprep.subr.mxu0 0.0
      %1225 = vmatpush1.msra.mxu0 0.0
      %1226 = vmatprep.subr.mxu0 0.0
      %1227 = vmatpush1.msra.mxu0 0.0
      %1228 = vmatprep.subr.mxu0 0.0
      %1229 = vmatpush1.msra.mxu0 0.0
      %1230 = vmatprep.subr.mxu0 0.0
      %1231 = vmatpush1.msra.mxu0 0.0
      %1232 = vmatprep.subr.mxu0 0.0
      %1233 = vmatpush1.msra.mxu0 0.0
      %1234 = vmatprep.subr.mxu0 0.0
      %1235 = vmatpush1.msra.mxu0 0.0
      %1236 = vmatprep.subr.mxu0 0.0
      %1237 = vmatpush1.msra.mxu0 0.0
      %1238 = vmatprep.subr.mxu0 0.0
      %1239 = vmatpush1.msra.mxu0 0.0
      %1240 = vmatprep.subr.mxu0 0.0
      %1241 = vmatpush1.msra.mxu0 0.0
      %1242 = vmatprep.subr.mxu0 0.0
      %1243 = vmatpush1.msra.mxu0 0.0
      %1244 = vmatprep.subr.mxu0 0.0
      %1245 = vmatpush1.msra.mxu0 0.0
      %1246 = vmatprep.subr.mxu0 0.0
      %1247 = vmatpush1.msra.mxu0 0.0
      %1248 = vmatprep.subr.mxu0 0.0
      %1249 = vmatpush1.msra.mxu0 0.0
      %1250 = vmatprep.subr.mxu0 0.0
      %1251 = vmatpush1.msra.mxu0 0.0
      %1252 = vmatprep.subr.mxu0 0.0
      %1253 = vmatpush1.msra.mxu0 0.0
      %1254 = vmatprep.subr.mxu0 0.0
      %1255 = vmatpush1.msra.mxu0 0.0
      %1256 = vmatprep.subr.mxu0 0.0
      %1257 = vmatpush1.msra.mxu0 0.0
      %1258 = vmatprep.subr.mxu0 0.0
      %1259 = vmatpush1.msra.mxu0 0.0
      %1260 = vmatprep.subr.mxu0 0.0
      %1261 = vmatpush1.msra.mxu0 0.0
      %1262 = vmatprep.subr.mxu0 0.0
      %1263 = vmatpush1.msra.mxu0 0.0
      %1264 = vmatprep.subr.mxu0 0.0
      %1265 = vmatpush1.msra.mxu0 0.0
      %1266 = vmatprep.subr.mxu0 0.0
      %1267 = vmatpush1.msra.mxu0 0.0
      %1268 = vmatprep.mubr.f32.mxu0 0.0
      %1269 = vmatmul.mubr.f32.gmra.mrb[0].mxu0 %v949
      %v1270 = vpop.f32.mrb[0].mxu0
      %v1271 = vadd.f32 %v1202, %v1270
      %v1272 = vpop.f32.mrb[0].mxu0
      %1273 = vmatprep.mubr.f32.mxu0 0.0
      %1274 = vmatmul.mubr.f32.gmra.mrb[0].mxu0 %v952
      %v1275 = vpop.f32.mrb[0].mxu0
      %v1276 = vadd.f32 %v1202, %v1275
      %v1277 = vpop.f32.mrb[0].mxu0
      %1278 = vmatprep.mubr.f32.mxu0 0.0
      %1279 = vmatmul.mubr.f32.gmra.mrb[0].mxu0 %v955
      %v1280 = vpop.f32.mrb[0].mxu0
      %v1281 = vadd.f32 %v1202, %v1280
      %v1282 = vpop.f32.mrb[0].mxu0
      %1283 = vmatprep.mubr.f32.mxu0 0.0
      %1284 = vmatmul.mubr.f32.gmra.mrb[0].mxu0 %v958
      %v1285 = vpop.f32.mrb[0].mxu0
      %v1286 = vadd.f32 %v1202, %v1285
      %v1287 = vpop.f32.mrb[0].mxu0
      %1288 = vdwg.mxu0
      %v1289 = vtanh.pop %v1271
      %v1290 = vtanh.pop %v1276
      %v1291 = vtanh.pop %v1281
      %v1292 = vtanh.pop %v1286
      %s1293 = scalar_lea.vmem %s6, 96
      %v1294 = vld [vmem:[%s1293] sm:$0xff]
      %v1295 = vld [vmem:[%s1293 + $0x8] sm:$0xff]
      %v1296 = vld [vmem:[%s1293 + $0x10] sm:$0xff]
      %v1297 = vld [vmem:[%s1293 + $0x18] sm:$0xff]
      %s1298 = scalar_lea.vmem %s7, 3
      %v1299 = vld [vmem:[%s1298] sm:$0x1]
      %v1301 = vlaneseq
      %v1302 = vshrl.u32 %v1301, 7
      %v1303 = vsub.s32 0, %v1302
      %v1304 = vrot.slane %v1299, %v1303
      %1306 = vmatprep.subr.mxu0 0.0
      %1307 = vmatpush1.msra.mxu0 %v1294
      %1308 = vmatprep.subr.mxu0 0.0
      %1309 = vmatpush1.msra.mxu0 %v1295
      %1310 = vmatprep.subr.mxu0 0.0
      %1311 = vmatpush1.msra.mxu0 %v1296
      %1312 = vmatprep.subr.mxu0 0.0
      %1313 = vmatpush1.msra.mxu0 %v1297
      %1314 = vmatprep.subr.mxu0 0.0
      %1315 = vmatpush1.msra.mxu0 0.0
      %1316 = vmatprep.subr.mxu0 0.0
      %1317 = vmatpush1.msra.mxu0 0.0
      %1318 = vmatprep.subr.mxu0 0.0
      %1319 = vmatpush1.msra.mxu0 0.0
      %1320 = vmatprep.subr.mxu0 0.0
      %1321 = vmatpush1.msra.mxu0 0.0
      %1322 = vmatprep.subr.mxu0 0.0
      %1323 = vmatpush1.msra.mxu0 0.0
      %1324 = vmatprep.subr.mxu0 0.0
      %1325 = vmatpush1.msra.mxu0 0.0
      %1326 = vmatprep.subr.mxu0 0.0
      %1327 = vmatpush1.msra.mxu0 0.0
      %1328 = vmatprep.subr.mxu0 0.0
      %1329 = vmatpush1.msra.mxu0 0.0
      %1330 = vmatprep.subr.mxu0 0.0
      %1331 = vmatpush1.msra.mxu0 0.0
      %1332 = vmatprep.subr.mxu0 0.0
      %1333 = vmatpush1.msra.mxu0 0.0
      %1334 = vmatprep.subr.mxu0 0.0
      %1335 = vmatpush1.msra.mxu0 0.0
      %1336 = vmatprep.subr.mxu0 0.0
      %1337 = vmatpush1.msra.mxu0 0.0
      %1338 = vmatprep.subr.mxu0 0.0
      %1339 = vmatpush1.msra.mxu0 0.0
      %1340 = vmatprep.subr.mxu0 0.0
      %1341 = vmatpush1.msra.mxu0 0.0
      %1342 = vmatprep.subr.mxu0 0.0
      %1343 = vmatpush1.msra.mxu0 0.0
      %1344 = vmatprep.subr.mxu0 0.0
      %1345 = vmatpush1.msra.mxu0 0.0
      %1346 = vmatprep.subr.mxu0 0.0
      %1347 = vmatpush1.msra.mxu0 0.0
      %1348 = vmatprep.subr.mxu0 0.0
      %1349 = vmatpush1.msra.mxu0 0.0
      %1350 = vmatprep.subr.mxu0 0.0
      %1351 = vmatpush1.msra.mxu0 0.0
      %1352 = vmatprep.subr.mxu0 0.0
      %1353 = vmatpush1.msra.mxu0 0.0
      %1354 = vmatprep.subr.mxu0 0.0
      %1355 = vmatpush1.msra.mxu0 0.0
      %1356 = vmatprep.subr.mxu0 0.0
      %1357 = vmatpush1.msra.mxu0 0.0
      %1358 = vmatprep.subr.mxu0 0.0
      %1359 = vmatpush1.msra.mxu0 0.0
      %1360 = vmatprep.subr.mxu0 0.0
      %1361 = vmatpush1.msra.mxu0 0.0
      %1362 = vmatprep.subr.mxu0 0.0
      %1363 = vmatpush1.msra.mxu0 0.0
      %1364 = vmatprep.subr.mxu0 0.0
      %1365 = vmatpush1.msra.mxu0 0.0
      %1366 = vmatprep.subr.mxu0 0.0
      %1367 = vmatpush1.msra.mxu0 0.0
      %1368 = vmatprep.subr.mxu0 0.0
      %1369 = vmatpush1.msra.mxu0 0.0
      %1370 = vmatprep.mubr.f32.mxu0 0.0
      %1371 = vmatmul.mubr.f32.gmra.mrb[0].mxu0 %v949
      %v1372 = vpop.f32.mrb[0].mxu0
      %v1373 = vadd.f32 %v1304, %v1372
      %v1374 = vpop.f32.mrb[0].mxu0
      %1375 = vmatprep.mubr.f32.mxu0 0.0
      %1376 = vmatmul.mubr.f32.gmra.mrb[0].mxu0 %v952
      %v1377 = vpop.f32.mrb[0].mxu0
      %v1378 = vadd.f32 %v1304, %v1377
      %v1379 = vpop.f32.mrb[0].mxu0
      %1380 = vmatprep.mubr.f32.mxu0 0.0
      %1381 = vmatmul.mubr.f32.gmra.mrb[0].mxu0 %v955
      %v1382 = vpop.f32.mrb[0].mxu0
      %v1383 = vadd.f32 %v1304, %v1382
      %v1384 = vpop.f32.mrb[0].mxu0
      %1385 = vmatprep.mubr.f32.mxu0 0.0
      %1386 = vmatmul.mubr.f32.gmra.mrb[0].mxu0 %v958
      %v1387 = vpop.f32.mrb[0].mxu0
      %v1388 = vadd.f32 %v1304, %v1387
      %v1389 = vpop.f32.mrb[0].mxu0
      %1390 = vdwg.mxu0
      %v1391 = vxor.u32 %v1373, 2147483648
      %v1392 = vxor.u32 %v1378, 2147483648
      %v1393 = vxor.u32 %v1383, 2147483648
      %v1394 = vxor.u32 %v1388, 2147483648
      %v1395 = vmul.f32 %v1391, 1.442695
      %v1396 = vpow.pop %v1395
      %v1397 = vmul.f32 %v1392, 1.442695
      %v1398 = vpow.pop %v1397
      %v1399 = vmul.f32 %v1393, 1.442695
      %v1400 = vpow.pop %v1399
      %v1401 = vmul.f32 %v1394, 1.442695
      %v1402 = vpow.pop %v1401
      %v1403 = vadd.f32 %v1396, 1.0
      %v1404 = vadd.f32 %v1398, 1.0
      %v1405 = vadd.f32 %v1400, 1.0
      %v1406 = vadd.f32 %v1402, 1.0
      %v1407 = vrcp.pop %v1403
      %v1408 = vmul.f32 1.0, %v1407
      %v1409 = vrcp.pop %v1404
      %v1410 = vmul.f32 1.0, %v1409
      %v1411 = vrcp.pop %v1405
      %v1412 = vmul.f32 1.0, %v1411
      %v1413 = vrcp.pop %v1406
      %v1414 = vmul.f32 1.0, %v1413
      %v1415 = vmul.f32 %v1184, %v933
      %v1416 = vmul.f32 %v1186, %v934
      %v1417 = vmul.f32 %v1188, %v935
      %v1418 = vmul.f32 %v1190, %v936
      %v1419 = vmul.f32 %v1062, %v1289
      %v1420 = vmul.f32 %v1064, %v1290
      %v1421 = vmul.f32 %v1066, %v1291
      %v1422 = vmul.f32 %v1068, %v1292
      %v1423 = vadd.f32 %v1415, %v1419
      %v1424 = vadd.f32 %v1416, %v1420
      %v1425 = vadd.f32 %v1417, %v1421
      %v1426 = vadd.f32 %v1418, %v1422
      %v1427 = vtanh.pop %v1423
      %v1428 = vtanh.pop %v1424
      %v1429 = vtanh.pop %v1425
      %v1430 = vtanh.pop %v1426
      %v1431 = vmul.f32 %v1408, %v1427
      %v1432 = vmul.f32 %v1410, %v1428
      %v1433 = vmul.f32 %v1412, %v1429
      %v1434 = vmul.f32 %v1414, %v1430
      %1435 = vst.msk [vmem:[#allocation3] sm:$0xff] %vm496, %v1423
      %1436 = vst.msk [vmem:[#allocation3 + $0x8] sm:$0xff] %vm496, %v1424
      %1437 = vst.msk [vmem:[#allocation3 + $0x10] sm:$0xff] %vm496, %v1425
      %1438 = vst.msk [vmem:[#allocation3 + $0x18] sm:$0xff] %vm496, %v1426
      %1439 = vst.msk [vmem:[#allocation2] sm:$0xff] %vm496, %v1431
      %1440 = vst.msk [vmem:[#allocation2 + $0x8] sm:$0xff] %vm496, %v1432
      %1441 = vst.msk [vmem:[#allocation2 + $0x10] sm:$0xff] %vm496, %v1433
      %1442 = vst.msk [vmem:[#allocation2 + $0x18] sm:$0xff] %vm496, %v1434
      %v1443 = vld [vmem:[%s448] sm:$0xff]
      %v1444 = vld [vmem:[%s448 + $0x8] sm:$0xff]
      %v1446 = vsel %vm758, %v1443, 0
      %v1449 = vsel %vm758, %v1444, 0
      %1451 = vmatprep.subr.mxu0 0.0
      %1452 = vmatpush1.msra.mxu0 %v921
      %1453 = vmatprep.subr.mxu0 0.0
      %1454 = vmatpush1.msra.mxu0 %v926
      %1455 = vmatprep.subr.mxu0 0.0
      %1456 = vmatpush1.msra.mxu0 0.0
      %1457 = vmatprep.subr.mxu0 0.0
      %1458 = vmatpush1.msra.mxu0 0.0
      %1459 = vmatprep.subr.mxu0 0.0
      %1460 = vmatpush1.msra.mxu0 0.0
      %1461 = vmatprep.subr.mxu0 0.0
      %1462 = vmatpush1.msra.mxu0 0.0
      %1463 = vmatprep.subr.mxu0 0.0
      %1464 = vmatpush1.msra.mxu0 0.0
      %1465 = vmatprep.subr.mxu0 0.0
      %1466 = vmatpush1.msra.mxu0 0.0
      %1467 = vmatprep.subr.mxu0 0.0
      %1468 = vmatpush1.msra.mxu0 0.0
      %1469 = vmatprep.subr.mxu0 0.0
      %1470 = vmatpush1.msra.mxu0 0.0
      %1471 = vmatprep.subr.mxu0 0.0
      %1472 = vmatpush1.msra.mxu0 0.0
      %1473 = vmatprep.subr.mxu0 0.0
      %1474 = vmatpush1.msra.mxu0 0.0
      %1475 = vmatprep.subr.mxu0 0.0
      %1476 = vmatpush1.msra.mxu0 0.0
      %1477 = vmatprep.subr.mxu0 0.0
      %1478 = vmatpush1.msra.mxu0 0.0
      %1479 = vmatprep.subr.mxu0 0.0
      %1480 = vmatpush1.msra.mxu0 0.0
      %1481 = vmatprep.subr.mxu0 0.0
      %1482 = vmatpush1.msra.mxu0 0.0
      %1483 = vmatprep.subr.mxu0 0.0
      %1484 = vmatpush1.msra.mxu0 0.0
      %1485 = vmatprep.subr.mxu0 0.0
      %1486 = vmatpush1.msra.mxu0 0.0
      %1487 = vmatprep.subr.mxu0 0.0
      %1488 = vmatpush1.msra.mxu0 0.0
      %1489 = vmatprep.subr.mxu0 0.0
      %1490 = vmatpush1.msra.mxu0 0.0
      %1491 = vmatprep.subr.mxu0 0.0
      %1492 = vmatpush1.msra.mxu0 0.0
      %1493 = vmatprep.subr.mxu0 0.0
      %1494 = vmatpush1.msra.mxu0 0.0
      %1495 = vmatprep.subr.mxu0 0.0
      %1496 = vmatpush1.msra.mxu0 0.0
      %1497 = vmatprep.subr.mxu0 0.0
      %1498 = vmatpush1.msra.mxu0 0.0
      %1499 = vmatprep.subr.mxu0 0.0
      %1500 = vmatpush1.msra.mxu0 0.0
      %1501 = vmatprep.subr.mxu0 0.0
      %1502 = vmatpush1.msra.mxu0 0.0
      %1503 = vmatprep.subr.mxu0 0.0
      %1504 = vmatpush1.msra.mxu0 0.0
      %1505 = vmatprep.subr.mxu0 0.0
      %1506 = vmatpush1.msra.mxu0 0.0
      %1507 = vmatprep.subr.mxu0 0.0
      %1508 = vmatpush1.msra.mxu0 0.0
      %1509 = vmatprep.subr.mxu0 0.0
      %1510 = vmatpush1.msra.mxu0 0.0
      %1511 = vmatprep.subr.mxu0 0.0
      %1512 = vmatpush1.msra.mxu0 0.0
      %1513 = vmatprep.subr.mxu0 0.0
      %1514 = vmatpush1.msra.mxu0 0.0
      %1515 = vmatprep.mubr.f32.mxu0 0.0
      %1516 = vmatmul.mubr.f32.gmra.mrb[0].mxu0 %v1446
      %v1517 = vpop.f32.mrb[0].mxu0
      %v1518 = vadd.f32 0.0, %v1517
      %v1519 = vpop.f32.mrb[0].mxu0
      %1520 = vmatprep.mubr.f32.mxu0 0.0
      %1521 = vmatmul.mubr.f32.gmra.mrb[0].mxu0 %v1449
      %v1522 = vpop.f32.mrb[0].mxu0
      %v1523 = vadd.f32 0.0, %v1522
      %v1524 = vpop.f32.mrb[0].mxu0
      %1525 = vdwg.mxu0
      %v1526 = vmul.f32 %v1518, 0.9
      %v1527 = vmul.f32 %v1523, 0.9
      %v1528 = vmul.f32 %v921, 0.1
      %v1529 = vmul.f32 %v926, 0.1
      %v1530 = vadd.f32 %v1526, %v1528
      %v1531 = vadd.f32 %v1527, %v1529
      %v1532 = vmul.f32 %v1530, 0.5945349
      %v1533 = vmul.f32 %v1531, 0.5945349
      %v1535 = vsel %vm496, %v1530, 0
      %v1538 = vsel %vm496, %v1531, 0
      %1540 = vmatprep.subr.mxu0 0.0
      %1541 = vmatpush1.msra.mxu0 %v1431
      %1542 = vmatprep.subr.mxu0 0.0
      %1543 = vmatpush1.msra.mxu0 %v1432
      %1544 = vmatprep.subr.mxu0 0.0
      %1545 = vmatpush1.msra.mxu0 %v1433
      %1546 = vmatprep.subr.mxu0 0.0
      %1547 = vmatpush1.msra.mxu0 %v1434
      %1548 = vmatprep.subr.mxu0 0.0
      %1549 = vmatpush1.msra.mxu0 0.0
      %1550 = vmatprep.subr.mxu0 0.0
      %1551 = vmatpush1.msra.mxu0 0.0
      %1552 = vmatprep.subr.mxu0 0.0
      %1553 = vmatpush1.msra.mxu0 0.0
      %1554 = vmatprep.subr.mxu0 0.0
      %1555 = vmatpush1.msra.mxu0 0.0
      %1556 = vmatprep.subr.mxu0 0.0
      %1557 = vmatpush1.msra.mxu0 0.0
      %1558 = vmatprep.subr.mxu0 0.0
      %1559 = vmatpush1.msra.mxu0 0.0
      %1560 = vmatprep.subr.mxu0 0.0
      %1561 = vmatpush1.msra.mxu0 0.0
      %1562 = vmatprep.subr.mxu0 0.0
      %1563 = vmatpush1.msra.mxu0 0.0
      %1564 = vmatprep.subr.mxu0 0.0
      %1565 = vmatpush1.msra.mxu0 0.0
      %1566 = vmatprep.subr.mxu0 0.0
      %1567 = vmatpush1.msra.mxu0 0.0
      %1568 = vmatprep.subr.mxu0 0.0
      %1569 = vmatpush1.msra.mxu0 0.0
      %1570 = vmatprep.subr.mxu0 0.0
      %1571 = vmatpush1.msra.mxu0 0.0
      %1572 = vmatprep.subr.mxu0 0.0
      %1573 = vmatpush1.msra.mxu0 0.0
      %1574 = vmatprep.subr.mxu0 0.0
      %1575 = vmatpush1.msra.mxu0 0.0
      %1576 = vmatprep.subr.mxu0 0.0
      %1577 = vmatpush1.msra.mxu0 0.0
      %1578 = vmatprep.subr.mxu0 0.0
      %1579 = vmatpush1.msra.mxu0 0.0
      %1580 = vmatprep.subr.mxu0 0.0
      %1581 = vmatpush1.msra.mxu0 0.0
      %1582 = vmatprep.subr.mxu0 0.0
      %1583 = vmatpush1.msra.mxu0 0.0
      %1584 = vmatprep.subr.mxu0 0.0
      %1585 = vmatpush1.msra.mxu0 0.0
      %1586 = vmatprep.subr.mxu0 0.0
      %1587 = vmatpush1.msra.mxu0 0.0
      %1588 = vmatprep.subr.mxu0 0.0
      %1589 = vmatpush1.msra.mxu0 0.0
      %1590 = vmatprep.subr.mxu0 0.0
      %1591 = vmatpush1.msra.mxu0 0.0
      %1592 = vmatprep.subr.mxu0 0.0
      %1593 = vmatpush1.msra.mxu0 0.0
      %1594 = vmatprep.subr.mxu0 0.0
      %1595 = vmatpush1.msra.mxu0 0.0
      %1596 = vmatprep.subr.mxu0 0.0
      %1597 = vmatpush1.msra.mxu0 0.0
      %1598 = vmatprep.subr.mxu0 0.0
      %1599 = vmatpush1.msra.mxu0 0.0
      %1600 = vmatprep.subr.mxu0 0.0
      %1601 = vmatpush1.msra.mxu0 0.0
      %1602 = vmatprep.subr.mxu0 0.0
      %1603 = vmatpush1.msra.mxu0 0.0
      %1604 = vmatprep.mubr.f32.mxu0 0.0
      %1605 = vmatmul.mubr.f32.gmra.mrb[0].mxu0 %v1535
      %v1606 = vpop.f32.mrb[0].mxu0
      %v1607 = vadd.f32 0.0, %v1606
      %v1608 = vpop.f32.mrb[0].mxu0
      %1609 = vmatprep.mubr.f32.mxu0 0.0
      %1610 = vmatmul.mubr.f32.gmra.mrb[0].mxu0 %v1538
      %v1611 = vpop.f32.mrb[0].mxu0
      %v1612 = vadd.f32 0.0, %v1611
      %v1613 = vpop.f32.mrb[0].mxu0
      %1614 = vdwg.mxu0
      %v1615 = vmul.f32 %v1607, 0.4054651
      %v1616 = vmul.f32 %v1612, 0.4054651
      %v1617 = vadd.f32 %v1532, %v1615
      %v1618 = vadd.f32 %v1533, %v1616
      %v1619 = vsel %vm496, %v1617, 0.0
      %v1620 = vsel %vm496, %v1618, 0.0
      %v1621 = vadd.f32 %v1619, %v1620
      %v1622 = vrot.slane %v1621, 4
      %v1623 = vadd.f32 %v1621, %v1622
      %v1624 = vrot.slane %v1623, 2
      %v1625 = vadd.f32 %v1623, %v1624
      %v1626 = vrot.slane %v1625, 1
      %v1627 = vadd.f32 %v1625, %v1626
      %v1628 = vrcp.pop 16.0
      %v1629 = vmul.f32 %v1627, %v1628
      %v1630 = vsub.f32 %v1617, %v1629
      %v1631 = vsub.f32 %v1618, %v1629
      %v1632 = vmul.f32 %v1630, %v1630
      %v1633 = vmul.f32 %v1631, %v1631
      %v1634 = vsel %vm496, %v1632, 0.0
      %v1635 = vsel %vm496, %v1633, 0.0
      %v1636 = vadd.f32 %v1634, %v1635
      %v1637 = vrot.slane %v1636, 4
      %v1638 = vadd.f32 %v1636, %v1637
      %v1639 = vrot.slane %v1638, 2
      %v1640 = vadd.f32 %v1638, %v1639
      %v1641 = vrot.slane %v1640, 1
      %v1642 = vadd.f32 %v1640, %v1641
      %v1643 = vmul.f32 %v1642, %v1628
      %v1644 = vadd.f32 %v1643, 1e-05
      %v1645 = vrsqrt.pop %v1644
      %v1646 = vmul.f32 %v1630, %v1645
      %v1647 = vmul.f32 %v1631, %v1645
      %v1648 = vld [vmem:[%s10] sm:$0x1]
      %v1650 = vlaneseq
      %v1651 = vshrl.u32 %v1650, 7
      %v1652 = vsub.s32 0, %v1651
      %v1653 = vrot.slane %v1648, %v1652
      %v1655 = vmul.f32 %v1646, %v1653
      %v1656 = vmul.f32 %v1647, %v1653
      %v1657 = vld [vmem:[%s11] sm:$0x1]
      %v1659 = vlaneseq
      %v1660 = vshrl.u32 %v1659, 7
      %v1661 = vsub.s32 0, %v1660
      %v1662 = vrot.slane %v1657, %v1661
      %v1664 = vadd.f32 %v1655, %v1662
      %v1665 = vadd.f32 %v1656, %v1662
      %v1666 = vmax.f32 %v1664, 0.0
      %v1667 = vmax.f32 %v1665, 0.0
      %s1668 = scalar_lea.vmem [#allocation2], 32
      %v1669 = vld [vmem:[%s1668] sm:$0xff]
      %v1670 = vld [vmem:[%s1668 + $0x8] sm:$0xff]
      %v1671 = vld [vmem:[%s1668 + $0x10] sm:$0xff]
      %v1672 = vld [vmem:[%s1668 + $0x18] sm:$0xff]
      %s1673 = scalar_lea.vmem [#allocation3], 32
      %v1674 = vld [vmem:[%s1673] sm:$0xff]
      %v1675 = vld [vmem:[%s1673 + $0x8] sm:$0xff]
      %v1676 = vld [vmem:[%s1673 + $0x10] sm:$0xff]
      %v1677 = vld [vmem:[%s1673 + $0x18] sm:$0xff]
      %s1678 = scalar_lea.vmem %s6, 128
      %v1679 = vld [vmem:[%s1678] sm:$0xff]
      %v1680 = vld [vmem:[%s1678 + $0x8] sm:$0xff]
      %v1681 = vld [vmem:[%s1678 + $0x10] sm:$0xff]
      %v1682 = vld [vmem:[%s1678 + $0x18] sm:$0xff]
      %s1683 = scalar_lea.vmem %s7, 4
      %v1684 = vld [vmem:[%s1683] sm:$0x1]
      %v1686 = vlaneseq
      %v1687 = vshrl.u32 %v1686, 7
      %v1688 = vsub.s32 0, %v1687
      %v1689 = vrot.slane %v1684, %v1688
      %v1692 = vsel %vm496, %v1669, 0
      %v1695 = vsel %vm496, %v1670, 0
      %v1698 = vsel %vm496, %v1671, 0
      %v1701 = vsel %vm496, %v1672, 0
      %1703 = vmatprep.subr.mxu0 0.0
      %1704 = vmatpush1.msra.mxu0 %v1679
      %1705 = vmatprep.subr.mxu0 0.0
      %1706 = vmatpush1.msra.mxu0 %v1680
      %1707 = vmatprep.subr.mxu0 0.0
      %1708 = vmatpush1.msra.mxu0 %v1681
      %1709 = vmatprep.subr.mxu0 0.0
      %1710 = vmatpush1.msra.mxu0 %v1682
      %1711 = vmatprep.subr.mxu0 0.0
      %1712 = vmatpush1.msra.mxu0 0.0
      %1713 = vmatprep.subr.mxu0 0.0
      %1714 = vmatpush1.msra.mxu0 0.0
      %1715 = vmatprep.subr.mxu0 0.0
      %1716 = vmatpush1.msra.mxu0 0.0
      %1717 = vmatprep.subr.mxu0 0.0
      %1718 = vmatpush1.msra.mxu0 0.0
      %1719 = vmatprep.subr.mxu0 0.0
      %1720 = vmatpush1.msra.mxu0 0.0
      %1721 = vmatprep.subr.mxu0 0.0
      %1722 = vmatpush1.msra.mxu0 0.0
      %1723 = vmatprep.subr.mxu0 0.0
      %1724 = vmatpush1.msra.mxu0 0.0
      %1725 = vmatprep.subr.mxu0 0.0
      %1726 = vmatpush1.msra.mxu0 0.0
      %1727 = vmatprep.subr.mxu0 0.0
      %1728 = vmatpush1.msra.mxu0 0.0
      %1729 = vmatprep.subr.mxu0 0.0
      %1730 = vmatpush1.msra.mxu0 0.0
      %1731 = vmatprep.subr.mxu0 0.0
      %1732 = vmatpush1.msra.mxu0 0.0
      %1733 = vmatprep.subr.mxu0 0.0
      %1734 = vmatpush1.msra.mxu0 0.0
      %1735 = vmatprep.subr.mxu0 0.0
      %1736 = vmatpush1.msra.mxu0 0.0
      %1737 = vmatprep.subr.mxu0 0.0
      %1738 = vmatpush1.msra.mxu0 0.0
      %1739 = vmatprep.subr.mxu0 0.0
      %1740 = vmatpush1.msra.mxu0 0.0
      %1741 = vmatprep.subr.mxu0 0.0
      %1742 = vmatpush1.msra.mxu0 0.0
      %1743 = vmatprep.subr.mxu0 0.0
      %1744 = vmatpush1.msra.mxu0 0.0
      %1745 = vmatprep.subr.mxu0 0.0
      %1746 = vmatpush1.msra.mxu0 0.0
      %1747 = vmatprep.subr.mxu0 0.0
      %1748 = vmatpush1.msra.mxu0 0.0
      %1749 = vmatprep.subr.mxu0 0.0
      %1750 = vmatpush1.msra.mxu0 0.0
      %1751 = vmatprep.subr.mxu0 0.0
      %1752 = vmatpush1.msra.mxu0 0.0
      %1753 = vmatprep.subr.mxu0 0.0
      %1754 = vmatpush1.msra.mxu0 0.0
      %1755 = vmatprep.subr.mxu0 0.0
      %1756 = vmatpush1.msra.mxu0 0.0
      %1757 = vmatprep.subr.mxu0 0.0
      %1758 = vmatpush1.msra.mxu0 0.0
      %1759 = vmatprep.subr.mxu0 0.0
      %1760 = vmatpush1.msra.mxu0 0.0
      %1761 = vmatprep.subr.mxu0 0.0
      %1762 = vmatpush1.msra.mxu0 0.0
      %1763 = vmatprep.subr.mxu0 0.0
      %1764 = vmatpush1.msra.mxu0 0.0
      %1765 = vmatprep.subr.mxu0 0.0
      %1766 = vmatpush1.msra.mxu0 0.0
      %1767 = vmatprep.mubr.f32.mxu0 0.0
      %1768 = vmatmul.mubr.f32.gmra.mrb[0].mxu0 %v1692
      %v1769 = vpop.f32.mrb[0].mxu0
      %v1770 = vadd.f32 %v1689, %v1769
      %v1771 = vpop.f32.mrb[0].mxu0
      %1772 = vmatprep.mubr.f32.mxu0 0.0
      %1773 = vmatmul.mubr.f32.gmra.mrb[0].mxu0 %v1695
      %v1774 = vpop.f32.mrb[0].mxu0
      %v1775 = vadd.f32 %v1689, %v1774
      %v1776 = vpop.f32.mrb[0].mxu0
      %1777 = vmatprep.mubr.f32.mxu0 0.0
      %1778 = vmatmul.mubr.f32.gmra.mrb[0].mxu0 %v1698
      %v1779 = vpop.f32.mrb[0].mxu0
      %v1780 = vadd.f32 %v1689, %v1779
      %v1781 = vpop.f32.mrb[0].mxu0
      %1782 = vmatprep.mubr.f32.mxu0 0.0
      %1783 = vmatmul.mubr.f32.gmra.mrb[0].mxu0 %v1701
      %v1784 = vpop.f32.mrb[0].mxu0
      %v1785 = vadd.f32 %v1689, %v1784
      %v1786 = vpop.f32.mrb[0].mxu0
      %1787 = vdwg.mxu0
      %v1788 = vxor.u32 %v1770, 2147483648
      %v1789 = vxor.u32 %v1775, 2147483648
      %v1790 = vxor.u32 %v1780, 2147483648
      %v1791 = vxor.u32 %v1785, 2147483648
      %v1792 = vmul.f32 %v1788, 1.442695
      %v1793 = vpow.pop %v1792
      %v1794 = vmul.f32 %v1789, 1.442695
      %v1795 = vpow.pop %v1794
      %v1796 = vmul.f32 %v1790, 1.442695
      %v1797 = vpow.pop %v1796
      %v1798 = vmul.f32 %v1791, 1.442695
      %v1799 = vpow.pop %v1798
      %v1800 = vadd.f32 %v1793, 1.0
      %v1801 = vadd.f32 %v1795, 1.0
      %v1802 = vadd.f32 %v1797, 1.0
      %v1803 = vadd.f32 %v1799, 1.0
      %v1804 = vrcp.pop %v1800
      %v1805 = vmul.f32 1.0, %v1804
      %v1806 = vrcp.pop %v1801
      %v1807 = vmul.f32 1.0, %v1806
      %v1808 = vrcp.pop %v1802
      %v1809 = vmul.f32 1.0, %v1808
      %v1810 = vrcp.pop %v1803
      %v1811 = vmul.f32 1.0, %v1810
      %s1812 = scalar_lea.vmem %s6, 160
      %v1813 = vld [vmem:[%s1812] sm:$0xff]
      %v1814 = vld [vmem:[%s1812 + $0x8] sm:$0xff]
      %v1815 = vld [vmem:[%s1812 + $0x10] sm:$0xff]
      %v1816 = vld [vmem:[%s1812 + $0x18] sm:$0xff]
      %s1817 = scalar_lea.vmem %s7, 5
      %v1818 = vld [vmem:[%s1817] sm:$0x1]
      %v1820 = vlaneseq
      %v1821 = vshrl.u32 %v1820, 7
      %v1822 = vsub.s32 0, %v1821
      %v1823 = vrot.slane %v1818, %v1822
      %1825 = vmatprep.subr.mxu0 0.0
      %1826 = vmatpush1.msra.mxu0 %v1813
      %1827 = vmatprep.subr.mxu0 0.0
      %1828 = vmatpush1.msra.mxu0 %v1814
      %1829 = vmatprep.subr.mxu0 0.0
      %1830 = vmatpush1.msra.mxu0 %v1815
      %1831 = vmatprep.subr.mxu0 0.0
      %1832 = vmatpush1.msra.mxu0 %v1816
      %1833 = vmatprep.subr.mxu0 0.0
      %1834 = vmatpush1.msra.mxu0 0.0
      %1835 = vmatprep.subr.mxu0 0.0
      %1836 = vmatpush1.msra.mxu0 0.0
      %1837 = vmatprep.subr.mxu0 0.0
      %1838 = vmatpush1.msra.mxu0 0.0
      %1839 = vmatprep.subr.mxu0 0.0
      %1840 = vmatpush1.msra.mxu0 0.0
      %1841 = vmatprep.subr.mxu0 0.0
      %1842 = vmatpush1.msra.mxu0 0.0
      %1843 = vmatprep.subr.mxu0 0.0
      %1844 = vmatpush1.msra.mxu0 0.0
      %1845 = vmatprep.subr.mxu0 0.0
      %1846 = vmatpush1.msra.mxu0 0.0
      %1847 = vmatprep.subr.mxu0 0.0
      %1848 = vmatpush1.msra.mxu0 0.0
      %1849 = vmatprep.subr.mxu0 0.0
      %1850 = vmatpush1.msra.mxu0 0.0
      %1851 = vmatprep.subr.mxu0 0.0
      %1852 = vmatpush1.msra.mxu0 0.0
      %1853 = vmatprep.subr.mxu0 0.0
      %1854 = vmatpush1.msra.mxu0 0.0
      %1855 = vmatprep.subr.mxu0 0.0
      %1856 = vmatpush1.msra.mxu0 0.0
      %1857 = vmatprep.subr.mxu0 0.0
      %1858 = vmatpush1.msra.mxu0 0.0
      %1859 = vmatprep.subr.mxu0 0.0
      %1860 = vmatpush1.msra.mxu0 0.0
      %1861 = vmatprep.subr.mxu0 0.0
      %1862 = vmatpush1.msra.mxu0 0.0
      %1863 = vmatprep.subr.mxu0 0.0
      %1864 = vmatpush1.msra.mxu0 0.0
      %1865 = vmatprep.subr.mxu0 0.0
      %1866 = vmatpush1.msra.mxu0 0.0
      %1867 = vmatprep.subr.mxu0 0.0
      %1868 = vmatpush1.msra.mxu0 0.0
      %1869 = vmatprep.subr.mxu0 0.0
      %1870 = vmatpush1.msra.mxu0 0.0
      %1871 = vmatprep.subr.mxu0 0.0
      %1872 = vmatpush1.msra.mxu0 0.0
      %1873 = vmatprep.subr.mxu0 0.0
      %1874 = vmatpush1.msra.mxu0 0.0
      %1875 = vmatprep.subr.mxu0 0.0
      %1876 = vmatpush1.msra.mxu0 0.0
      %1877 = vmatprep.subr.mxu0 0.0
      %1878 = vmatpush1.msra.mxu0 0.0
      %1879 = vmatprep.subr.mxu0 0.0
      %1880 = vmatpush1.msra.mxu0 0.0
      %1881 = vmatprep.subr.mxu0 0.0
      %1882 = vmatpush1.msra.mxu0 0.0
      %1883 = vmatprep.subr.mxu0 0.0
      %1884 = vmatpush1.msra.mxu0 0.0
      %1885 = vmatprep.subr.mxu0 0.0
      %1886 = vmatpush1.msra.mxu0 0.0
      %1887 = vmatprep.subr.mxu0 0.0
      %1888 = vmatpush1.msra.mxu0 0.0
      %1889 = vmatprep.mubr.f32.mxu0 0.0
      %1890 = vmatmul.mubr.f32.gmra.mrb[0].mxu0 %v1692
      %v1891 = vpop.f32.mrb[0].mxu0
      %v1892 = vadd.f32 %v1823, %v1891
      %v1893 = vpop.f32.mrb[0].mxu0
      %1894 = vmatprep.mubr.f32.mxu0 0.0
      %1895 = vmatmul.mubr.f32.gmra.mrb[0].mxu0 %v1695
      %v1896 = vpop.f32.mrb[0].mxu0
      %v1897 = vadd.f32 %v1823, %v1896
      %v1898 = vpop.f32.mrb[0].mxu0
      %1899 = vmatprep.mubr.f32.mxu0 0.0
      %1900 = vmatmul.mubr.f32.gmra.mrb[0].mxu0 %v1698
      %v1901 = vpop.f32.mrb[0].mxu0
      %v1902 = vadd.f32 %v1823, %v1901
      %v1903 = vpop.f32.mrb[0].mxu0
      %1904 = vmatprep.mubr.f32.mxu0 0.0
      %1905 = vmatmul.mubr.f32.gmra.mrb[0].mxu0 %v1701
      %v1906 = vpop.f32.mrb[0].mxu0
      %v1907 = vadd.f32 %v1823, %v1906
      %v1908 = vpop.f32.mrb[0].mxu0
      %1909 = vdwg.mxu0
      %v1910 = vxor.u32 %v1892, 2147483648
      %v1911 = vxor.u32 %v1897, 2147483648
      %v1912 = vxor.u32 %v1902, 2147483648
      %v1913 = vxor.u32 %v1907, 2147483648
      %v1914 = vmul.f32 %v1910, 1.442695
      %v1915 = vpow.pop %v1914
      %v1916 = vmul.f32 %v1911, 1.442695
      %v1917 = vpow.pop %v1916
      %v1918 = vmul.f32 %v1912, 1.442695
      %v1919 = vpow.pop %v1918
      %v1920 = vmul.f32 %v1913, 1.442695
      %v1921 = vpow.pop %v1920
      %v1922 = vadd.f32 %v1915, 1.0
      %v1923 = vadd.f32 %v1917, 1.0
      %v1924 = vadd.f32 %v1919, 1.0
      %v1925 = vadd.f32 %v1921, 1.0
      %v1926 = vrcp.pop %v1922
      %v1927 = vmul.f32 1.0, %v1926
      %v1928 = vrcp.pop %v1923
      %v1929 = vmul.f32 1.0, %v1928
      %v1930 = vrcp.pop %v1924
      %v1931 = vmul.f32 1.0, %v1930
      %v1932 = vrcp.pop %v1925
      %v1933 = vmul.f32 1.0, %v1932
      %s1934 = scalar_lea.vmem %s6, 192
      %v1935 = vld [vmem:[%s1934] sm:$0xff]
      %v1936 = vld [vmem:[%s1934 + $0x8] sm:$0xff]
      %v1937 = vld [vmem:[%s1934 + $0x10] sm:$0xff]
      %v1938 = vld [vmem:[%s1934 + $0x18] sm:$0xff]
      %s1939 = scalar_lea.vmem %s7, 6
      %v1940 = vld [vmem:[%s1939] sm:$0x1]
      %v1942 = vlaneseq
      %v1943 = vshrl.u32 %v1942, 7
      %v1944 = vsub.s32 0, %v1943
      %v1945 = vrot.slane %v1940, %v1944
      %1947 = vmatprep.subr.mxu0 0.0
      %1948 = vmatpush1.msra.mxu0 %v1935
      %1949 = vmatprep.subr.mxu0 0.0
      %1950 = vmatpush1.msra.mxu0 %v1936
      %1951 = vmatprep.subr.mxu0 0.0
      %1952 = vmatpush1.msra.mxu0 %v1937
      %1953 = vmatprep.subr.mxu0 0.0
      %1954 = vmatpush1.msra.mxu0 %v1938
      %1955 = vmatprep.subr.mxu0 0.0
      %1956 = vmatpush1.msra.mxu0 0.0
      %1957 = vmatprep.subr.mxu0 0.0
      %1958 = vmatpush1.msra.mxu0 0.0
      %1959 = vmatprep.subr.mxu0 0.0
      %1960 = vmatpush1.msra.mxu0 0.0
      %1961 = vmatprep.subr.mxu0 0.0
      %1962 = vmatpush1.msra.mxu0 0.0
      %1963 = vmatprep.subr.mxu0 0.0
      %1964 = vmatpush1.msra.mxu0 0.0
      %1965 = vmatprep.subr.mxu0 0.0
      %1966 = vmatpush1.msra.mxu0 0.0
      %1967 = vmatprep.subr.mxu0 0.0
      %1968 = vmatpush1.msra.mxu0 0.0
      %1969 = vmatprep.subr.mxu0 0.0
      %1970 = vmatpush1.msra.mxu0 0.0
      %1971 = vmatprep.subr.mxu0 0.0
      %1972 = vmatpush1.msra.mxu0 0.0
      %1973 = vmatprep.subr.mxu0 0.0
      %1974 = vmatpush1.msra.mxu0 0.0
      %1975 = vmatprep.subr.mxu0 0.0
      %1976 = vmatpush1.msra.mxu0 0.0
      %1977 = vmatprep.subr.mxu0 0.0
      %1978 = vmatpush1.msra.mxu0 0.0
      %1979 = vmatprep.subr.mxu0 0.0
      %1980 = vmatpush1.msra.mxu0 0.0
      %1981 = vmatprep.subr.mxu0 0.0
      %1982 = vmatpush1.msra.mxu0 0.0
      %1983 = vmatprep.subr.mxu0 0.0
      %1984 = vmatpush1.msra.mxu0 0.0
      %1985 = vmatprep.subr.mxu0 0.0
      %1986 = vmatpush1.msra.mxu0 0.0
      %1987 = vmatprep.subr.mxu0 0.0
      %1988 = vmatpush1.msra.mxu0 0.0
      %1989 = vmatprep.subr.mxu0 0.0
      %1990 = vmatpush1.msra.mxu0 0.0
      %1991 = vmatprep.subr.mxu0 0.0
      %1992 = vmatpush1.msra.mxu0 0.0
      %1993 = vmatprep.subr.mxu0 0.0
      %1994 = vmatpush1.msra.mxu0 0.0
      %1995 = vmatprep.subr.mxu0 0.0
      %1996 = vmatpush1.msra.mxu0 0.0
      %1997 = vmatprep.subr.mxu0 0.0
      %1998 = vmatpush1.msra.mxu0 0.0
      %1999 = vmatprep.subr.mxu0 0.0
      %2000 = vmatpush1.msra.mxu0 0.0
      %2001 = vmatprep.subr.mxu0 0.0
      %2002 = vmatpush1.msra.mxu0 0.0
      %2003 = vmatprep.subr.mxu0 0.0
      %2004 = vmatpush1.msra.mxu0 0.0
      %2005 = vmatprep.subr.mxu0 0.0
      %2006 = vmatpush1.msra.mxu0 0.0
      %2007 = vmatprep.subr.mxu0 0.0
      %2008 = vmatpush1.msra.mxu0 0.0
      %2009 = vmatprep.subr.mxu0 0.0
      %2010 = vmatpush1.msra.mxu0 0.0
      %2011 = vmatprep.mubr.f32.mxu0 0.0
      %2012 = vmatmul.mubr.f32.gmra.mrb[0].mxu0 %v1692
      %v2013 = vpop.f32.mrb[0].mxu0
      %v2014 = vadd.f32 %v1945, %v2013
      %v2015 = vpop.f32.mrb[0].mxu0
      %2016 = vmatprep.mubr.f32.mxu0 0.0
      %2017 = vmatmul.mubr.f32.gmra.mrb[0].mxu0 %v1695
      %v2018 = vpop.f32.mrb[0].mxu0
      %v2019 = vadd.f32 %v1945, %v2018
      %v2020 = vpop.f32.mrb[0].mxu0
      %2021 = vmatprep.mubr.f32.mxu0 0.0
      %2022 = vmatmul.mubr.f32.gmra.mrb[0].mxu0 %v1698
      %v2023 = vpop.f32.mrb[0].mxu0
      %v2024 = vadd.f32 %v1945, %v2023
      %v2025 = vpop.f32.mrb[0].mxu0
      %2026 = vmatprep.mubr.f32.mxu0 0.0
      %2027 = vmatmul.mubr.f32.gmra.mrb[0].mxu0 %v1701
      %v2028 = vpop.f32.mrb[0].mxu0
      %v2029 = vadd.f32 %v1945, %v2028
      %v2030 = vpop.f32.mrb[0].mxu0
      %2031 = vdwg.mxu0
      %v2032 = vtanh.pop %v2014
      %v2033 = vtanh.pop %v2019
      %v2034 = vtanh.pop %v2024
      %v2035 = vtanh.pop %v2029
      %s2036 = scalar_lea.vmem %s6, 224
      %v2037 = vld [vmem:[%s2036] sm:$0xff]
      %v2038 = vld [vmem:[%s2036 + $0x8] sm:$0xff]
      %v2039 = vld [vmem:[%s2036 + $0x10] sm:$0xff]
      %v2040 = vld [vmem:[%s2036 + $0x18] sm:$0xff]
      %s2041 = scalar_lea.vmem %s7, 7
      %v2042 = vld [vmem:[%s2041] sm:$0x1]
      %v2044 = vlaneseq
      %v2045 = vshrl.u32 %v2044, 7
      %v2046 = vsub.s32 0, %v2045
      %v2047 = vrot.slane %v2042, %v2046
      %2049 = vmatprep.subr.mxu0 0.0
      %2050 = vmatpush1.msra.mxu0 %v2037
      %2051 = vmatprep.subr.mxu0 0.0
      %2052 = vmatpush1.msra.mxu0 %v2038
      %2053 = vmatprep.subr.mxu0 0.0
      %2054 = vmatpush1.msra.mxu0 %v2039
      %2055 = vmatprep.subr.mxu0 0.0
      %2056 = vmatpush1.msra.mxu0 %v2040
      %2057 = vmatprep.subr.mxu0 0.0
      %2058 = vmatpush1.msra.mxu0 0.0
      %2059 = vmatprep.subr.mxu0 0.0
      %2060 = vmatpush1.msra.mxu0 0.0
      %2061 = vmatprep.subr.mxu0 0.0
      %2062 = vmatpush1.msra.mxu0 0.0
      %2063 = vmatprep.subr.mxu0 0.0
      %2064 = vmatpush1.msra.mxu0 0.0
      %2065 = vmatprep.subr.mxu0 0.0
      %2066 = vmatpush1.msra.mxu0 0.0
      %2067 = vmatprep.subr.mxu0 0.0
      %2068 = vmatpush1.msra.mxu0 0.0
      %2069 = vmatprep.subr.mxu0 0.0
      %2070 = vmatpush1.msra.mxu0 0.0
      %2071 = vmatprep.subr.mxu0 0.0
      %2072 = vmatpush1.msra.mxu0 0.0
      %2073 = vmatprep.subr.mxu0 0.0
      %2074 = vmatpush1.msra.mxu0 0.0
      %2075 = vmatprep.subr.mxu0 0.0
      %2076 = vmatpush1.msra.mxu0 0.0
      %2077 = vmatprep.subr.mxu0 0.0
      %2078 = vmatpush1.msra.mxu0 0.0
      %2079 = vmatprep.subr.mxu0 0.0
      %2080 = vmatpush1.msra.mxu0 0.0
      %2081 = vmatprep.subr.mxu0 0.0
      %2082 = vmatpush1.msra.mxu0 0.0
      %2083 = vmatprep.subr.mxu0 0.0
      %2084 = vmatpush1.msra.mxu0 0.0
      %2085 = vmatprep.subr.mxu0 0.0
      %2086 = vmatpush1.msra.mxu0 0.0
      %2087 = vmatprep.subr.mxu0 0.0
      %2088 = vmatpush1.msra.mxu0 0.0
      %2089 = vmatprep.subr.mxu0 0.0
      %2090 = vmatpush1.msra.mxu0 0.0
      %2091 = vmatprep.subr.mxu0 0.0
      %2092 = vmatpush1.msra.mxu0 0.0
      %2093 = vmatprep.subr.mxu0 0.0
      %2094 = vmatpush1.msra.mxu0 0.0
      %2095 = vmatprep.subr.mxu0 0.0
      %2096 = vmatpush1.msra.mxu0 0.0
      %2097 = vmatprep.subr.mxu0 0.0
      %2098 = vmatpush1.msra.mxu0 0.0
      %2099 = vmatprep.subr.mxu0 0.0
      %2100 = vmatpush1.msra.mxu0 0.0
      %2101 = vmatprep.subr.mxu0 0.0
      %2102 = vmatpush1.msra.mxu0 0.0
      %2103 = vmatprep.subr.mxu0 0.0
      %2104 = vmatpush1.msra.mxu0 0.0
      %2105 = vmatprep.subr.mxu0 0.0
      %2106 = vmatpush1.msra.mxu0 0.0
      %2107 = vmatprep.subr.mxu0 0.0
      %2108 = vmatpush1.msra.mxu0 0.0
      %2109 = vmatprep.subr.mxu0 0.0
      %2110 = vmatpush1.msra.mxu0 0.0
      %2111 = vmatprep.subr.mxu0 0.0
      %2112 = vmatpush1.msra.mxu0 0.0
      %2113 = vmatprep.mubr.f32.mxu0 0.0
      %2114 = vmatmul.mubr.f32.gmra.mrb[0].mxu0 %v1692
      %v2115 = vpop.f32.mrb[0].mxu0
      %v2116 = vadd.f32 %v2047, %v2115
      %v2117 = vpop.f32.mrb[0].mxu0
      %2118 = vmatprep.mubr.f32.mxu0 0.0
      %2119 = vmatmul.mubr.f32.gmra.mrb[0].mxu0 %v1695
      %v2120 = vpop.f32.mrb[0].mxu0
      %v2121 = vadd.f32 %v2047, %v2120
      %v2122 = vpop.f32.mrb[0].mxu0
      %2123 = vmatprep.mubr.f32.mxu0 0.0
      %2124 = vmatmul.mubr.f32.gmra.mrb[0].mxu0 %v1698
      %v2125 = vpop.f32.mrb[0].mxu0
      %v2126 = vadd.f32 %v2047, %v2125
      %v2127 = vpop.f32.mrb[0].mxu0
      %2128 = vmatprep.mubr.f32.mxu0 0.0
      %2129 = vmatmul.mubr.f32.gmra.mrb[0].mxu0 %v1701
      %v2130 = vpop.f32.mrb[0].mxu0
      %v2131 = vadd.f32 %v2047, %v2130
      %v2132 = vpop.f32.mrb[0].mxu0
      %2133 = vdwg.mxu0
      %v2134 = vxor.u32 %v2116, 2147483648
      %v2135 = vxor.u32 %v2121, 2147483648
      %v2136 = vxor.u32 %v2126, 2147483648
      %v2137 = vxor.u32 %v2131, 2147483648
      %v2138 = vmul.f32 %v2134, 1.442695
      %v2139 = vpow.pop %v2138
      %v2140 = vmul.f32 %v2135, 1.442695
      %v2141 = vpow.pop %v2140
      %v2142 = vmul.f32 %v2136, 1.442695
      %v2143 = vpow.pop %v2142
      %v2144 = vmul.f32 %v2137, 1.442695
      %v2145 = vpow.pop %v2144
      %v2146 = vadd.f32 %v2139, 1.0
      %v2147 = vadd.f32 %v2141, 1.0
      %v2148 = vadd.f32 %v2143, 1.0
      %v2149 = vadd.f32 %v2145, 1.0
      %v2150 = vrcp.pop %v2146
      %v2151 = vmul.f32 1.0, %v2150
      %v2152 = vrcp.pop %v2147
      %v2153 = vmul.f32 1.0, %v2152
      %v2154 = vrcp.pop %v2148
      %v2155 = vmul.f32 1.0, %v2154
      %v2156 = vrcp.pop %v2149
      %v2157 = vmul.f32 1.0, %v2156
      %v2158 = vmul.f32 %v1927, %v1674
      %v2159 = vmul.f32 %v1929, %v1675
      %v2160 = vmul.f32 %v1931, %v1676
      %v2161 = vmul.f32 %v1933, %v1677
      %v2162 = vmul.f32 %v1805, %v2032
      %v2163 = vmul.f32 %v1807, %v2033
      %v2164 = vmul.f32 %v1809, %v2034
      %v2165 = vmul.f32 %v1811, %v2035
      %v2166 = vadd.f32 %v2158, %v2162
      %v2167 = vadd.f32 %v2159, %v2163
      %v2168 = vadd.f32 %v2160, %v2164
      %v2169 = vadd.f32 %v2161, %v2165
      %v2170 = vtanh.pop %v2166
      %v2171 = vtanh.pop %v2167
      %v2172 = vtanh.pop %v2168
      %v2173 = vtanh.pop %v2169
      %v2174 = vmul.f32 %v2151, %v2170
      %v2175 = vmul.f32 %v2153, %v2171
      %v2176 = vmul.f32 %v2155, %v2172
      %v2177 = vmul.f32 %v2157, %v2173
      %2178 = vst.msk [vmem:[%s1673] sm:$0xff] %vm496, %v2166
      %2179 = vst.msk [vmem:[%s1673 + $0x8] sm:$0xff] %vm496, %v2167
      %2180 = vst.msk [vmem:[%s1673 + $0x10] sm:$0xff] %vm496, %v2168
      %2181 = vst.msk [vmem:[%s1673 + $0x18] sm:$0xff] %vm496, %v2169
      %2182 = vst.msk [vmem:[%s1668] sm:$0xff] %vm496, %v2174
      %2183 = vst.msk [vmem:[%s1668 + $0x8] sm:$0xff] %vm496, %v2175
      %2184 = vst.msk [vmem:[%s1668 + $0x10] sm:$0xff] %vm496, %v2176
      %2185 = vst.msk [vmem:[%s1668 + $0x18] sm:$0xff] %vm496, %v2177
      %v2186 = vld [vmem:[%s448] sm:$0xff]
      %v2187 = vld [vmem:[%s448 + $0x8] sm:$0xff]
      %v2189 = vsel %vm758, %v2186, 0
      %v2192 = vsel %vm758, %v2187, 0
      %2194 = vmatprep.subr.mxu0 0.0
      %2195 = vmatpush1.msra.mxu0 %v1666
      %2196 = vmatprep.subr.mxu0 0.0
      %2197 = vmatpush1.msra.mxu0 %v1667
      %2198 = vmatprep.subr.mxu0 0.0
      %2199 = vmatpush1.msra.mxu0 0.0
      %2200 = vmatprep.subr.mxu0 0.0
      %2201 = vmatpush1.msra.mxu0 0.0
      %2202 = vmatprep.subr.mxu0 0.0
      %2203 = vmatpush1.msra.mxu0 0.0
      %2204 = vmatprep.subr.mxu0 0.0
      %2205 = vmatpush1.msra.mxu0 0.0
      %2206 = vmatprep.subr.mxu0 0.0
      %2207 = vmatpush1.msra.mxu0 0.0
      %2208 = vmatprep.subr.mxu0 0.0
      %2209 = vmatpush1.msra.mxu0 0.0
      %2210 = vmatprep.subr.mxu0 0.0
      %2211 = vmatpush1.msra.mxu0 0.0
      %2212 = vmatprep.subr.mxu0 0.0
      %2213 = vmatpush1.msra.mxu0 0.0
      %2214 = vmatprep.subr.mxu0 0.0
      %2215 = vmatpush1.msra.mxu0 0.0
      %2216 = vmatprep.subr.mxu0 0.0
      %2217 = vmatpush1.msra.mxu0 0.0
      %2218 = vmatprep.subr.mxu0 0.0
      %2219 = vmatpush1.msra.mxu0 0.0
      %2220 = vmatprep.subr.mxu0 0.0
      %2221 = vmatpush1.msra.mxu0 0.0
      %2222 = vmatprep.subr.mxu0 0.0
      %2223 = vmatpush1.msra.mxu0 0.0
      %2224 = vmatprep.subr.mxu0 0.0
      %2225 = vmatpush1.msra.mxu0 0.0
      %2226 = vmatprep.subr.mxu0 0.0
      %2227 = vmatpush1.msra.mxu0 0.0
      %2228 = vmatprep.subr.mxu0 0.0
      %2229 = vmatpush1.msra.mxu0 0.0
      %2230 = vmatprep.subr.mxu0 0.0
      %2231 = vmatpush1.msra.mxu0 0.0
      %2232 = vmatprep.subr.mxu0 0.0
      %2233 = vmatpush1.msra.mxu0 0.0
      %2234 = vmatprep.subr.mxu0 0.0
      %2235 = vmatpush1.msra.mxu0 0.0
      %2236 = vmatprep.subr.mxu0 0.0
      %2237 = vmatpush1.msra.mxu0 0.0
      %2238 = vmatprep.subr.mxu0 0.0
      %2239 = vmatpush1.msra.mxu0 0.0
      %2240 = vmatprep.subr.mxu0 0.0
      %2241 = vmatpush1.msra.mxu0 0.0
      %2242 = vmatprep.subr.mxu0 0.0
      %2243 = vmatpush1.msra.mxu0 0.0
      %2244 = vmatprep.subr.mxu0 0.0
      %2245 = vmatpush1.msra.mxu0 0.0
      %2246 = vmatprep.subr.mxu0 0.0
      %2247 = vmatpush1.msra.mxu0 0.0
      %2248 = vmatprep.subr.mxu0 0.0
      %2249 = vmatpush1.msra.mxu0 0.0
      %2250 = vmatprep.subr.mxu0 0.0
      %2251 = vmatpush1.msra.mxu0 0.0
      %2252 = vmatprep.subr.mxu0 0.0
      %2253 = vmatpush1.msra.mxu0 0.0
      %2254 = vmatprep.subr.mxu0 0.0
      %2255 = vmatpush1.msra.mxu0 0.0
      %2256 = vmatprep.subr.mxu0 0.0
      %2257 = vmatpush1.msra.mxu0 0.0
      %2258 = vmatprep.mubr.f32.mxu0 0.0
      %2259 = vmatmul.mubr.f32.gmra.mrb[0].mxu0 %v2189
      %v2260 = vpop.f32.mrb[0].mxu0
      %v2261 = vadd.f32 0.0, %v2260
      %v2262 = vpop.f32.mrb[0].mxu0
      %2263 = vmatprep.mubr.f32.mxu0 0.0
      %2264 = vmatmul.mubr.f32.gmra.mrb[0].mxu0 %v2192
      %v2265 = vpop.f32.mrb[0].mxu0
      %v2266 = vadd.f32 0.0, %v2265
      %v2267 = vpop.f32.mrb[0].mxu0
      %2268 = vdwg.mxu0
      %v2269 = vmul.f32 %v2261, 0.9
      %v2270 = vmul.f32 %v2266, 0.9
      %v2271 = vadd.f32 %v2269, %v1528
      %v2272 = vadd.f32 %v2270, %v1529
      %v2273 = vmul.f32 %v2271, 0.7768564
      %v2274 = vmul.f32 %v2272, 0.7768564
      %v2276 = vsel %vm496, %v2271, 0
      %v2279 = vsel %vm496, %v2272, 0
      %2281 = vmatprep.subr.mxu0 0.0
      %2282 = vmatpush1.msra.mxu0 %v2174
      %2283 = vmatprep.subr.mxu0 0.0
      %2284 = vmatpush1.msra.mxu0 %v2175
      %2285 = vmatprep.subr.mxu0 0.0
      %2286 = vmatpush1.msra.mxu0 %v2176
      %2287 = vmatprep.subr.mxu0 0.0
      %2288 = vmatpush1.msra.mxu0 %v2177
      %2289 = vmatprep.subr.mxu0 0.0
      %2290 = vmatpush1.msra.mxu0 0.0
      %2291 = vmatprep.subr.mxu0 0.0
      %2292 = vmatpush1.msra.mxu0 0.0
      %2293 = vmatprep.subr.mxu0 0.0
      %2294 = vmatpush1.msra.mxu0 0.0
      %2295 = vmatprep.subr.mxu0 0.0
      %2296 = vmatpush1.msra.mxu0 0.0
      %2297 = vmatprep.subr.mxu0 0.0
      %2298 = vmatpush1.msra.mxu0 0.0
      %2299 = vmatprep.subr.mxu0 0.0
      %2300 = vmatpush1.msra.mxu0 0.0
      %2301 = vmatprep.subr.mxu0 0.0
      %2302 = vmatpush1.msra.mxu0 0.0
      %2303 = vmatprep.subr.mxu0 0.0
      %2304 = vmatpush1.msra.mxu0 0.0
      %2305 = vmatprep.subr.mxu0 0.0
      %2306 = vmatpush1.msra.mxu0 0.0
      %2307 = vmatprep.subr.mxu0 0.0
      %2308 = vmatpush1.msra.mxu0 0.0
      %2309 = vmatprep.subr.mxu0 0.0
      %2310 = vmatpush1.msra.mxu0 0.0
      %2311 = vmatprep.subr.mxu0 0.0
      %2312 = vmatpush1.msra.mxu0 0.0
      %2313 = vmatprep.subr.mxu0 0.0
      %2314 = vmatpush1.msra.mxu0 0.0
      %2315 = vmatprep.subr.mxu0 0.0
      %2316 = vmatpush1.msra.mxu0 0.0
      %2317 = vmatprep.subr.mxu0 0.0
      %2318 = vmatpush1.msra.mxu0 0.0
      %2319 = vmatprep.subr.mxu0 0.0
      %2320 = vmatpush1.msra.mxu0 0.0
      %2321 = vmatprep.subr.mxu0 0.0
      %2322 = vmatpush1.msra.mxu0 0.0
      %2323 = vmatprep.subr.mxu0 0.0
      %2324 = vmatpush1.msra.mxu0 0.0
      %2325 = vmatprep.subr.mxu0 0.0
      %2326 = vmatpush1.msra.mxu0 0.0
      %2327 = vmatprep.subr.mxu0 0.0
      %2328 = vmatpush1.msra.mxu0 0.0
      %2329 = vmatprep.subr.mxu0 0.0
      %2330 = vmatpush1.msra.mxu0 0.0
      %2331 = vmatprep.subr.mxu0 0.0
      %2332 = vmatpush1.msra.mxu0 0.0
      %2333 = vmatprep.subr.mxu0 0.0
      %2334 = vmatpush1.msra.mxu0 0.0
      %2335 = vmatprep.subr.mxu0 0.0
      %2336 = vmatpush1.msra.mxu0 0.0
      %2337 = vmatprep.subr.mxu0 0.0
      %2338 = vmatpush1.msra.mxu0 0.0
      %2339 = vmatprep.subr.mxu0 0.0
      %2340 = vmatpush1.msra.mxu0 0.0
      %2341 = vmatprep.subr.mxu0 0.0
      %2342 = vmatpush1.msra.mxu0 0.0
      %2343 = vmatprep.subr.mxu0 0.0
      %2344 = vmatpush1.msra.mxu0 0.0
      %2345 = vmatprep.mubr.f32.mxu0 0.0
      %2346 = vmatmul.mubr.f32.gmra.mrb[0].mxu0 %v2276
      %v2347 = vpop.f32.mrb[0].mxu0
      %v2348 = vadd.f32 0.0, %v2347
      %v2349 = vpop.f32.mrb[0].mxu0
      %2350 = vmatprep.mubr.f32.mxu0 0.0
      %2351 = vmatmul.mubr.f32.gmra.mrb[0].mxu0 %v2279
      %v2352 = vpop.f32.mrb[0].mxu0
      %v2353 = vadd.f32 0.0, %v2352
      %v2354 = vpop.f32.mrb[0].mxu0
      %2355 = vdwg.mxu0
      %v2356 = vmul.f32 %v2348, 0.22314355
      %v2357 = vmul.f32 %v2353, 0.22314355
      %v2358 = vadd.f32 %v2273, %v2356
      %v2359 = vadd.f32 %v2274, %v2357
      %2360 = vst.msk [vmem:[%s453] sm:$0xff] %vm496, %v2358
      %2361 = vst.msk [vmem:[%s453 + $0x8] sm:$0xff] %vm496, %v2359
      %p2362 = scmp.lt.s32.totalorder %s23, 3
      %s2363 = scalar_select %p2362, %s23, 3
      %s2364 = smul.addr %s2363, 2
      %s2365 = smul.addr %s2364, 8
      %s2366 = scalar_lea.vmem %s12, %s2365
      // Predicated region
      $region73: #{fwd.3} parent=67 // pred_check
        %p2367 = pneg %p308
      $region74: #{fwd.3} parent=67 // pred_check_branch
        %2369 = sbr.rel (%p2367) target = $region76
      $region75: #{fwd.3} parent=67 // pred_region
        _
      $region76: #{fwd.3} parent=67 // pred_fallthru
        _
    $region68: #{fwd.3} parent=5 // pred_fallthru
      _
    %p2370 = scmp.le.s32.totalorder 2, %s18
    // Predicated region
    $region77: #{fwd.3} parent=5 // pred_check
      %p2371 = pneg %p2370
    $region78: #{fwd.3} parent=5 // pred_check_branch
      %2373 = sbr.rel (%p2371) target = $region80
    $region79: #{fwd.3} parent=5 // pred_region
      %s2374 = ssub.s32 %s18, 2
      // Predicated region
      $region81: #{fwd.3} parent=79 // pred_check
        %p2375 = pneg %p314
      $region82: #{fwd.3} parent=79 // pred_check_branch
        %2377 = sbr.rel (%p2375) target = $region84
      $region83: #{fwd.3} parent=79 // pred_region
        %p2378 = scmp.lt.s32.totalorder %s24, 3
        %s2379 = scalar_select %p2378, %s24, 3
        %s2380 = smul.addr %s2379, 2
        %s2381 = smul.addr %s2380, 8
        %s2382 = scalar_lea.vmem %s12, %s2381
      $region84: #{fwd.3} parent=79 // pred_fallthru
        _
    $region80: #{fwd.3} parent=5 // pred_fallthru
      _
  $region6: #{fwd.3} parent=0 // loop_footer
    %s22 = sadd.s32 1, %s18
  $region7: #{fwd.3} parent=0 // loop_footer_branch
    %17 = sbr.rel target = $region3
  $region8: #{fwd.3} parent=0 // loop_exit
    _

</llo_original>
